<compile_context>
chip_gen: v7x
topology: tpu7x:2x2x1
jax: 0.10.0
libtpu: 0.0.40
codegen_flags: <defaults>
</compile_context>

<pallas_src>
import jax
import jax.numpy as jnp
from jax.experimental import pallas as pl
from jax.experimental.pallas import tpu as pltpu


LANE = 128
SC_K_TILE = 512      # K tile for the big sc layer-1 matmul (safe on v5e/v6e/v7x)


def _round_up(x, m):
    return ((x + m - 1) // m) * m


# ----------------------------------------------------------------------------
# Kernel A: big sc layer-1      out = relu(x @ W + b) * scale + shift
# Grid = (N-halves [parallel], K-steps [arbitrary]); the output block is
# k-invariant so it stays VMEM-resident and is used directly as accumulator.
# ----------------------------------------------------------------------------
def _linear_relu_bn_kernel(x_ref, w_ref, b_ref, scale_ref, shift_ref, o_ref):
    k = pl.program_id(1)

    @pl.when(k == 0)
    def _():
        o_ref[...] = jnp.zeros_like(o_ref)

    o_ref[...] += jnp.dot(x_ref[...], w_ref[...],
                          preferred_element_type=jnp.float32)

    @pl.when(k == pl.num_programs(1) - 1)
    def _():
        z = o_ref[...] + b_ref[...]                 # bias broadcast over batch
        o_ref[...] = jnp.maximum(z, 0.0) * scale_ref[...] + shift_ref[...]


def sc_layer1(x, w, b, scale, shift, *, tk=SC_K_TILE):
    """x:(B,K) f32 unpadded; w:(Kp,Np), b/scale/shift:(1,Np) pre-padded.
    Returns the PADDED activation (Bp, Np) (padded columns are exactly 0)."""
    B, K = x.shape
    Kp, Np = w.shape
    Bp = _round_up(B, 8)

    xp = jnp.zeros((Bp, Kp), jnp.float32).at[:B, :K].set(x)

    n_n = 2 if Np % (2 * LANE) == 0 else 1          # split N across 2 TCs (v7x)
    tn = Np // n_n
    n_k = Kp // tk

    flops = 2 * Bp * Kp * Np
    bytes_accessed = 4 * (Kp * Np + Bp * Kp + Bp * Np + 3 * Np)

    out = pl.pallas_call(
        _linear_relu_bn_kernel,
        out_shape=jax.ShapeDtypeStruct((Bp, Np), jnp.float32),
        grid_spec=pltpu.PrefetchScalarGridSpec(
            num_scalar_prefetch=0,
            grid=(n_n, n_k),
            in_specs=[
                pl.BlockSpec((Bp, tk), lambda j, k: (0, k)),   # x
                pl.BlockSpec((tk, tn), lambda j, k: (k, j)),   # W  (streamed)
                pl.BlockSpec((1, tn),  lambda j, k: (0, j)),   # bias
                pl.BlockSpec((1, tn),  lambda j, k: (0, j)),   # bn scale
                pl.BlockSpec((1, tn),  lambda j, k: (0, j)),   # bn shift
            ],
            out_specs=pl.BlockSpec((Bp, tn), lambda j, k: (0, j)),
        ),
        compiler_params=pltpu.CompilerParams(
            dimension_semantics=("parallel", "arbitrary"),
            vmem_limit_bytes=48 * 1024 * 1024),
        cost_estimate=pl.CostEstimate(flops=flops, transcendentals=0,
                                      bytes_accessed=bytes_accessed),
    )(xp, w, b, scale, shift)
    return out


# ----------------------------------------------------------------------------
# Kernel B: fused tail — param layer1 + layer2, sc layer2, and sigmoid head,
# all in a single pallas_call (everything resident in VMEM, grid=(1,)).
# ----------------------------------------------------------------------------
def _fused_tail_kernel(xp_ref, hsc_ref,
                       pw1_ref, pb1_ref, ps1_ref, pt1_ref,
                       pw2_ref, pb2_ref, ps2_ref, pt2_ref,
                       sw2_ref, sb2_ref, ss2_ref, st2_ref,
                       ow_ref, ob_ref, o_ref):
    # param branch layer 1
    h1 = jnp.dot(xp_ref[...], pw1_ref[...], preferred_element_type=jnp.float32)
    h1 = jnp.maximum(h1 + pb1_ref[...], 0.0) * ps1_ref[...] + pt1_ref[...]
    # param branch layer 2
    p2 = jnp.dot(h1, pw2_ref[...], preferred_element_type=jnp.float32)
    p2 = jnp.maximum(p2 + pb2_ref[...], 0.0) * ps2_ref[...] + pt2_ref[...]
    # sc branch layer 2 (input is the padded output of kernel A)
    s2 = jnp.dot(hsc_ref[...], sw2_ref[...], preferred_element_type=jnp.float32)
    s2 = jnp.maximum(s2 + sb2_ref[...], 0.0) * ss2_ref[...] + st2_ref[...]
    # sigmoid head: (p2 + s2) @ w_head + b_head   (w_head zero-padded lanes)
    combined = p2 + s2
    logits = jnp.sum(combined * ow_ref[...], axis=-1, keepdims=True) + ob_ref[0, 0]
    o_ref[...] = jnp.broadcast_to(jax.nn.sigmoid(logits), o_ref.shape)


def _full_spec(shape):
    zeros = (0,) * len(shape)
    return pl.BlockSpec(shape, lambda i, _z=zeros: _z)


def fused_tail(x_param, h_sc, pp):
    B, Kin = x_param.shape
    Bp = h_sc.shape[0]
    kpp, hpp = pp["p_w1"].shape
    hsp, fp = pp["s_w2"].shape

    xp = jnp.zeros((Bp, kpp), jnp.float32).at[:B, :Kin].set(x_param)

    args = (xp, h_sc,
            pp["p_w1"], pp["p_b1"], pp["p_s1"], pp["p_t1"],
            pp["p_w2"], pp["p_b2"], pp["p_s2"], pp["p_t2"],
            pp["s_w2"], pp["s_b2"], pp["s_s2"], pp["s_t2"],
            pp["o_w"], pp["o_b"])

    flops = 2 * Bp * (kpp * hpp + hpp * fp + hsp * fp) + 6 * Bp * fp
    bytes_accessed = 4 * (sum(int(a.size) for a in args) + Bp * fp)

    out = pl.pallas_call(
        _fused_tail_kernel,
        out_shape=jax.ShapeDtypeStruct((Bp, fp), jnp.float32),
        grid_spec=pltpu.PrefetchScalarGridSpec(
            num_scalar_prefetch=0,
            grid=(1,),
            in_specs=[_full_spec(a.shape) for a in args],
            out_specs=_full_spec((Bp, fp)),
        ),
        compiler_params=pltpu.CompilerParams(
            dimension_semantics=("arbitrary",),
            vmem_limit_bytes=32 * 1024 * 1024),
        cost_estimate=pl.CostEstimate(flops=flops, transcendentals=Bp,
                                      bytes_accessed=bytes_accessed),
    )(*args)
    return out[:B, 0:1]


# ----------------------------------------------------------------------------
# Parameter construction (logical, PyTorch-equivalent) + one-time padding.
# ----------------------------------------------------------------------------
def _init_linear(key, in_f, out_f):
    kw, kb = jax.random.split(key)
    bound = 1.0 / jnp.sqrt(in_f)
    # stored as (in_f, out_f) — PyTorch weight transposed, ready for x @ W
    w = jax.random.uniform(kw, (in_f, out_f), jnp.float32, -bound, bound)
    b = jax.random.uniform(kb, (out_f,), jnp.float32, -bound, bound)
    return w, b


def _init_bn(key, num_f, eps=1e-5):
    k1, k2, k3, k4 = jax.random.split(key, 4)
    gamma = 1.0 + 0.1 * jax.random.normal(k1, (num_f,), jnp.float32)
    beta = 0.1 * jax.random.normal(k2, (num_f,), jnp.float32)
    running_mean = 0.1 * jax.random.normal(k3, (num_f,), jnp.float32)
    running_var = 1.0 + 0.1 * jax.random.uniform(k4, (num_f,), jnp.float32)
    scale = gamma / jnp.sqrt(running_var + eps)
    shift = beta - running_mean * scale
    return scale, shift


def make_params(key, n_roi=100):
    in_param = 3 * n_roi + 1
    in_sc = n_roi * (n_roi - 1) // 2
    keys = jax.random.split(key, 16)
    params = {}
    params["p_w1"], params["p_b1"] = _init_linear(keys[0], in_param, 284)
    params["p_s1"], params["p_t1"] = _init_bn(keys[1], 284)
    params["p_w2"], params["p_b2"] = _init_linear(keys[2], 284, 63)
    params["p_s2"], params["p_t2"] = _init_bn(keys[3], 63)
    params["s_w1"], params["s_b1"] = _init_linear(keys[4], in_sc, 4737)
    params["s_s1"], params["s_t1"] = _init_bn(keys[5], 4737)
    params["s_w2"], params["s_b2"] = _init_linear(keys[6], 4737, 63)
    params["s_s2"], params["s_t2"] = _init_bn(keys[7], 63)
    w_out, b_out = _init_linear(keys[8], 63, 1)
    params["o_w"], params["o_b"] = w_out[:, 0], b_out[0]
    return params


def _pad2(a, rows, cols):
    return jnp.zeros((rows, cols), jnp.float32).at[:a.shape[0], :a.shape[1]].set(a)


def _pad_row(v, cols):
    return jnp.zeros((1, cols), jnp.float32).at[0, :v.shape[0]].set(v)


def prepare_params(params):
    """One-time padding of all weights / BN affines to TPU-friendly shapes.
    Done once, NOT on the forward critical path."""
    in_param, h_param = params["p_w1"].shape      # (3*n_roi+1, 284)
    in_sc, h_sc = params["s_w1"].shape            # (n_roi*(n_roi-1)/2, 4737)
    kpp = _round_up(in_param, LANE)
    hpp = _round_up(h_param, LANE)                # 384
    ksp = _round_up(in_sc, SC_K_TILE)             # multiple of the big K tile
    hsp = _round_up(h_sc, LANE)                   # 4864
    fp = _round_up(63, LANE)                      # 128
    pp = {
        # sc layer-1 (big, streamed by kernel A)
        "s_w1": _pad2(params["s_w1"], ksp, hsp),
        "s_b1": _pad_row(params["s_b1"], hsp),
        "s_s1": _pad_row(params["s_s1"], hsp),
        "s_t1": _pad_row(params["s_t1"], hsp),
        # fused tail (kernel B)
        "p_w1": _pad2(params["p_w1"], kpp, hpp),
        "p_b1": _pad_row(params["p_b1"], hpp),
        "p_s1": _pad_row(params["p_s1"], hpp),
        "p_t1": _pad_row(params["p_t1"], hpp),
        "p_w2": _pad2(params["p_w2"], hpp, fp),
        "p_b2": _pad_row(params["p_b2"], fp),
        "p_s2": _pad_row(params["p_s2"], fp),
        "p_t2": _pad_row(params["p_t2"], fp),
        "s_w2": _pad2(params["s_w2"], hsp, fp),
        "s_b2": _pad_row(params["s_b2"], fp),
        "s_s2": _pad_row(params["s_s2"], fp),
        "s_t2": _pad_row(params["s_t2"], fp),
        "o_w": _pad_row(params["o_w"], fp),
        "o_b": jnp.full((1, 1), params["o_b"], jnp.float32),
    }
    return pp


# ----------------------------------------------------------------------------
# Forward passes
# ----------------------------------------------------------------------------
def forward(pp, parameter, sc_mat):
    # big sc layer-1 (weight-bandwidth bound); output kept padded
    h_sc = sc_layer1(sc_mat, pp["s_w1"], pp["s_b1"], pp["s_s1"], pp["s_t1"])
    # everything else fused into one kernel
    return fused_tail(parameter, h_sc, pp)


def forward_ref(params, parameter, sc_mat):
    """Pure-JAX reference for correctness checking."""
    def lrb(x, w, b, sc, sh):
        return jnp.maximum(x @ w + b, 0.0) * sc + sh
    p = lrb(parameter, params["p_w1"], params["p_b1"], params["p_s1"], params["p_t1"])
    p = lrb(p, params["p_w2"], params["p_b2"], params["p_s2"], params["p_t2"])
    s = lrb(sc_mat, params["s_w1"], params["s_b1"], params["s_s1"], params["s_t1"])
    s = lrb(s, params["s_w2"], params["s_b2"], params["s_s2"], params["s_t2"])
    logits = (p + s) @ params["o_w"][:, None] + params["o_b"]
    return jax.nn.sigmoid(logits)


if __name__ == "__main__":
    # small shapes consistent with the module: n_roi=16, batch=8
    n_roi = 16
    batch = 8
    key = jax.random.PRNGKey(0)
    k_params, k_x1, k_x2 = jax.random.split(key, 3)

    params = make_params(k_params, n_roi=n_roi)
    prepped = prepare_params(params)            # one-time weight padding

    parameter = jax.random.normal(k_x1, (batch, 3 * n_roi + 1), jnp.float32)
    sc_mat = jax.random.normal(k_x2, (batch, n_roi * (n_roi - 1) // 2), jnp.float32)

    out = forward(prepped, parameter, sc_mat)
    out = jax.block_until_ready(out)

    ref = forward_ref(params, parameter, sc_mat)
    assert out.shape == (batch, 1), out.shape
    assert jnp.allclose(out, ref, atol=1e-4, rtol=1e-4), (out, ref)

    print("KERNEL_OK")
</pallas_src>

<mosaic_0001>
module attributes {stable_mosaic.version = 11 : i64} {
  func.func @_linear_relu_bn_kernel(%arg0: i32, %arg1: i32, %arg2: memref<8x512xf32, #tpu.memory_space<vmem>>, %arg3: memref<512x2432xf32, #tpu.memory_space<vmem>>, %arg4: memref<1x2432xf32, #tpu.memory_space<vmem>>, %arg5: memref<1x2432xf32, #tpu.memory_space<vmem>>, %arg6: memref<1x2432xf32, #tpu.memory_space<vmem>>, %arg7: memref<8x2432xf32, #tpu.memory_space<vmem>>) attributes {dimension_semantics = [#tpu.dimension_semantics<parallel>, #tpu.dimension_semantics<arbitrary>], iteration_bounds = array<i64: 2, 1>, scalar_prefetch = 0 : i64, scratch_operands = 0 : i64, tpu.core_type = #tpu.core_type<tc>, window_params = [{transform_indices = @transform_0, window_bounds = array<i64: 8, 512>}, {transform_indices = @transform_1, window_bounds = array<i64: 512, 2432>}, {transform_indices = @transform_2, window_bounds = array<i64: 1, 2432>}, {transform_indices = @transform_3, window_bounds = array<i64: 1, 2432>}, {transform_indices = @transform_4, window_bounds = array<i64: 1, 2432>}, {transform_indices = @transform_5, window_bounds = array<i64: 8, 2432>}]} {
    %c0_i32 = arith.constant 0 : i32
    %0 = arith.cmpi eq, %arg1, %c0_i32 : i32
    %1 = arith.extui %0 : i1 to i32
    %c0_i32_0 = arith.constant 0 : i32
    %2 = arith.cmpi ne, %1, %c0_i32_0 : i32
    scf.if %2 {
      %cst_10 = arith.constant 0.000000e+00 : f32
      %12 = vector.broadcast %cst_10 : f32 to vector<8x2432xf32>
      %c0_11 = arith.constant 0 : index
      %c0_12 = arith.constant 0 : index
      %13 = vector.load %arg7[%c0_11, %c0_12] : memref<8x2432xf32, #tpu.memory_space<vmem>>, vector<8x2432xf32>
      tpu.vector_store %arg7[%c0_11, %c0_12], %12 {strides = array<i32>} : memref<8x2432xf32, #tpu.memory_space<vmem>>, vector<8x2432xf32>,
    } else {
    }
    %c0 = arith.constant 0 : index
    %c0_1 = arith.constant 0 : index
    %3 = vector.load %arg7[%c0, %c0_1] : memref<8x2432xf32, #tpu.memory_space<vmem>>, vector<8x2432xf32>
    %c0_2 = arith.constant 0 : index
    %c0_3 = arith.constant 0 : index
    %4 = vector.load %arg2[%c0_2, %c0_3] : memref<8x512xf32, #tpu.memory_space<vmem>>, vector<8x512xf32>
    %c0_4 = arith.constant 0 : index
    %c0_5 = arith.constant 0 : index
    %5 = vector.load %arg3[%c0_4, %c0_5] : memref<512x2432xf32, #tpu.memory_space<vmem>>, vector<512x2432xf32>
    %cst = arith.constant dense<0.000000e+00> : vector<8x2432xf32>
    %6 = tpu.matmul %4, %5, %cst {dimension_numbers = #tpu.dot_dimension_numbers<[1], [0], [0], [1], [0, 0, 1, 1], [], []>} : vector<8x512xf32>, vector<512x2432xf32>, vector<8x2432xf32> -> vector<8x2432xf32>
    %7 = arith.addf %3, %6 : vector<8x2432xf32>
    %c0_6 = arith.constant 0 : index
    %c0_7 = arith.constant 0 : index
    %8 = vector.load %arg7[%c0_6, %c0_7] : memref<8x2432xf32, #tpu.memory_space<vmem>>, vector<8x2432xf32>
    tpu.vector_store %arg7[%c0_6, %c0_7], %7 {strides = array<i32>} : memref<8x2432xf32, #tpu.memory_space<vmem>>, vector<8x2432xf32>,
    %c0_i32_8 = arith.constant 0 : i32
    %9 = arith.cmpi eq, %arg1, %c0_i32_8 : i32
    %10 = arith.extui %9 : i1 to i32
    %c0_i32_9 = arith.constant 0 : i32
    %11 = arith.cmpi ne, %10, %c0_i32_9 : i32
    scf.if %11 {
      %c0_10 = arith.constant 0 : index
      %c0_11 = arith.constant 0 : index
      %12 = vector.load %arg7[%c0_10, %c0_11] : memref<8x2432xf32, #tpu.memory_space<vmem>>, vector<8x2432xf32>
      %c0_12 = arith.constant 0 : index
      %c0_13 = arith.constant 0 : index
      %13 = vector.load %arg4[%c0_12, %c0_13] : memref<1x2432xf32, #tpu.memory_space<vmem>>, vector<1x2432xf32>
      %14 = vector.broadcast %13 : vector<1x2432xf32> to vector<8x2432xf32>
      %15 = arith.addf %12, %14 : vector<8x2432xf32>
      %cst_14 = arith.constant 0.000000e+00 : f32
      %16 = vector.broadcast %cst_14 : f32 to vector<8x2432xf32>
      %17 = arith.maximumf %15, %16 : vector<8x2432xf32>
      %c0_15 = arith.constant 0 : index
      %c0_16 = arith.constant 0 : index
      %18 = vector.load %arg5[%c0_15, %c0_16] : memref<1x2432xf32, #tpu.memory_space<vmem>>, vector<1x2432xf32>
      %19 = vector.broadcast %18 : vector<1x2432xf32> to vector<8x2432xf32>
      %20 = arith.mulf %17, %19 : vector<8x2432xf32>
      %c0_17 = arith.constant 0 : index
      %c0_18 = arith.constant 0 : index
      %21 = vector.load %arg6[%c0_17, %c0_18] : memref<1x2432xf32, #tpu.memory_space<vmem>>, vector<1x2432xf32>
      %22 = vector.broadcast %21 : vector<1x2432xf32> to vector<8x2432xf32>
      %23 = arith.addf %20, %22 : vector<8x2432xf32>
      %c0_19 = arith.constant 0 : index
      %c0_20 = arith.constant 0 : index
      %24 = vector.load %arg7[%c0_19, %c0_20] : memref<8x2432xf32, #tpu.memory_space<vmem>>, vector<8x2432xf32>
      tpu.vector_store %arg7[%c0_19, %c0_20], %23 {strides = array<i32>} : memref<8x2432xf32, #tpu.memory_space<vmem>>, vector<8x2432xf32>,
    } else {
    }
    return
  }
  func.func @transform_0(%arg0: i32, %arg1: i32) -> (i32, i32) {
    %c0_i32 = arith.constant 0 : i32
    %c0_i32_0 = arith.constant 0 : i32
    return %c0_i32, %arg1 : i32, i32
  }
  func.func @transform_1(%arg0: i32, %arg1: i32) -> (i32, i32) {
    %c0_i32 = arith.constant 0 : i32
    return %arg1, %arg0 : i32, i32
  }
  func.func @transform_2(%arg0: i32, %arg1: i32) -> (i32, i32) {
    %c0_i32 = arith.constant 0 : i32
    %c0_i32_0 = arith.constant 0 : i32
    return %c0_i32, %arg0 : i32, i32
  }
  func.func @transform_3(%arg0: i32, %arg1: i32) -> (i32, i32) {
    %c0_i32 = arith.constant 0 : i32
    %c0_i32_0 = arith.constant 0 : i32
    return %c0_i32, %arg0 : i32, i32
  }
  func.func @transform_4(%arg0: i32, %arg1: i32) -> (i32, i32) {
    %c0_i32 = arith.constant 0 : i32
    %c0_i32_0 = arith.constant 0 : i32
    return %c0_i32, %arg0 : i32, i32
  }
  func.func @transform_5(%arg0: i32, %arg1: i32) -> (i32, i32) {
    %c0_i32 = arith.constant 0 : i32
    %c0_i32_0 = arith.constant 0 : i32
    return %c0_i32, %arg0 : i32, i32
  }
}

</mosaic_0001>

<llo_original>
// kernel: tpu_custom_call.1
$region0: #{tpu_custom_call.1}
  #allocation0 [shape = 'u32[]', space=smem, size = 0x4, offset = 0x4, fixed_abs, tag = 'smem constant byte address 0x4 - core index']
  #allocation1 [shape = 'u32[144,128]{1,0:T(1,128)}', space=vmem, size = 0x12000, scoped, tag = 'internal scratch']
  %s0 = inlined_call_operand.hbm [shape: f32[8,512], index: 0, kind: input, shape index: {}]
  %s1 = inlined_call_operand.hbm [shape: f32[512,4864], index: 1, kind: input, shape index: {}]
  %s2 = inlined_call_operand.hbm [shape: f32[1,4864], index: 2, kind: input, shape index: {}]
  %s3 = inlined_call_operand.hbm [shape: f32[1,4864], index: 3, kind: input, shape index: {}]
  %s4 = inlined_call_operand.hbm [shape: f32[1,4864], index: 4, kind: input, shape index: {}]
  %s5 = inlined_call_operand.hbm [shape: f32[8,4864], index: 5, kind: output, shape index: {}]
  %s6 = sld [smem:[#allocation0]]
  $region81: #{tpu_custom_call.1} parent=0
    _
  %s8 = ssub.s32 1, %s6
  %s9 = scalar_select 0, %s8, %s6
  $region1: #{tpu_custom_call.1} parent=0
    #allocation2 [shape = 'u8[16384]{0}', space=vmem, size = 0x4000, scoped, tag = 'input window, operand 0, single buffered']
    #allocation3 [shape = 's32[2]{0}', space=sflag, size = 0x8, scoped, tag = 'scoped memory for tpu_custom_call.1']
    #allocation4 [shape = 's32[2]{0}', space=sflag, size = 0x8, scoped, tag = 'scoped memory for tpu_custom_call.1']
    #allocation5 [shape = 'u8[9961472]{0}', space=vmem, size = 0x980000, scoped, tag = 'input window, operand 1']
    #allocation6 [shape = 's32[2]{0}', space=sflag, size = 0x8, scoped, tag = 'scoped memory for tpu_custom_call.1']
    #allocation7 [shape = 'u8[19456]{0}', space=vmem, size = 0x4c00, scoped, tag = 'input window, operand 2']
    #allocation8 [shape = 'u8[19456]{0}', space=vmem, size = 0x4c00, scoped, tag = 'input window, operand 3']
    #allocation9 [shape = 's32[2]{0}', space=sflag, size = 0x8, scoped, tag = 'scoped memory for tpu_custom_call.1']
    #allocation10 [shape = 'u8[19456]{0}', space=vmem, size = 0x4c00, scoped, tag = 'input window, operand 4']
    #allocation11 [shape = 'u8[155648]{0}', space=vmem, size = 0x26000, scoped, tag = 'output window, operand 0']
    %10 = vsyncpa [#allocation3], 0
    %11 = vsyncpa [#allocation6], 0
    %s12 = scalar_lea.sflag [#allocation6], 1
    %13 = vsyncpa %s12, 0
    %14 = vsyncpa [#allocation9], 0
    %s15 = scalar_lea.sflag [#allocation9], 1
    %16 = vsyncpa %s15, 0
    %17 = vsyncpa [#allocation4], 0
    %s18 = scalar_lea.sflag [#allocation4], 1
    %19 = vsyncpa %s18, 0
    loop: start=0, step=1, limit=4
    $region2: #{tpu_custom_call.1} parent=1 // loop_pre_header
      _
    $region3: #{tpu_custom_call.1} parent=1 // loop_header
      %s21 = sphi 0, %s25
      %p22 = scmp.ge.s32.totalorder %s21, 4
      %s28 = sphi 0, %s40
      %s29 = sphi 0, %s36
      %s30 = sphi 0, %s28
      %s31 = sphi 0, %s29
      %s32 = sphi 0, %s30
      %s33 = sphi 0, %s31
      %s43 = sphi 0, %s45
      %s46 = sphi 0, %s43
      %s47 = sphi 0, %s46
      %s63 = sphi 0, %s47
      %s71 = sphi 0, %s73
      %s74 = sphi 0, %s71
      %s75 = sphi 0, %s74
      %s91 = sphi 0, %s75
      %s97 = sphi 0, %s99
      %s100 = sphi 0, %s97
      %s101 = sphi 0, %s100
      %s117 = sphi 0, %s101
      %s123 = sphi 0, %s125
      %s126 = sphi 0, %s123
      %s127 = sphi 0, %s126
      %s143 = sphi 0, %s127
      %s149 = sphi 0, %s151
      %s152 = sphi 0, %s149
      %s153 = sphi 0, %s152
      %s169 = sphi 0, %s153
      %s175 = sphi 0, %s177
      %s178 = sphi 0, %s175
      %s179 = sphi 0, %s178
      %s195 = sphi 0, %s179
    $region4: #{tpu_custom_call.1} parent=1 // loop_header_branch
      %24 = sbr.rel (%p22) target = $region8
    $region5: #{tpu_custom_call.1} parent=1 // loop_body
      %s26 = ssub.s32 %s21, 1
      %s27 = ssub.s32 %s21, 2
      %s34 = sadd.s32 1, %s29
      %p35 = scmp.ge.s32.totalorder %s34, 1
      %s36 = scalar_select %p35, 0, %s34
      %s37 = sadd.s32 1, %s28
      %s38 = scalar_select %p35, %s37, %s28
      %p39 = scmp.ge.s32.totalorder %s38, 2
      %s40 = scalar_select %p39, 0, %s38
      %s41 = ssub.s32 %s29, %s36
      %p42 = scmp.eq.s32.totalorder %s41, 0
      %s44 = sadd.s32 %s43, 1
      %s45 = scalar_select %p42, %s43, %s44
      %p48 = pneg %p42
      %p49 = scmp.eq.s32.totalorder %s21, 1
      %p50 = por %p48, %p49
      %p51 = scmp.ne.s32.totalorder %s43, %s46
      %p52 = scmp.eq.s32.totalorder %s21, 0
      %p53 = por %p51, %p52
      %p54 = scmp.ne.s32.totalorder %s43, %s46
      %p55 = scmp.eq.s32.totalorder %s26, 1
      %p56 = por %p54, %p55
      %p57 = scmp.ne.s32.totalorder %s46, %s47
      %p58 = scmp.eq.s32.totalorder %s26, 0
      %p59 = por %p57, %p58
      %p60 = scmp.ne.s32.totalorder %s46, %s47
      %p61 = scmp.eq.s32.totalorder %s27, 1
      %p62 = por %p60, %p61
      %p64 = scmp.ne.s32.totalorder %s47, %s63
      %p65 = scmp.eq.s32.totalorder %s27, 0
      %p66 = por %p64, %p65
      %s67 = ssub.s32 %s29, %s36
      %s68 = ssub.s32 %s28, %s40
      %s69 = sor.u32 %s67, %s68
      %p70 = scmp.eq.s32.totalorder %s69, 0
      %s72 = sadd.s32 %s71, 1
      %s73 = scalar_select %p70, %s71, %s72
      %p76 = pneg %p70
      %p77 = scmp.eq.s32.totalorder %s21, 1
      %p78 = por %p76, %p77
      %p79 = scmp.ne.s32.totalorder %s71, %s74
      %p80 = scmp.eq.s32.totalorder %s21, 0
      %p81 = por %p79, %p80
      %p82 = scmp.ne.s32.totalorder %s71, %s74
      %p83 = scmp.eq.s32.totalorder %s26, 1
      %p84 = por %p82, %p83
      %p85 = scmp.ne.s32.totalorder %s74, %s75
      %p86 = scmp.eq.s32.totalorder %s26, 0
      %p87 = por %p85, %p86
      %p88 = scmp.ne.s32.totalorder %s74, %s75
      %p89 = scmp.eq.s32.totalorder %s27, 1
      %p90 = por %p88, %p89
      %p92 = scmp.ne.s32.totalorder %s75, %s91
      %p93 = scmp.eq.s32.totalorder %s27, 0
      %p94 = por %p92, %p93
      %s95 = ssub.s32 %s28, %s40
      %p96 = scmp.eq.s32.totalorder %s95, 0
      %s98 = sadd.s32 %s97, 1
      %s99 = scalar_select %p96, %s97, %s98
      %p102 = pneg %p96
      %p103 = scmp.eq.s32.totalorder %s21, 1
      %p104 = por %p102, %p103
      %p105 = scmp.ne.s32.totalorder %s97, %s100
      %p106 = scmp.eq.s32.totalorder %s21, 0
      %p107 = por %p105, %p106
      %p108 = scmp.ne.s32.totalorder %s97, %s100
      %p109 = scmp.eq.s32.totalorder %s26, 1
      %p110 = por %p108, %p109
      %p111 = scmp.ne.s32.totalorder %s100, %s101
      %p112 = scmp.eq.s32.totalorder %s26, 0
      %p113 = por %p111, %p112
      %p114 = scmp.ne.s32.totalorder %s100, %s101
      %p115 = scmp.eq.s32.totalorder %s27, 1
      %p116 = por %p114, %p115
      %p118 = scmp.ne.s32.totalorder %s101, %s117
      %p119 = scmp.eq.s32.totalorder %s27, 0
      %p120 = por %p118, %p119
      %s121 = ssub.s32 %s28, %s40
      %p122 = scmp.eq.s32.totalorder %s121, 0
      %s124 = sadd.s32 %s123, 1
      %s125 = scalar_select %p122, %s123, %s124
      %p128 = pneg %p122
      %p129 = scmp.eq.s32.totalorder %s21, 1
      %p130 = por %p128, %p129
      %p131 = scmp.ne.s32.totalorder %s123, %s126
      %p132 = scmp.eq.s32.totalorder %s21, 0
      %p133 = por %p131, %p132
      %p134 = scmp.ne.s32.totalorder %s123, %s126
      %p135 = scmp.eq.s32.totalorder %s26, 1
      %p136 = por %p134, %p135
      %p137 = scmp.ne.s32.totalorder %s126, %s127
      %p138 = scmp.eq.s32.totalorder %s26, 0
      %p139 = por %p137, %p138
      %p140 = scmp.ne.s32.totalorder %s126, %s127
      %p141 = scmp.eq.s32.totalorder %s27, 1
      %p142 = por %p140, %p141
      %p144 = scmp.ne.s32.totalorder %s127, %s143
      %p145 = scmp.eq.s32.totalorder %s27, 0
      %p146 = por %p144, %p145
      %s147 = ssub.s32 %s28, %s40
      %p148 = scmp.eq.s32.totalorder %s147, 0
      %s150 = sadd.s32 %s149, 1
      %s151 = scalar_select %p148, %s149, %s150
      %p154 = pneg %p148
      %p155 = scmp.eq.s32.totalorder %s21, 1
      %p156 = por %p154, %p155
      %p157 = scmp.ne.s32.totalorder %s149, %s152
      %p158 = scmp.eq.s32.totalorder %s21, 0
      %p159 = por %p157, %p158
      %p160 = scmp.ne.s32.totalorder %s149, %s152
      %p161 = scmp.eq.s32.totalorder %s26, 1
      %p162 = por %p160, %p161
      %p163 = scmp.ne.s32.totalorder %s152, %s153
      %p164 = scmp.eq.s32.totalorder %s26, 0
      %p165 = por %p163, %p164
      %p166 = scmp.ne.s32.totalorder %s152, %s153
      %p167 = scmp.eq.s32.totalorder %s27, 1
      %p168 = por %p166, %p167
      %p170 = scmp.ne.s32.totalorder %s153, %s169
      %p171 = scmp.eq.s32.totalorder %s27, 0
      %p172 = por %p170, %p171
      %s173 = ssub.s32 %s28, %s40
      %p174 = scmp.eq.s32.totalorder %s173, 0
      %s176 = sadd.s32 %s175, 1
      %s177 = scalar_select %p174, %s175, %s176
      %p180 = pneg %p174
      %p181 = scmp.eq.s32.totalorder %s21, 1
      %p182 = por %p180, %p181
      %p183 = scmp.ne.s32.totalorder %s175, %s178
      %p184 = scmp.eq.s32.totalorder %s21, 0
      %p185 = por %p183, %p184
      %p186 = scmp.ne.s32.totalorder %s175, %s178
      %p187 = scmp.eq.s32.totalorder %s26, 1
      %p188 = por %p186, %p187
      %p189 = scmp.ne.s32.totalorder %s178, %s179
      %p190 = scmp.eq.s32.totalorder %s26, 0
      %p191 = por %p189, %p190
      %p192 = scmp.ne.s32.totalorder %s178, %s179
      %p193 = scmp.eq.s32.totalorder %s27, 1
      %p194 = por %p192, %p193
      %p196 = scmp.ne.s32.totalorder %s179, %s195
      %p197 = scmp.eq.s32.totalorder %s27, 0
      %p198 = por %p196, %p197
      %p199 = scmp.le.s32.totalorder 1, %s21
      %p200 = scmp.lt.s32.totalorder %s21, 3
      %p201 = pnand %p199, %p200
      %p202 = pneg %p201
      // Predicated region
      $region9: #{tpu_custom_call.1} parent=5 // pred_check
        _
      $region10: #{tpu_custom_call.1} parent=5 // pred_check_branch
        %204 = sbr.rel (%p201) target = $region12
      $region11: #{tpu_custom_call.1} parent=5 // pred_region
        %s205 = ssub.s32 %s21, 1
        // Predicated region
        $region13: #{tpu_custom_call.1} parent=11 // pred_check
          %p206 = pneg %p59
        $region14: #{tpu_custom_call.1} parent=11 // pred_check_branch
          %208 = sbr.rel (%p206) target = $region16
        $region15: #{tpu_custom_call.1} parent=11 // pred_region
          %s209 = smul.u32 4, %s31
          %s211 = ssub.s32 512, 512
          %212 = vsyncadd [#allocation3], %s211
          %s213 = smul.addr %s209, 128
          %s214 = scalar_lea.hbm %s0, %s213
          %s216 = sshll.u32 [#allocation2], 4
          %s217 = int_to_ptr.vmem [resolvable:$true] %s216
          %219 = dma.hbm_to_vmem [thread:$0]  %s214, 512, %s217, [#allocation3]
        $region16: #{tpu_custom_call.1} parent=11 // pred_fallthru
          _
      $region12: #{tpu_custom_call.1} parent=5 // pred_fallthru
        _
      %p220 = scmp.lt.s32.totalorder %s21, 2
      // Predicated region
      $region17: #{tpu_custom_call.1} parent=5 // pred_check
        %p221 = pneg %p220
      $region18: #{tpu_custom_call.1} parent=5 // pred_check_branch
        %223 = sbr.rel (%p221) target = $region20
      $region19: #{tpu_custom_call.1} parent=5 // pred_region
        // Predicated region
        $region21: #{tpu_custom_call.1} parent=19 // pred_check
          %p224 = pneg %p81
        $region22: #{tpu_custom_call.1} parent=19 // pred_check_branch
          %226 = sbr.rel (%p224) target = $region24
        $region23: #{tpu_custom_call.1} parent=19 // pred_region
          %s227 = sand.u32 %s21, 1
          %s228 = scalar_lea.sflag [#allocation6], %s227
          %s229 = sand.u32 %s71, 1
          %s230 = smul.addr %s229, 9728
          %s231 = scalar_lea.vmem [#allocation5], %s230
          %s232 = smul.u32 64, %s29
          %s233 = smul.u32 19, %s28
          %s235 = ssub.s32 155648, 155648
          %236 = vsyncadd %s228, %s235
          %s237 = smul.addr %s232, 38
          %s238 = sadd.s32 %s233, %s237
          %s239 = smul.addr %s238, 128
          %s240 = scalar_lea.hbm %s1, %s239
          %s241 = sshll.u32 %s231, 4
          %s242 = int_to_ptr.vmem [resolvable:$true] %s241
          %247 = dma.hbm_to_vmem [thread:$0]  %s240, 155648, %s242, %s228, 4864, 2432, 152
        $region24: #{tpu_custom_call.1} parent=19 // pred_fallthru
          _
        // Predicated region
        $region25: #{tpu_custom_call.1} parent=19 // pred_check
          %p248 = pneg %p107
        $region26: #{tpu_custom_call.1} parent=19 // pred_check_branch
          %250 = sbr.rel (%p248) target = $region28
        $region27: #{tpu_custom_call.1} parent=19 // pred_region
          %s251 = sand.u32 %s21, 1
          %s252 = scalar_lea.sflag [#allocation6], %s251
          %s253 = sand.u32 %s97, 1
          %s254 = smul.addr %s253, 19
          %s255 = scalar_lea.vmem [#allocation7], %s254
          %s256 = smul.u32 19, %s28
          %s258 = ssub.s32 304, 304
          %259 = vsyncadd %s252, %s258
          %s260 = smul.addr %s256, 16
          %s261 = scalar_lea.hbm %s2, %s260
          %s263 = sshll.u32 %s255, 4
          %s264 = int_to_ptr.vmem [resolvable:$true] %s263
          %266 = dma.hbm_to_vmem [thread:$0]  %s261, 304, %s264, %s252
        $region28: #{tpu_custom_call.1} parent=19 // pred_fallthru
          _
        // Predicated region
        $region29: #{tpu_custom_call.1} parent=19 // pred_check
          %p267 = pneg %p133
        $region30: #{tpu_custom_call.1} parent=19 // pred_check_branch
          %269 = sbr.rel (%p267) target = $region32
        $region31: #{tpu_custom_call.1} parent=19 // pred_region
          %s270 = sand.u32 %s21, 1
          %s271 = scalar_lea.sflag [#allocation9], %s270
          %s272 = sand.u32 %s123, 1
          %s273 = smul.addr %s272, 19
          %s274 = scalar_lea.vmem [#allocation8], %s273
          %s275 = smul.u32 19, %s28
          %s277 = ssub.s32 304, 304
          %278 = vsyncadd %s271, %s277
          %s279 = smul.addr %s275, 16
          %s280 = scalar_lea.hbm %s3, %s279
          %s282 = sshll.u32 %s274, 4
          %s283 = int_to_ptr.vmem [resolvable:$true] %s282
          %285 = dma.hbm_to_vmem [thread:$0]  %s280, 304, %s283, %s271
        $region32: #{tpu_custom_call.1} parent=19 // pred_fallthru
          _
        // Predicated region
        $region33: #{tpu_custom_call.1} parent=19 // pred_check
          %p286 = pneg %p159
        $region34: #{tpu_custom_call.1} parent=19 // pred_check_branch
          %288 = sbr.rel (%p286) target = $region36
        $region35: #{tpu_custom_call.1} parent=19 // pred_region
          %s289 = sand.u32 %s21, 1
          %s290 = scalar_lea.sflag [#allocation9], %s289
          %s291 = sand.u32 %s149, 1
          %s292 = smul.addr %s291, 19
          %s293 = scalar_lea.vmem [#allocation10], %s292
          %s294 = smul.u32 19, %s28
          %s296 = ssub.s32 304, 304
          %297 = vsyncadd %s290, %s296
          %s298 = smul.addr %s294, 16
          %s299 = scalar_lea.hbm %s4, %s298
          %s301 = sshll.u32 %s293, 4
          %s302 = int_to_ptr.vmem [resolvable:$true] %s301
          %304 = dma.hbm_to_vmem [thread:$0]  %s299, 304, %s302, %s290
        $region36: #{tpu_custom_call.1} parent=19 // pred_fallthru
          _
      $region20: #{tpu_custom_call.1} parent=5 // pred_fallthru
        _
      %p305 = scmp.le.s32.totalorder 1, %s21
      %p306 = scmp.lt.s32.totalorder %s21, 3
      %p307 = pnand %p305, %p306
      %p308 = pneg %p307
      // Predicated region
      $region37: #{tpu_custom_call.1} parent=5 // pred_check
        _
      $region38: #{tpu_custom_call.1} parent=5 // pred_check_branch
        %310 = sbr.rel (%p307) target = $region40
      $region39: #{tpu_custom_call.1} parent=5 // pred_region
        %s311 = ssub.s32 %s21, 1
        // Predicated region
        $region41: #{tpu_custom_call.1} parent=39 // pred_check
          %p312 = pneg %p59
        $region42: #{tpu_custom_call.1} parent=39 // pred_check_branch
          %314 = sbr.rel (%p312) target = $region44
        $region43: #{tpu_custom_call.1} parent=39 // pred_region
          %315 = dma.done [#allocation3], 512
        $region44: #{tpu_custom_call.1} parent=39 // pred_fallthru
          _
        %s316 = sand.u32 %s26, 1
        %s317 = scalar_lea.sflag [#allocation6], %s316
        %s318 = sand.u32 %s74, 1
        %s319 = smul.addr %s318, 9728
        %s320 = scalar_lea.vmem [#allocation5], %s319
        // Predicated region
        $region45: #{tpu_custom_call.1} parent=39 // pred_check
          %p321 = pneg %p87
        $region46: #{tpu_custom_call.1} parent=39 // pred_check_branch
          %323 = sbr.rel (%p321) target = $region48
        $region47: #{tpu_custom_call.1} parent=39 // pred_region
          %324 = dma.done %s317, 155648
        $region48: #{tpu_custom_call.1} parent=39 // pred_fallthru
          _
        %s325 = sand.u32 %s26, 1
        %s326 = scalar_lea.sflag [#allocation6], %s325
        %s327 = sand.u32 %s100, 1
        %s328 = smul.addr %s327, 19
        %s329 = scalar_lea.vmem [#allocation7], %s328
        // Predicated region
        $region49: #{tpu_custom_call.1} parent=39 // pred_check
          %p330 = pneg %p113
        $region50: #{tpu_custom_call.1} parent=39 // pred_check_branch
          %332 = sbr.rel (%p330) target = $region52
        $region51: #{tpu_custom_call.1} parent=39 // pred_region
          %333 = dma.done %s326, 304
        $region52: #{tpu_custom_call.1} parent=39 // pred_fallthru
          _
        %s334 = sand.u32 %s26, 1
        %s335 = scalar_lea.sflag [#allocation9], %s334
        %s336 = sand.u32 %s126, 1
        %s337 = smul.addr %s336, 19
        %s338 = scalar_lea.vmem [#allocation8], %s337
        // Predicated region
        $region53: #{tpu_custom_call.1} parent=39 // pred_check
          %p339 = pneg %p139
        $region54: #{tpu_custom_call.1} parent=39 // pred_check_branch
          %341 = sbr.rel (%p339) target = $region56
        $region55: #{tpu_custom_call.1} parent=39 // pred_region
          %342 = dma.done %s335, 304
        $region56: #{tpu_custom_call.1} parent=39 // pred_fallthru
          _
        %s343 = sand.u32 %s26, 1
        %s344 = scalar_lea.sflag [#allocation9], %s343
        %s345 = sand.u32 %s152, 1
        %s346 = smul.addr %s345, 19
        %s347 = scalar_lea.vmem [#allocation10], %s346
        // Predicated region
        $region57: #{tpu_custom_call.1} parent=39 // pred_check
          %p348 = pneg %p165
        $region58: #{tpu_custom_call.1} parent=39 // pred_check_branch
          %350 = sbr.rel (%p348) target = $region60
        $region59: #{tpu_custom_call.1} parent=39 // pred_region
          %351 = dma.done %s344, 304
        $region60: #{tpu_custom_call.1} parent=39 // pred_fallthru
          _
        %p352 = pneg %p59
        %p353 = pneg %p56
        %s354 = sand.u32 %s26, 1
        %s355 = scalar_lea.sflag [#allocation6], %s354
        %s356 = sand.u32 %s74, 1
        %s357 = smul.addr %s356, 9728
        %s358 = scalar_lea.vmem [#allocation5], %s357
        %p359 = pneg %p87
        %p360 = pneg %p84
        %s361 = sand.u32 %s26, 1
        %s362 = scalar_lea.sflag [#allocation6], %s361
        %s363 = sand.u32 %s100, 1
        %s364 = smul.addr %s363, 19
        %s365 = scalar_lea.vmem [#allocation7], %s364
        %p366 = pneg %p113
        %p367 = pneg %p110
        %s368 = sand.u32 %s26, 1
        %s369 = scalar_lea.sflag [#allocation9], %s368
        %s370 = sand.u32 %s126, 1
        %s371 = smul.addr %s370, 19
        %s372 = scalar_lea.vmem [#allocation8], %s371
        %p373 = pneg %p139
        %p374 = pneg %p136
        %s375 = sand.u32 %s26, 1
        %s376 = scalar_lea.sflag [#allocation9], %s375
        %s377 = sand.u32 %s152, 1
        %s378 = smul.addr %s377, 19
        %s379 = scalar_lea.vmem [#allocation10], %s378
        %p380 = pneg %p165
        %p381 = pneg %p162
        %p382 = pneg %p191
        %p383 = pneg %p188
        %s384 = sand.u32 %s178, 1
        %s385 = scalar_lea.sflag [#allocation4], %s384
        %s386 = sand.u32 %s178, 1
        %s387 = smul.addr %s386, 152
        %s388 = scalar_lea.vmem [#allocation11], %s387
        %s389 = smul.u32 4, %s31
        %s390 = smul.u32 64, %s31
        %s391 = smul.u32 19, %s30
        %s392 = smul.u32 19, %s30
        %s393 = smul.u32 19, %s30
        %s394 = smul.u32 19, %s30
        %s395 = smul.u32 19, %s30
        %p396 = scmp.eq.s32.totalorder %s31, 0
        // Predicated region
        $region61: #{tpu_custom_call.1} parent=39 // pred_check
          %p397 = pneg %p396
        $region62: #{tpu_custom_call.1} parent=39 // pred_check_branch
          %399 = sbr.rel (%p397) target = $region64
        $region63: #{tpu_custom_call.1} parent=39 // pred_region
          %400 = vst [vmem:[%s388] sm:$0xff] 0.0
          %401 = vst [vmem:[%s388 + $0x8] sm:$0xff] 0.0
          %402 = vst [vmem:[%s388 + $0x10] sm:$0xff] 0.0
          %403 = vst [vmem:[%s388 + $0x18] sm:$0xff] 0.0
          %404 = vst [vmem:[%s388 + $0x20] sm:$0xff] 0.0
          %405 = vst [vmem:[%s388 + $0x28] sm:$0xff] 0.0
          %406 = vst [vmem:[%s388 + $0x30] sm:$0xff] 0.0
          %407 = vst [vmem:[%s388 + $0x38] sm:$0xff] 0.0
          %408 = vst [vmem:[%s388 + $0x40] sm:$0xff] 0.0
          %409 = vst [vmem:[%s388 + $0x48] sm:$0xff] 0.0
          %410 = vst [vmem:[%s388 + $0x50] sm:$0xff] 0.0
          %411 = vst [vmem:[%s388 + $0x58] sm:$0xff] 0.0
          %412 = vst [vmem:[%s388 + $0x60] sm:$0xff] 0.0
          %413 = vst [vmem:[%s388 + $0x68] sm:$0xff] 0.0
          %414 = vst [vmem:[%s388 + $0x70] sm:$0xff] 0.0
          %415 = vst [vmem:[%s388 + $0x78] sm:$0xff] 0.0
          %416 = vst [vmem:[%s388 + $0x80] sm:$0xff] 0.0
          %417 = vst [vmem:[%s388 + $0x88] sm:$0xff] 0.0
          %418 = vst [vmem:[%s388 + $0x90] sm:$0xff] 0.0
        $region64: #{tpu_custom_call.1} parent=39 // pred_fallthru
          _
        %v419 = vld [vmem:[%s388] sm:$0xff]
        %v420 = vld [vmem:[%s388 + $0x8] sm:$0xff]
        %v421 = vld [vmem:[%s388 + $0x10] sm:$0xff]
        %v422 = vld [vmem:[%s388 + $0x18] sm:$0xff]
        %v423 = vld [vmem:[%s388 + $0x20] sm:$0xff]
        %v424 = vld [vmem:[%s388 + $0x28] sm:$0xff]
        %v425 = vld [vmem:[%s388 + $0x30] sm:$0xff]
        %v426 = vld [vmem:[%s388 + $0x38] sm:$0xff]
        %v427 = vld [vmem:[%s388 + $0x40] sm:$0xff]
        %v428 = vld [vmem:[%s388 + $0x48] sm:$0xff]
        %v429 = vld [vmem:[%s388 + $0x50] sm:$0xff]
        %v430 = vld [vmem:[%s388 + $0x58] sm:$0xff]
        %v431 = vld [vmem:[%s388 + $0x60] sm:$0xff]
        %v432 = vld [vmem:[%s388 + $0x68] sm:$0xff]
        %v433 = vld [vmem:[%s388 + $0x70] sm:$0xff]
        %v434 = vld [vmem:[%s388 + $0x78] sm:$0xff]
        %v435 = vld [vmem:[%s388 + $0x80] sm:$0xff]
        %v436 = vld [vmem:[%s388 + $0x88] sm:$0xff]
        %v437 = vld [vmem:[%s388 + $0x90] sm:$0xff]
        %v438 = vld [vmem:[#allocation2] sm:$0xff]
        %v439 = vld [vmem:[#allocation2 + $0x8] sm:$0xff]
        %v440 = vld [vmem:[#allocation2 + $0x10] sm:$0xff]
        %v441 = vld [vmem:[#allocation2 + $0x18] sm:$0xff]
        %v442 = vld [vmem:[%s320] sm:$0xff]
        %v443 = vld [vmem:[%s320 + $0x8] sm:$0xff]
        %v444 = vld [vmem:[%s320 + $0x10] sm:$0xff]
        %v445 = vld [vmem:[%s320 + $0x18] sm:$0xff]
        %v446 = vld [vmem:[%s320 + $0x20] sm:$0xff]
        %v447 = vld [vmem:[%s320 + $0x28] sm:$0xff]
        %v448 = vld [vmem:[%s320 + $0x30] sm:$0xff]
        %v449 = vld [vmem:[%s320 + $0x38] sm:$0xff]
        %v450 = vld [vmem:[%s320 + $0x40] sm:$0xff]
        %v451 = vld [vmem:[%s320 + $0x48] sm:$0xff]
        %v452 = vld [vmem:[%s320 + $0x50] sm:$0xff]
        %v453 = vld [vmem:[%s320 + $0x58] sm:$0xff]
        %v454 = vld [vmem:[%s320 + $0x60] sm:$0xff]
        %v455 = vld [vmem:[%s320 + $0x68] sm:$0xff]
        %v456 = vld [vmem:[%s320 + $0x70] sm:$0xff]
        %v457 = vld [vmem:[%s320 + $0x78] sm:$0xff]
        %v458 = vld [vmem:[%s320 + $0x80] sm:$0xff]
        %v459 = vld [vmem:[%s320 + $0x88] sm:$0xff]
        %v460 = vld [vmem:[%s320 + $0x90] sm:$0xff]
        %v461 = vld [vmem:[%s320 + $0x98] sm:$0xff]
        %v462 = vld [vmem:[%s320 + $0xa0] sm:$0xff]
        %v463 = vld [vmem:[%s320 + $0xa8] sm:$0xff]
        %v464 = vld [vmem:[%s320 + $0xb0] sm:$0xff]
        %v465 = vld [vmem:[%s320 + $0xb8] sm:$0xff]
        %v466 = vld [vmem:[%s320 + $0xc0] sm:$0xff]
        %v467 = vld [vmem:[%s320 + $0xc8] sm:$0xff]
        %v468 = vld [vmem:[%s320 + $0xd0] sm:$0xff]
        %v469 = vld [vmem:[%s320 + $0xd8] sm:$0xff]
        %v470 = vld [vmem:[%s320 + $0xe0] sm:$0xff]
        %v471 = vld [vmem:[%s320 + $0xe8] sm:$0xff]
        %v472 = vld [vmem:[%s320 + $0xf0] sm:$0xff]
        %v473 = vld [vmem:[%s320 + $0xf8] sm:$0xff]
        %v474 = vld [vmem:[%s320 + $0x100] sm:$0xff]
        %v475 = vld [vmem:[%s320 + $0x108] sm:$0xff]
        %v476 = vld [vmem:[%s320 + $0x110] sm:$0xff]
        %v477 = vld [vmem:[%s320 + $0x118] sm:$0xff]
        %v478 = vld [vmem:[%s320 + $0x120] sm:$0xff]
        %v479 = vld [vmem:[%s320 + $0x128] sm:$0xff]
        %v480 = vld [vmem:[%s320 + $0x130] sm:$0xff]
        %v481 = vld [vmem:[%s320 + $0x138] sm:$0xff]
        %v482 = vld [vmem:[%s320 + $0x140] sm:$0xff]
        %v483 = vld [vmem:[%s320 + $0x148] sm:$0xff]
        %v484 = vld [vmem:[%s320 + $0x150] sm:$0xff]
        %v485 = vld [vmem:[%s320 + $0x158] sm:$0xff]
        %v486 = vld [vmem:[%s320 + $0x160] sm:$0xff]
        %v487 = vld [vmem:[%s320 + $0x168] sm:$0xff]
        %v488 = vld [vmem:[%s320 + $0x170] sm:$0xff]
        %v489 = vld [vmem:[%s320 + $0x178] sm:$0xff]
        %v490 = vld [vmem:[%s320 + $0x180] sm:$0xff]
        %v491 = vld [vmem:[%s320 + $0x188] sm:$0xff]
        %v492 = vld [vmem:[%s320 + $0x190] sm:$0xff]
        %v493 = vld [vmem:[%s320 + $0x198] sm:$0xff]
        %v494 = vld [vmem:[%s320 + $0x1a0] sm:$0xff]
        %v495 = vld [vmem:[%s320 + $0x1a8] sm:$0xff]
        %v496 = vld [vmem:[%s320 + $0x1b0] sm:$0xff]
        %v497 = vld [vmem:[%s320 + $0x1b8] sm:$0xff]
        %v498 = vld [vmem:[%s320 + $0x1c0] sm:$0xff]
        %v499 = vld [vmem:[%s320 + $0x1c8] sm:$0xff]
        %v500 = vld [vmem:[%s320 + $0x1d0] sm:$0xff]
        %v501 = vld [vmem:[%s320 + $0x1d8] sm:$0xff]
        %v502 = vld [vmem:[%s320 + $0x1e0] sm:$0xff]
        %v503 = vld [vmem:[%s320 + $0x1e8] sm:$0xff]
        %v504 = vld [vmem:[%s320 + $0x1f0] sm:$0xff]
        %v505 = vld [vmem:[%s320 + $0x1f8] sm:$0xff]
        %v506 = vld [vmem:[%s320 + $0x200] sm:$0xff]
        %v507 = vld [vmem:[%s320 + $0x208] sm:$0xff]
        %v508 = vld [vmem:[%s320 + $0x210] sm:$0xff]
        %v509 = vld [vmem:[%s320 + $0x218] sm:$0xff]
        %v510 = vld [vmem:[%s320 + $0x220] sm:$0xff]
        %v511 = vld [vmem:[%s320 + $0x228] sm:$0xff]
        %v512 = vld [vmem:[%s320 + $0x230] sm:$0xff]
        %v513 = vld [vmem:[%s320 + $0x238] sm:$0xff]
        %v514 = vld [vmem:[%s320 + $0x240] sm:$0xff]
        %v515 = vld [vmem:[%s320 + $0x248] sm:$0xff]
        %v516 = vld [vmem:[%s320 + $0x250] sm:$0xff]
        %v517 = vld [vmem:[%s320 + $0x258] sm:$0xff]
        %v518 = vld [vmem:[%s320 + $0x260] sm:$0xff]
        %v519 = vld [vmem:[%s320 + $0x268] sm:$0xff]
        %v520 = vld [vmem:[%s320 + $0x270] sm:$0xff]
        %v521 = vld [vmem:[%s320 + $0x278] sm:$0xff]
        %v522 = vld [vmem:[%s320 + $0x280] sm:$0xff]
        %v523 = vld [vmem:[%s320 + $0x288] sm:$0xff]
        %v524 = vld [vmem:[%s320 + $0x290] sm:$0xff]
        %v525 = vld [vmem:[%s320 + $0x298] sm:$0xff]
        %v526 = vld [vmem:[%s320 + $0x2a0] sm:$0xff]
        %v527 = vld [vmem:[%s320 + $0x2a8] sm:$0xff]
        %v528 = vld [vmem:[%s320 + $0x2b0] sm:$0xff]
        %v529 = vld [vmem:[%s320 + $0x2b8] sm:$0xff]
        %v530 = vld [vmem:[%s320 + $0x2c0] sm:$0xff]
        %v531 = vld [vmem:[%s320 + $0x2c8] sm:$0xff]
        %v532 = vld [vmem:[%s320 + $0x2d0] sm:$0xff]
        %v533 = vld [vmem:[%s320 + $0x2d8] sm:$0xff]
        %v534 = vld [vmem:[%s320 + $0x2e0] sm:$0xff]
        %v535 = vld [vmem:[%s320 + $0x2e8] sm:$0xff]
        %v536 = vld [vmem:[%s320 + $0x2f0] sm:$0xff]
        %v537 = vld [vmem:[%s320 + $0x2f8] sm:$0xff]
        %v538 = vld [vmem:[%s320 + $0x300] sm:$0xff]
        %v539 = vld [vmem:[%s320 + $0x308] sm:$0xff]
        %v540 = vld [vmem:[%s320 + $0x310] sm:$0xff]
        %v541 = vld [vmem:[%s320 + $0x318] sm:$0xff]
        %v542 = vld [vmem:[%s320 + $0x320] sm:$0xff]
        %v543 = vld [vmem:[%s320 + $0x328] sm:$0xff]
        %v544 = vld [vmem:[%s320 + $0x330] sm:$0xff]
        %v545 = vld [vmem:[%s320 + $0x338] sm:$0xff]
        %v546 = vld [vmem:[%s320 + $0x340] sm:$0xff]
        %v547 = vld [vmem:[%s320 + $0x348] sm:$0xff]
        %v548 = vld [vmem:[%s320 + $0x350] sm:$0xff]
        %v549 = vld [vmem:[%s320 + $0x358] sm:$0xff]
        %v550 = vld [vmem:[%s320 + $0x360] sm:$0xff]
        %v551 = vld [vmem:[%s320 + $0x368] sm:$0xff]
        %v552 = vld [vmem:[%s320 + $0x370] sm:$0xff]
        %v553 = vld [vmem:[%s320 + $0x378] sm:$0xff]
        %v554 = vld [vmem:[%s320 + $0x380] sm:$0xff]
        %v555 = vld [vmem:[%s320 + $0x388] sm:$0xff]
        %v556 = vld [vmem:[%s320 + $0x390] sm:$0xff]
        %v557 = vld [vmem:[%s320 + $0x398] sm:$0xff]
        %v558 = vld [vmem:[%s320 + $0x3a0] sm:$0xff]
        %v559 = vld [vmem:[%s320 + $0x3a8] sm:$0xff]
        %v560 = vld [vmem:[%s320 + $0x3b0] sm:$0xff]
        %v561 = vld [vmem:[%s320 + $0x3b8] sm:$0xff]
        %v562 = vld [vmem:[%s320 + $0x3c0] sm:$0xff]
        %v563 = vld [vmem:[%s320 + $0x3c8] sm:$0xff]
        %v564 = vld [vmem:[%s320 + $0x3d0] sm:$0xff]
        %v565 = vld [vmem:[%s320 + $0x3d8] sm:$0xff]
        %v566 = vld [vmem:[%s320 + $0x3e0] sm:$0xff]
        %v567 = vld [vmem:[%s320 + $0x3e8] sm:$0xff]
        %v568 = vld [vmem:[%s320 + $0x3f0] sm:$0xff]
        %v569 = vld [vmem:[%s320 + $0x3f8] sm:$0xff]
        %v570 = vld [vmem:[%s320 + $0x400] sm:$0xff]
        %v571 = vld [vmem:[%s320 + $0x408] sm:$0xff]
        %v572 = vld [vmem:[%s320 + $0x410] sm:$0xff]
        %v573 = vld [vmem:[%s320 + $0x418] sm:$0xff]
        %v574 = vld [vmem:[%s320 + $0x420] sm:$0xff]
        %v575 = vld [vmem:[%s320 + $0x428] sm:$0xff]
        %v576 = vld [vmem:[%s320 + $0x430] sm:$0xff]
        %v577 = vld [vmem:[%s320 + $0x438] sm:$0xff]
        %v578 = vld [vmem:[%s320 + $0x440] sm:$0xff]
        %v579 = vld [vmem:[%s320 + $0x448] sm:$0xff]
        %v580 = vld [vmem:[%s320 + $0x450] sm:$0xff]
        %v581 = vld [vmem:[%s320 + $0x458] sm:$0xff]
        %v582 = vld [vmem:[%s320 + $0x460] sm:$0xff]
        %v583 = vld [vmem:[%s320 + $0x468] sm:$0xff]
        %v584 = vld [vmem:[%s320 + $0x470] sm:$0xff]
        %v585 = vld [vmem:[%s320 + $0x478] sm:$0xff]
        %v586 = vld [vmem:[%s320 + $0x480] sm:$0xff]
        %v587 = vld [vmem:[%s320 + $0x488] sm:$0xff]
        %v588 = vld [vmem:[%s320 + $0x490] sm:$0xff]
        %v589 = vld [vmem:[%s320 + $0x498] sm:$0xff]
        %v590 = vld [vmem:[%s320 + $0x4a0] sm:$0xff]
        %v591 = vld [vmem:[%s320 + $0x4a8] sm:$0xff]
        %v592 = vld [vmem:[%s320 + $0x4b0] sm:$0xff]
        %v593 = vld [vmem:[%s320 + $0x4b8] sm:$0xff]
        %v594 = vld [vmem:[%s320 + $0x4c0] sm:$0xff]
        %v595 = vld [vmem:[%s320 + $0x4c8] sm:$0xff]
        %v596 = vld [vmem:[%s320 + $0x4d0] sm:$0xff]
        %v597 = vld [vmem:[%s320 + $0x4d8] sm:$0xff]
        %v598 = vld [vmem:[%s320 + $0x4e0] sm:$0xff]
        %v599 = vld [vmem:[%s320 + $0x4e8] sm:$0xff]
        %v600 = vld [vmem:[%s320 + $0x4f0] sm:$0xff]
        %v601 = vld [vmem:[%s320 + $0x4f8] sm:$0xff]
        %v602 = vld [vmem:[%s320 + $0x500] sm:$0xff]
        %v603 = vld [vmem:[%s320 + $0x508] sm:$0xff]
        %v604 = vld [vmem:[%s320 + $0x510] sm:$0xff]
        %v605 = vld [vmem:[%s320 + $0x518] sm:$0xff]
        %v606 = vld [vmem:[%s320 + $0x520] sm:$0xff]
        %v607 = vld [vmem:[%s320 + $0x528] sm:$0xff]
        %v608 = vld [vmem:[%s320 + $0x530] sm:$0xff]
        %v609 = vld [vmem:[%s320 + $0x538] sm:$0xff]
        %v610 = vld [vmem:[%s320 + $0x540] sm:$0xff]
        %v611 = vld [vmem:[%s320 + $0x548] sm:$0xff]
        %v612 = vld [vmem:[%s320 + $0x550] sm:$0xff]
        %v613 = vld [vmem:[%s320 + $0x558] sm:$0xff]
        %v614 = vld [vmem:[%s320 + $0x560] sm:$0xff]
        %v615 = vld [vmem:[%s320 + $0x568] sm:$0xff]
        %v616 = vld [vmem:[%s320 + $0x570] sm:$0xff]
        %v617 = vld [vmem:[%s320 + $0x578] sm:$0xff]
        %v618 = vld [vmem:[%s320 + $0x580] sm:$0xff]
        %v619 = vld [vmem:[%s320 + $0x588] sm:$0xff]
        %v620 = vld [vmem:[%s320 + $0x590] sm:$0xff]
        %v621 = vld [vmem:[%s320 + $0x598] sm:$0xff]
        %v622 = vld [vmem:[%s320 + $0x5a0] sm:$0xff]
        %v623 = vld [vmem:[%s320 + $0x5a8] sm:$0xff]
        %v624 = vld [vmem:[%s320 + $0x5b0] sm:$0xff]
        %v625 = vld [vmem:[%s320 + $0x5b8] sm:$0xff]
        %v626 = vld [vmem:[%s320 + $0x5c0] sm:$0xff]
        %v627 = vld [vmem:[%s320 + $0x5c8] sm:$0xff]
        %v628 = vld [vmem:[%s320 + $0x5d0] sm:$0xff]
        %v629 = vld [vmem:[%s320 + $0x5d8] sm:$0xff]
        %v630 = vld [vmem:[%s320 + $0x5e0] sm:$0xff]
        %v631 = vld [vmem:[%s320 + $0x5e8] sm:$0xff]
        %v632 = vld [vmem:[%s320 + $0x5f0] sm:$0xff]
        %v633 = vld [vmem:[%s320 + $0x5f8] sm:$0xff]
        %v634 = vld [vmem:[%s320 + $0x600] sm:$0xff]
        %v635 = vld [vmem:[%s320 + $0x608] sm:$0xff]
        %v636 = vld [vmem:[%s320 + $0x610] sm:$0xff]
        %v637 = vld [vmem:[%s320 + $0x618] sm:$0xff]
        %v638 = vld [vmem:[%s320 + $0x620] sm:$0xff]
        %v639 = vld [vmem:[%s320 + $0x628] sm:$0xff]
        %v640 = vld [vmem:[%s320 + $0x630] sm:$0xff]
        %v641 = vld [vmem:[%s320 + $0x638] sm:$0xff]
        %v642 = vld [vmem:[%s320 + $0x640] sm:$0xff]
        %v643 = vld [vmem:[%s320 + $0x648] sm:$0xff]
        %v644 = vld [vmem:[%s320 + $0x650] sm:$0xff]
        %v645 = vld [vmem:[%s320 + $0x658] sm:$0xff]
        %v646 = vld [vmem:[%s320 + $0x660] sm:$0xff]
        %v647 = vld [vmem:[%s320 + $0x668] sm:$0xff]
        %v648 = vld [vmem:[%s320 + $0x670] sm:$0xff]
        %v649 = vld [vmem:[%s320 + $0x678] sm:$0xff]
        %v650 = vld [vmem:[%s320 + $0x680] sm:$0xff]
        %v651 = vld [vmem:[%s320 + $0x688] sm:$0xff]
        %v652 = vld [vmem:[%s320 + $0x690] sm:$0xff]
        %v653 = vld [vmem:[%s320 + $0x698] sm:$0xff]
        %v654 = vld [vmem:[%s320 + $0x6a0] sm:$0xff]
        %v655 = vld [vmem:[%s320 + $0x6a8] sm:$0xff]
        %v656 = vld [vmem:[%s320 + $0x6b0] sm:$0xff]
        %v657 = vld [vmem:[%s320 + $0x6b8] sm:$0xff]
        %v658 = vld [vmem:[%s320 + $0x6c0] sm:$0xff]
        %v659 = vld [vmem:[%s320 + $0x6c8] sm:$0xff]
        %v660 = vld [vmem:[%s320 + $0x6d0] sm:$0xff]
        %v661 = vld [vmem:[%s320 + $0x6d8] sm:$0xff]
        %v662 = vld [vmem:[%s320 + $0x6e0] sm:$0xff]
        %v663 = vld [vmem:[%s320 + $0x6e8] sm:$0xff]
        %v664 = vld [vmem:[%s320 + $0x6f0] sm:$0xff]
        %v665 = vld [vmem:[%s320 + $0x6f8] sm:$0xff]
        %v666 = vld [vmem:[%s320 + $0x700] sm:$0xff]
        %v667 = vld [vmem:[%s320 + $0x708] sm:$0xff]
        %v668 = vld [vmem:[%s320 + $0x710] sm:$0xff]
        %v669 = vld [vmem:[%s320 + $0x718] sm:$0xff]
        %v670 = vld [vmem:[%s320 + $0x720] sm:$0xff]
        %v671 = vld [vmem:[%s320 + $0x728] sm:$0xff]
        %v672 = vld [vmem:[%s320 + $0x730] sm:$0xff]
        %v673 = vld [vmem:[%s320 + $0x738] sm:$0xff]
        %v674 = vld [vmem:[%s320 + $0x740] sm:$0xff]
        %v675 = vld [vmem:[%s320 + $0x748] sm:$0xff]
        %v676 = vld [vmem:[%s320 + $0x750] sm:$0xff]
        %v677 = vld [vmem:[%s320 + $0x758] sm:$0xff]
        %v678 = vld [vmem:[%s320 + $0x760] sm:$0xff]
        %v679 = vld [vmem:[%s320 + $0x768] sm:$0xff]
        %v680 = vld [vmem:[%s320 + $0x770] sm:$0xff]
        %v681 = vld [vmem:[%s320 + $0x778] sm:$0xff]
        %v682 = vld [vmem:[%s320 + $0x780] sm:$0xff]
        %v683 = vld [vmem:[%s320 + $0x788] sm:$0xff]
        %v684 = vld [vmem:[%s320 + $0x790] sm:$0xff]
        %v685 = vld [vmem:[%s320 + $0x798] sm:$0xff]
        %v686 = vld [vmem:[%s320 + $0x7a0] sm:$0xff]
        %v687 = vld [vmem:[%s320 + $0x7a8] sm:$0xff]
        %v688 = vld [vmem:[%s320 + $0x7b0] sm:$0xff]
        %v689 = vld [vmem:[%s320 + $0x7b8] sm:$0xff]
        %v690 = vld [vmem:[%s320 + $0x7c0] sm:$0xff]
        %v691 = vld [vmem:[%s320 + $0x7c8] sm:$0xff]
        %v692 = vld [vmem:[%s320 + $0x7d0] sm:$0xff]
        %v693 = vld [vmem:[%s320 + $0x7d8] sm:$0xff]
        %v694 = vld [vmem:[%s320 + $0x7e0] sm:$0xff]
        %v695 = vld [vmem:[%s320 + $0x7e8] sm:$0xff]
        %v696 = vld [vmem:[%s320 + $0x7f0] sm:$0xff]
        %v697 = vld [vmem:[%s320 + $0x7f8] sm:$0xff]
        %v698 = vld [vmem:[%s320 + $0x800] sm:$0xff]
        %v699 = vld [vmem:[%s320 + $0x808] sm:$0xff]
        %v700 = vld [vmem:[%s320 + $0x810] sm:$0xff]
        %v701 = vld [vmem:[%s320 + $0x818] sm:$0xff]
        %v702 = vld [vmem:[%s320 + $0x820] sm:$0xff]
        %v703 = vld [vmem:[%s320 + $0x828] sm:$0xff]
        %v704 = vld [vmem:[%s320 + $0x830] sm:$0xff]
        %v705 = vld [vmem:[%s320 + $0x838] sm:$0xff]
        %v706 = vld [vmem:[%s320 + $0x840] sm:$0xff]
        %v707 = vld [vmem:[%s320 + $0x848] sm:$0xff]
        %v708 = vld [vmem:[%s320 + $0x850] sm:$0xff]
        %v709 = vld [vmem:[%s320 + $0x858] sm:$0xff]
        %v710 = vld [vmem:[%s320 + $0x860] sm:$0xff]
        %v711 = vld [vmem:[%s320 + $0x868] sm:$0xff]
        %v712 = vld [vmem:[%s320 + $0x870] sm:$0xff]
        %v713 = vld [vmem:[%s320 + $0x878] sm:$0xff]
        %v714 = vld [vmem:[%s320 + $0x880] sm:$0xff]
        %v715 = vld [vmem:[%s320 + $0x888] sm:$0xff]
        %v716 = vld [vmem:[%s320 + $0x890] sm:$0xff]
        %v717 = vld [vmem:[%s320 + $0x898] sm:$0xff]
        %v718 = vld [vmem:[%s320 + $0x8a0] sm:$0xff]
        %v719 = vld [vmem:[%s320 + $0x8a8] sm:$0xff]
        %v720 = vld [vmem:[%s320 + $0x8b0] sm:$0xff]
        %v721 = vld [vmem:[%s320 + $0x8b8] sm:$0xff]
        %v722 = vld [vmem:[%s320 + $0x8c0] sm:$0xff]
        %v723 = vld [vmem:[%s320 + $0x8c8] sm:$0xff]
        %v724 = vld [vmem:[%s320 + $0x8d0] sm:$0xff]
        %v725 = vld [vmem:[%s320 + $0x8d8] sm:$0xff]
        %v726 = vld [vmem:[%s320 + $0x8e0] sm:$0xff]
        %v727 = vld [vmem:[%s320 + $0x8e8] sm:$0xff]
        %v728 = vld [vmem:[%s320 + $0x8f0] sm:$0xff]
        %v729 = vld [vmem:[%s320 + $0x8f8] sm:$0xff]
        %v730 = vld [vmem:[%s320 + $0x900] sm:$0xff]
        %v731 = vld [vmem:[%s320 + $0x908] sm:$0xff]
        %v732 = vld [vmem:[%s320 + $0x910] sm:$0xff]
        %v733 = vld [vmem:[%s320 + $0x918] sm:$0xff]
        %v734 = vld [vmem:[%s320 + $0x920] sm:$0xff]
        %v735 = vld [vmem:[%s320 + $0x928] sm:$0xff]
        %v736 = vld [vmem:[%s320 + $0x930] sm:$0xff]
        %v737 = vld [vmem:[%s320 + $0x938] sm:$0xff]
        %v738 = vld [vmem:[%s320 + $0x940] sm:$0xff]
        %v739 = vld [vmem:[%s320 + $0x948] sm:$0xff]
        %v740 = vld [vmem:[%s320 + $0x950] sm:$0xff]
        %v741 = vld [vmem:[%s320 + $0x958] sm:$0xff]
        %v742 = vld [vmem:[%s320 + $0x960] sm:$0xff]
        %v743 = vld [vmem:[%s320 + $0x968] sm:$0xff]
        %v744 = vld [vmem:[%s320 + $0x970] sm:$0xff]
        %v745 = vld [vmem:[%s320 + $0x978] sm:$0xff]
        %v746 = vld [vmem:[%s320 + $0x980] sm:$0xff]
        %v747 = vld [vmem:[%s320 + $0x988] sm:$0xff]
        %v748 = vld [vmem:[%s320 + $0x990] sm:$0xff]
        %v749 = vld [vmem:[%s320 + $0x998] sm:$0xff]
        %v750 = vld [vmem:[%s320 + $0x9a0] sm:$0xff]
        %v751 = vld [vmem:[%s320 + $0x9a8] sm:$0xff]
        %v752 = vld [vmem:[%s320 + $0x9b0] sm:$0xff]
        %v753 = vld [vmem:[%s320 + $0x9b8] sm:$0xff]
        %v754 = vld [vmem:[%s320 + $0x9c0] sm:$0xff]
        %v755 = vld [vmem:[%s320 + $0x9c8] sm:$0xff]
        %v756 = vld [vmem:[%s320 + $0x9d0] sm:$0xff]
        %v757 = vld [vmem:[%s320 + $0x9d8] sm:$0xff]
        %v758 = vld [vmem:[%s320 + $0x9e0] sm:$0xff]
        %v759 = vld [vmem:[%s320 + $0x9e8] sm:$0xff]
        %v760 = vld [vmem:[%s320 + $0x9f0] sm:$0xff]
        %v761 = vld [vmem:[%s320 + $0x9f8] sm:$0xff]
        %v762 = vld [vmem:[%s320 + $0xa00] sm:$0xff]
        %v763 = vld [vmem:[%s320 + $0xa08] sm:$0xff]
        %v764 = vld [vmem:[%s320 + $0xa10] sm:$0xff]
        %v765 = vld [vmem:[%s320 + $0xa18] sm:$0xff]
        %v766 = vld [vmem:[%s320 + $0xa20] sm:$0xff]
        %v767 = vld [vmem:[%s320 + $0xa28] sm:$0xff]
        %v768 = vld [vmem:[%s320 + $0xa30] sm:$0xff]
        %v769 = vld [vmem:[%s320 + $0xa38] sm:$0xff]
        %v770 = vld [vmem:[%s320 + $0xa40] sm:$0xff]
        %v771 = vld [vmem:[%s320 + $0xa48] sm:$0xff]
        %v772 = vld [vmem:[%s320 + $0xa50] sm:$0xff]
        %v773 = vld [vmem:[%s320 + $0xa58] sm:$0xff]
        %v774 = vld [vmem:[%s320 + $0xa60] sm:$0xff]
        %v775 = vld [vmem:[%s320 + $0xa68] sm:$0xff]
        %v776 = vld [vmem:[%s320 + $0xa70] sm:$0xff]
        %v777 = vld [vmem:[%s320 + $0xa78] sm:$0xff]
        %v778 = vld [vmem:[%s320 + $0xa80] sm:$0xff]
        %v779 = vld [vmem:[%s320 + $0xa88] sm:$0xff]
        %v780 = vld [vmem:[%s320 + $0xa90] sm:$0xff]
        %v781 = vld [vmem:[%s320 + $0xa98] sm:$0xff]
        %v782 = vld [vmem:[%s320 + $0xaa0] sm:$0xff]
        %v783 = vld [vmem:[%s320 + $0xaa8] sm:$0xff]
        %v784 = vld [vmem:[%s320 + $0xab0] sm:$0xff]
        %v785 = vld [vmem:[%s320 + $0xab8] sm:$0xff]
        %v786 = vld [vmem:[%s320 + $0xac0] sm:$0xff]
        %v787 = vld [vmem:[%s320 + $0xac8] sm:$0xff]
        %v788 = vld [vmem:[%s320 + $0xad0] sm:$0xff]
        %v789 = vld [vmem:[%s320 + $0xad8] sm:$0xff]
        %v790 = vld [vmem:[%s320 + $0xae0] sm:$0xff]
        %v791 = vld [vmem:[%s320 + $0xae8] sm:$0xff]
        %v792 = vld [vmem:[%s320 + $0xaf0] sm:$0xff]
        %v793 = vld [vmem:[%s320 + $0xaf8] sm:$0xff]
        %v794 = vld [vmem:[%s320 + $0xb00] sm:$0xff]
        %v795 = vld [vmem:[%s320 + $0xb08] sm:$0xff]
        %v796 = vld [vmem:[%s320 + $0xb10] sm:$0xff]
        %v797 = vld [vmem:[%s320 + $0xb18] sm:$0xff]
        %v798 = vld [vmem:[%s320 + $0xb20] sm:$0xff]
        %v799 = vld [vmem:[%s320 + $0xb28] sm:$0xff]
        %v800 = vld [vmem:[%s320 + $0xb30] sm:$0xff]
        %v801 = vld [vmem:[%s320 + $0xb38] sm:$0xff]
        %v802 = vld [vmem:[%s320 + $0xb40] sm:$0xff]
        %v803 = vld [vmem:[%s320 + $0xb48] sm:$0xff]
        %v804 = vld [vmem:[%s320 + $0xb50] sm:$0xff]
        %v805 = vld [vmem:[%s320 + $0xb58] sm:$0xff]
        %v806 = vld [vmem:[%s320 + $0xb60] sm:$0xff]
        %v807 = vld [vmem:[%s320 + $0xb68] sm:$0xff]
        %v808 = vld [vmem:[%s320 + $0xb70] sm:$0xff]
        %v809 = vld [vmem:[%s320 + $0xb78] sm:$0xff]
        %v810 = vld [vmem:[%s320 + $0xb80] sm:$0xff]
        %v811 = vld [vmem:[%s320 + $0xb88] sm:$0xff]
        %v812 = vld [vmem:[%s320 + $0xb90] sm:$0xff]
        %v813 = vld [vmem:[%s320 + $0xb98] sm:$0xff]
        %v814 = vld [vmem:[%s320 + $0xba0] sm:$0xff]
        %v815 = vld [vmem:[%s320 + $0xba8] sm:$0xff]
        %v816 = vld [vmem:[%s320 + $0xbb0] sm:$0xff]
        %v817 = vld [vmem:[%s320 + $0xbb8] sm:$0xff]
        %v818 = vld [vmem:[%s320 + $0xbc0] sm:$0xff]
        %v819 = vld [vmem:[%s320 + $0xbc8] sm:$0xff]
        %v820 = vld [vmem:[%s320 + $0xbd0] sm:$0xff]
        %v821 = vld [vmem:[%s320 + $0xbd8] sm:$0xff]
        %v822 = vld [vmem:[%s320 + $0xbe0] sm:$0xff]
        %v823 = vld [vmem:[%s320 + $0xbe8] sm:$0xff]
        %v824 = vld [vmem:[%s320 + $0xbf0] sm:$0xff]
        %v825 = vld [vmem:[%s320 + $0xbf8] sm:$0xff]
        %v826 = vld [vmem:[%s320 + $0xc00] sm:$0xff]
        %v827 = vld [vmem:[%s320 + $0xc08] sm:$0xff]
        %v828 = vld [vmem:[%s320 + $0xc10] sm:$0xff]
        %v829 = vld [vmem:[%s320 + $0xc18] sm:$0xff]
        %v830 = vld [vmem:[%s320 + $0xc20] sm:$0xff]
        %v831 = vld [vmem:[%s320 + $0xc28] sm:$0xff]
        %v832 = vld [vmem:[%s320 + $0xc30] sm:$0xff]
        %v833 = vld [vmem:[%s320 + $0xc38] sm:$0xff]
        %v834 = vld [vmem:[%s320 + $0xc40] sm:$0xff]
        %v835 = vld [vmem:[%s320 + $0xc48] sm:$0xff]
        %v836 = vld [vmem:[%s320 + $0xc50] sm:$0xff]
        %v837 = vld [vmem:[%s320 + $0xc58] sm:$0xff]
        %v838 = vld [vmem:[%s320 + $0xc60] sm:$0xff]
        %v839 = vld [vmem:[%s320 + $0xc68] sm:$0xff]
        %v840 = vld [vmem:[%s320 + $0xc70] sm:$0xff]
        %v841 = vld [vmem:[%s320 + $0xc78] sm:$0xff]
        %v842 = vld [vmem:[%s320 + $0xc80] sm:$0xff]
        %v843 = vld [vmem:[%s320 + $0xc88] sm:$0xff]
        %v844 = vld [vmem:[%s320 + $0xc90] sm:$0xff]
        %v845 = vld [vmem:[%s320 + $0xc98] sm:$0xff]
        %v846 = vld [vmem:[%s320 + $0xca0] sm:$0xff]
        %v847 = vld [vmem:[%s320 + $0xca8] sm:$0xff]
        %v848 = vld [vmem:[%s320 + $0xcb0] sm:$0xff]
        %v849 = vld [vmem:[%s320 + $0xcb8] sm:$0xff]
        %v850 = vld [vmem:[%s320 + $0xcc0] sm:$0xff]
        %v851 = vld [vmem:[%s320 + $0xcc8] sm:$0xff]
        %v852 = vld [vmem:[%s320 + $0xcd0] sm:$0xff]
        %v853 = vld [vmem:[%s320 + $0xcd8] sm:$0xff]
        %v854 = vld [vmem:[%s320 + $0xce0] sm:$0xff]
        %v855 = vld [vmem:[%s320 + $0xce8] sm:$0xff]
        %v856 = vld [vmem:[%s320 + $0xcf0] sm:$0xff]
        %v857 = vld [vmem:[%s320 + $0xcf8] sm:$0xff]
        %v858 = vld [vmem:[%s320 + $0xd00] sm:$0xff]
        %v859 = vld [vmem:[%s320 + $0xd08] sm:$0xff]
        %v860 = vld [vmem:[%s320 + $0xd10] sm:$0xff]
        %v861 = vld [vmem:[%s320 + $0xd18] sm:$0xff]
        %v862 = vld [vmem:[%s320 + $0xd20] sm:$0xff]
        %v863 = vld [vmem:[%s320 + $0xd28] sm:$0xff]
        %v864 = vld [vmem:[%s320 + $0xd30] sm:$0xff]
        %v865 = vld [vmem:[%s320 + $0xd38] sm:$0xff]
        %v866 = vld [vmem:[%s320 + $0xd40] sm:$0xff]
        %v867 = vld [vmem:[%s320 + $0xd48] sm:$0xff]
        %v868 = vld [vmem:[%s320 + $0xd50] sm:$0xff]
        %v869 = vld [vmem:[%s320 + $0xd58] sm:$0xff]
        %v870 = vld [vmem:[%s320 + $0xd60] sm:$0xff]
        %v871 = vld [vmem:[%s320 + $0xd68] sm:$0xff]
        %v872 = vld [vmem:[%s320 + $0xd70] sm:$0xff]
        %v873 = vld [vmem:[%s320 + $0xd78] sm:$0xff]
        %v874 = vld [vmem:[%s320 + $0xd80] sm:$0xff]
        %v875 = vld [vmem:[%s320 + $0xd88] sm:$0xff]
        %v876 = vld [vmem:[%s320 + $0xd90] sm:$0xff]
        %v877 = vld [vmem:[%s320 + $0xd98] sm:$0xff]
        %v878 = vld [vmem:[%s320 + $0xda0] sm:$0xff]
        %v879 = vld [vmem:[%s320 + $0xda8] sm:$0xff]
        %v880 = vld [vmem:[%s320 + $0xdb0] sm:$0xff]
        %v881 = vld [vmem:[%s320 + $0xdb8] sm:$0xff]
        %v882 = vld [vmem:[%s320 + $0xdc0] sm:$0xff]
        %v883 = vld [vmem:[%s320 + $0xdc8] sm:$0xff]
        %v884 = vld [vmem:[%s320 + $0xdd0] sm:$0xff]
        %v885 = vld [vmem:[%s320 + $0xdd8] sm:$0xff]
        %v886 = vld [vmem:[%s320 + $0xde0] sm:$0xff]
        %v887 = vld [vmem:[%s320 + $0xde8] sm:$0xff]
        %v888 = vld [vmem:[%s320 + $0xdf0] sm:$0xff]
        %v889 = vld [vmem:[%s320 + $0xdf8] sm:$0xff]
        %v890 = vld [vmem:[%s320 + $0xe00] sm:$0xff]
        %v891 = vld [vmem:[%s320 + $0xe08] sm:$0xff]
        %v892 = vld [vmem:[%s320 + $0xe10] sm:$0xff]
        %v893 = vld [vmem:[%s320 + $0xe18] sm:$0xff]
        %v894 = vld [vmem:[%s320 + $0xe20] sm:$0xff]
        %v895 = vld [vmem:[%s320 + $0xe28] sm:$0xff]
        %v896 = vld [vmem:[%s320 + $0xe30] sm:$0xff]
        %v897 = vld [vmem:[%s320 + $0xe38] sm:$0xff]
        %v898 = vld [vmem:[%s320 + $0xe40] sm:$0xff]
        %v899 = vld [vmem:[%s320 + $0xe48] sm:$0xff]
        %v900 = vld [vmem:[%s320 + $0xe50] sm:$0xff]
        %v901 = vld [vmem:[%s320 + $0xe58] sm:$0xff]
        %v902 = vld [vmem:[%s320 + $0xe60] sm:$0xff]
        %v903 = vld [vmem:[%s320 + $0xe68] sm:$0xff]
        %v904 = vld [vmem:[%s320 + $0xe70] sm:$0xff]
        %v905 = vld [vmem:[%s320 + $0xe78] sm:$0xff]
        %v906 = vld [vmem:[%s320 + $0xe80] sm:$0xff]
        %v907 = vld [vmem:[%s320 + $0xe88] sm:$0xff]
        %v908 = vld [vmem:[%s320 + $0xe90] sm:$0xff]
        %v909 = vld [vmem:[%s320 + $0xe98] sm:$0xff]
        %v910 = vld [vmem:[%s320 + $0xea0] sm:$0xff]
        %v911 = vld [vmem:[%s320 + $0xea8] sm:$0xff]
        %v912 = vld [vmem:[%s320 + $0xeb0] sm:$0xff]
        %v913 = vld [vmem:[%s320 + $0xeb8] sm:$0xff]
        %v914 = vld [vmem:[%s320 + $0xec0] sm:$0xff]
        %v915 = vld [vmem:[%s320 + $0xec8] sm:$0xff]
        %v916 = vld [vmem:[%s320 + $0xed0] sm:$0xff]
        %v917 = vld [vmem:[%s320 + $0xed8] sm:$0xff]
        %v918 = vld [vmem:[%s320 + $0xee0] sm:$0xff]
        %v919 = vld [vmem:[%s320 + $0xee8] sm:$0xff]
        %v920 = vld [vmem:[%s320 + $0xef0] sm:$0xff]
        %v921 = vld [vmem:[%s320 + $0xef8] sm:$0xff]
        %v922 = vld [vmem:[%s320 + $0xf00] sm:$0xff]
        %v923 = vld [vmem:[%s320 + $0xf08] sm:$0xff]
        %v924 = vld [vmem:[%s320 + $0xf10] sm:$0xff]
        %v925 = vld [vmem:[%s320 + $0xf18] sm:$0xff]
        %v926 = vld [vmem:[%s320 + $0xf20] sm:$0xff]
        %v927 = vld [vmem:[%s320 + $0xf28] sm:$0xff]
        %v928 = vld [vmem:[%s320 + $0xf30] sm:$0xff]
        %v929 = vld [vmem:[%s320 + $0xf38] sm:$0xff]
        %v930 = vld [vmem:[%s320 + $0xf40] sm:$0xff]
        %v931 = vld [vmem:[%s320 + $0xf48] sm:$0xff]
        %v932 = vld [vmem:[%s320 + $0xf50] sm:$0xff]
        %v933 = vld [vmem:[%s320 + $0xf58] sm:$0xff]
        %v934 = vld [vmem:[%s320 + $0xf60] sm:$0xff]
        %v935 = vld [vmem:[%s320 + $0xf68] sm:$0xff]
        %v936 = vld [vmem:[%s320 + $0xf70] sm:$0xff]
        %v937 = vld [vmem:[%s320 + $0xf78] sm:$0xff]
        %v938 = vld [vmem:[%s320 + $0xf80] sm:$0xff]
        %v939 = vld [vmem:[%s320 + $0xf88] sm:$0xff]
        %v940 = vld [vmem:[%s320 + $0xf90] sm:$0xff]
        %v941 = vld [vmem:[%s320 + $0xf98] sm:$0xff]
        %v942 = vld [vmem:[%s320 + $0xfa0] sm:$0xff]
        %v943 = vld [vmem:[%s320 + $0xfa8] sm:$0xff]
        %v944 = vld [vmem:[%s320 + $0xfb0] sm:$0xff]
        %v945 = vld [vmem:[%s320 + $0xfb8] sm:$0xff]
        %v946 = vld [vmem:[%s320 + $0xfc0] sm:$0xff]
        %v947 = vld [vmem:[%s320 + $0xfc8] sm:$0xff]
        %v948 = vld [vmem:[%s320 + $0xfd0] sm:$0xff]
        %v949 = vld [vmem:[%s320 + $0xfd8] sm:$0xff]
        %v950 = vld [vmem:[%s320 + $0xfe0] sm:$0xff]
        %v951 = vld [vmem:[%s320 + $0xfe8] sm:$0xff]
        %v952 = vld [vmem:[%s320 + $0xff0] sm:$0xff]
        %v953 = vld [vmem:[%s320 + $0xff8] sm:$0xff]
        %v954 = vld [vmem:[%s320 + $0x1000] sm:$0xff]
        %v955 = vld [vmem:[%s320 + $0x1008] sm:$0xff]
        %v956 = vld [vmem:[%s320 + $0x1010] sm:$0xff]
        %v957 = vld [vmem:[%s320 + $0x1018] sm:$0xff]
        %v958 = vld [vmem:[%s320 + $0x1020] sm:$0xff]
        %v959 = vld [vmem:[%s320 + $0x1028] sm:$0xff]
        %v960 = vld [vmem:[%s320 + $0x1030] sm:$0xff]
        %v961 = vld [vmem:[%s320 + $0x1038] sm:$0xff]
        %v962 = vld [vmem:[%s320 + $0x1040] sm:$0xff]
        %v963 = vld [vmem:[%s320 + $0x1048] sm:$0xff]
        %v964 = vld [vmem:[%s320 + $0x1050] sm:$0xff]
        %v965 = vld [vmem:[%s320 + $0x1058] sm:$0xff]
        %v966 = vld [vmem:[%s320 + $0x1060] sm:$0xff]
        %v967 = vld [vmem:[%s320 + $0x1068] sm:$0xff]
        %v968 = vld [vmem:[%s320 + $0x1070] sm:$0xff]
        %v969 = vld [vmem:[%s320 + $0x1078] sm:$0xff]
        %v970 = vld [vmem:[%s320 + $0x1080] sm:$0xff]
        %v971 = vld [vmem:[%s320 + $0x1088] sm:$0xff]
        %v972 = vld [vmem:[%s320 + $0x1090] sm:$0xff]
        %v973 = vld [vmem:[%s320 + $0x1098] sm:$0xff]
        %v974 = vld [vmem:[%s320 + $0x10a0] sm:$0xff]
        %v975 = vld [vmem:[%s320 + $0x10a8] sm:$0xff]
        %v976 = vld [vmem:[%s320 + $0x10b0] sm:$0xff]
        %v977 = vld [vmem:[%s320 + $0x10b8] sm:$0xff]
        %v978 = vld [vmem:[%s320 + $0x10c0] sm:$0xff]
        %v979 = vld [vmem:[%s320 + $0x10c8] sm:$0xff]
        %v980 = vld [vmem:[%s320 + $0x10d0] sm:$0xff]
        %v981 = vld [vmem:[%s320 + $0x10d8] sm:$0xff]
        %v982 = vld [vmem:[%s320 + $0x10e0] sm:$0xff]
        %v983 = vld [vmem:[%s320 + $0x10e8] sm:$0xff]
        %v984 = vld [vmem:[%s320 + $0x10f0] sm:$0xff]
        %v985 = vld [vmem:[%s320 + $0x10f8] sm:$0xff]
        %v986 = vld [vmem:[%s320 + $0x1100] sm:$0xff]
        %v987 = vld [vmem:[%s320 + $0x1108] sm:$0xff]
        %v988 = vld [vmem:[%s320 + $0x1110] sm:$0xff]
        %v989 = vld [vmem:[%s320 + $0x1118] sm:$0xff]
        %v990 = vld [vmem:[%s320 + $0x1120] sm:$0xff]
        %v991 = vld [vmem:[%s320 + $0x1128] sm:$0xff]
        %v992 = vld [vmem:[%s320 + $0x1130] sm:$0xff]
        %v993 = vld [vmem:[%s320 + $0x1138] sm:$0xff]
        %v994 = vld [vmem:[%s320 + $0x1140] sm:$0xff]
        %v995 = vld [vmem:[%s320 + $0x1148] sm:$0xff]
        %v996 = vld [vmem:[%s320 + $0x1150] sm:$0xff]
        %v997 = vld [vmem:[%s320 + $0x1158] sm:$0xff]
        %v998 = vld [vmem:[%s320 + $0x1160] sm:$0xff]
        %v999 = vld [vmem:[%s320 + $0x1168] sm:$0xff]
        %v1000 = vld [vmem:[%s320 + $0x1170] sm:$0xff]
        %v1001 = vld [vmem:[%s320 + $0x1178] sm:$0xff]
        %v1002 = vld [vmem:[%s320 + $0x1180] sm:$0xff]
        %v1003 = vld [vmem:[%s320 + $0x1188] sm:$0xff]
        %v1004 = vld [vmem:[%s320 + $0x1190] sm:$0xff]
        %v1005 = vld [vmem:[%s320 + $0x1198] sm:$0xff]
        %v1006 = vld [vmem:[%s320 + $0x11a0] sm:$0xff]
        %v1007 = vld [vmem:[%s320 + $0x11a8] sm:$0xff]
        %v1008 = vld [vmem:[%s320 + $0x11b0] sm:$0xff]
        %v1009 = vld [vmem:[%s320 + $0x11b8] sm:$0xff]
        %v1010 = vld [vmem:[%s320 + $0x11c0] sm:$0xff]
        %v1011 = vld [vmem:[%s320 + $0x11c8] sm:$0xff]
        %v1012 = vld [vmem:[%s320 + $0x11d0] sm:$0xff]
        %v1013 = vld [vmem:[%s320 + $0x11d8] sm:$0xff]
        %v1014 = vld [vmem:[%s320 + $0x11e0] sm:$0xff]
        %v1015 = vld [vmem:[%s320 + $0x11e8] sm:$0xff]
        %v1016 = vld [vmem:[%s320 + $0x11f0] sm:$0xff]
        %v1017 = vld [vmem:[%s320 + $0x11f8] sm:$0xff]
        %v1018 = vld [vmem:[%s320 + $0x1200] sm:$0xff]
        %v1019 = vld [vmem:[%s320 + $0x1208] sm:$0xff]
        %v1020 = vld [vmem:[%s320 + $0x1210] sm:$0xff]
        %v1021 = vld [vmem:[%s320 + $0x1218] sm:$0xff]
        %v1022 = vld [vmem:[%s320 + $0x1220] sm:$0xff]
        %v1023 = vld [vmem:[%s320 + $0x1228] sm:$0xff]
        %v1024 = vld [vmem:[%s320 + $0x1230] sm:$0xff]
        %v1025 = vld [vmem:[%s320 + $0x1238] sm:$0xff]
        %v1026 = vld [vmem:[%s320 + $0x1240] sm:$0xff]
        %v1027 = vld [vmem:[%s320 + $0x1248] sm:$0xff]
        %v1028 = vld [vmem:[%s320 + $0x1250] sm:$0xff]
        %v1029 = vld [vmem:[%s320 + $0x1258] sm:$0xff]
        %v1030 = vld [vmem:[%s320 + $0x1260] sm:$0xff]
        %v1031 = vld [vmem:[%s320 + $0x1268] sm:$0xff]
        %v1032 = vld [vmem:[%s320 + $0x1270] sm:$0xff]
        %v1033 = vld [vmem:[%s320 + $0x1278] sm:$0xff]
        %v1034 = vld [vmem:[%s320 + $0x1280] sm:$0xff]
        %v1035 = vld [vmem:[%s320 + $0x1288] sm:$0xff]
        %v1036 = vld [vmem:[%s320 + $0x1290] sm:$0xff]
        %v1037 = vld [vmem:[%s320 + $0x1298] sm:$0xff]
        %v1038 = vld [vmem:[%s320 + $0x12a0] sm:$0xff]
        %v1039 = vld [vmem:[%s320 + $0x12a8] sm:$0xff]
        %v1040 = vld [vmem:[%s320 + $0x12b0] sm:$0xff]
        %v1041 = vld [vmem:[%s320 + $0x12b8] sm:$0xff]
        %v1042 = vld [vmem:[%s320 + $0x12c0] sm:$0xff]
        %v1043 = vld [vmem:[%s320 + $0x12c8] sm:$0xff]
        %v1044 = vld [vmem:[%s320 + $0x12d0] sm:$0xff]
        %v1045 = vld [vmem:[%s320 + $0x12d8] sm:$0xff]
        %v1046 = vld [vmem:[%s320 + $0x12e0] sm:$0xff]
        %v1047 = vld [vmem:[%s320 + $0x12e8] sm:$0xff]
        %v1048 = vld [vmem:[%s320 + $0x12f0] sm:$0xff]
        %v1049 = vld [vmem:[%s320 + $0x12f8] sm:$0xff]
        %v1050 = vld [vmem:[%s320 + $0x1300] sm:$0xff]
        %v1051 = vld [vmem:[%s320 + $0x1308] sm:$0xff]
        %v1052 = vld [vmem:[%s320 + $0x1310] sm:$0xff]
        %v1053 = vld [vmem:[%s320 + $0x1318] sm:$0xff]
        %v1054 = vld [vmem:[%s320 + $0x1320] sm:$0xff]
        %v1055 = vld [vmem:[%s320 + $0x1328] sm:$0xff]
        %v1056 = vld [vmem:[%s320 + $0x1330] sm:$0xff]
        %v1057 = vld [vmem:[%s320 + $0x1338] sm:$0xff]
        %v1058 = vld [vmem:[%s320 + $0x1340] sm:$0xff]
        %v1059 = vld [vmem:[%s320 + $0x1348] sm:$0xff]
        %v1060 = vld [vmem:[%s320 + $0x1350] sm:$0xff]
        %v1061 = vld [vmem:[%s320 + $0x1358] sm:$0xff]
        %v1062 = vld [vmem:[%s320 + $0x1360] sm:$0xff]
        %v1063 = vld [vmem:[%s320 + $0x1368] sm:$0xff]
        %v1064 = vld [vmem:[%s320 + $0x1370] sm:$0xff]
        %v1065 = vld [vmem:[%s320 + $0x1378] sm:$0xff]
        %v1066 = vld [vmem:[%s320 + $0x1380] sm:$0xff]
        %v1067 = vld [vmem:[%s320 + $0x1388] sm:$0xff]
        %v1068 = vld [vmem:[%s320 + $0x1390] sm:$0xff]
        %v1069 = vld [vmem:[%s320 + $0x1398] sm:$0xff]
        %v1070 = vld [vmem:[%s320 + $0x13a0] sm:$0xff]
        %v1071 = vld [vmem:[%s320 + $0x13a8] sm:$0xff]
        %v1072 = vld [vmem:[%s320 + $0x13b0] sm:$0xff]
        %v1073 = vld [vmem:[%s320 + $0x13b8] sm:$0xff]
        %v1074 = vld [vmem:[%s320 + $0x13c0] sm:$0xff]
        %v1075 = vld [vmem:[%s320 + $0x13c8] sm:$0xff]
        %v1076 = vld [vmem:[%s320 + $0x13d0] sm:$0xff]
        %v1077 = vld [vmem:[%s320 + $0x13d8] sm:$0xff]
        %v1078 = vld [vmem:[%s320 + $0x13e0] sm:$0xff]
        %v1079 = vld [vmem:[%s320 + $0x13e8] sm:$0xff]
        %v1080 = vld [vmem:[%s320 + $0x13f0] sm:$0xff]
        %v1081 = vld [vmem:[%s320 + $0x13f8] sm:$0xff]
        %v1082 = vld [vmem:[%s320 + $0x1400] sm:$0xff]
        %v1083 = vld [vmem:[%s320 + $0x1408] sm:$0xff]
        %v1084 = vld [vmem:[%s320 + $0x1410] sm:$0xff]
        %v1085 = vld [vmem:[%s320 + $0x1418] sm:$0xff]
        %v1086 = vld [vmem:[%s320 + $0x1420] sm:$0xff]
        %v1087 = vld [vmem:[%s320 + $0x1428] sm:$0xff]
        %v1088 = vld [vmem:[%s320 + $0x1430] sm:$0xff]
        %v1089 = vld [vmem:[%s320 + $0x1438] sm:$0xff]
        %v1090 = vld [vmem:[%s320 + $0x1440] sm:$0xff]
        %v1091 = vld [vmem:[%s320 + $0x1448] sm:$0xff]
        %v1092 = vld [vmem:[%s320 + $0x1450] sm:$0xff]
        %v1093 = vld [vmem:[%s320 + $0x1458] sm:$0xff]
        %v1094 = vld [vmem:[%s320 + $0x1460] sm:$0xff]
        %v1095 = vld [vmem:[%s320 + $0x1468] sm:$0xff]
        %v1096 = vld [vmem:[%s320 + $0x1470] sm:$0xff]
        %v1097 = vld [vmem:[%s320 + $0x1478] sm:$0xff]
        %v1098 = vld [vmem:[%s320 + $0x1480] sm:$0xff]
        %v1099 = vld [vmem:[%s320 + $0x1488] sm:$0xff]
        %v1100 = vld [vmem:[%s320 + $0x1490] sm:$0xff]
        %v1101 = vld [vmem:[%s320 + $0x1498] sm:$0xff]
        %v1102 = vld [vmem:[%s320 + $0x14a0] sm:$0xff]
        %v1103 = vld [vmem:[%s320 + $0x14a8] sm:$0xff]
        %v1104 = vld [vmem:[%s320 + $0x14b0] sm:$0xff]
        %v1105 = vld [vmem:[%s320 + $0x14b8] sm:$0xff]
        %v1106 = vld [vmem:[%s320 + $0x14c0] sm:$0xff]
        %v1107 = vld [vmem:[%s320 + $0x14c8] sm:$0xff]
        %v1108 = vld [vmem:[%s320 + $0x14d0] sm:$0xff]
        %v1109 = vld [vmem:[%s320 + $0x14d8] sm:$0xff]
        %v1110 = vld [vmem:[%s320 + $0x14e0] sm:$0xff]
        %v1111 = vld [vmem:[%s320 + $0x14e8] sm:$0xff]
        %v1112 = vld [vmem:[%s320 + $0x14f0] sm:$0xff]
        %v1113 = vld [vmem:[%s320 + $0x14f8] sm:$0xff]
        %v1114 = vld [vmem:[%s320 + $0x1500] sm:$0xff]
        %v1115 = vld [vmem:[%s320 + $0x1508] sm:$0xff]
        %v1116 = vld [vmem:[%s320 + $0x1510] sm:$0xff]
        %v1117 = vld [vmem:[%s320 + $0x1518] sm:$0xff]
        %v1118 = vld [vmem:[%s320 + $0x1520] sm:$0xff]
        %v1119 = vld [vmem:[%s320 + $0x1528] sm:$0xff]
        %v1120 = vld [vmem:[%s320 + $0x1530] sm:$0xff]
        %v1121 = vld [vmem:[%s320 + $0x1538] sm:$0xff]
        %v1122 = vld [vmem:[%s320 + $0x1540] sm:$0xff]
        %v1123 = vld [vmem:[%s320 + $0x1548] sm:$0xff]
        %v1124 = vld [vmem:[%s320 + $0x1550] sm:$0xff]
        %v1125 = vld [vmem:[%s320 + $0x1558] sm:$0xff]
        %v1126 = vld [vmem:[%s320 + $0x1560] sm:$0xff]
        %v1127 = vld [vmem:[%s320 + $0x1568] sm:$0xff]
        %v1128 = vld [vmem:[%s320 + $0x1570] sm:$0xff]
        %v1129 = vld [vmem:[%s320 + $0x1578] sm:$0xff]
        %v1130 = vld [vmem:[%s320 + $0x1580] sm:$0xff]
        %v1131 = vld [vmem:[%s320 + $0x1588] sm:$0xff]
        %v1132 = vld [vmem:[%s320 + $0x1590] sm:$0xff]
        %v1133 = vld [vmem:[%s320 + $0x1598] sm:$0xff]
        %v1134 = vld [vmem:[%s320 + $0x15a0] sm:$0xff]
        %v1135 = vld [vmem:[%s320 + $0x15a8] sm:$0xff]
        %v1136 = vld [vmem:[%s320 + $0x15b0] sm:$0xff]
        %v1137 = vld [vmem:[%s320 + $0x15b8] sm:$0xff]
        %v1138 = vld [vmem:[%s320 + $0x15c0] sm:$0xff]
        %v1139 = vld [vmem:[%s320 + $0x15c8] sm:$0xff]
        %v1140 = vld [vmem:[%s320 + $0x15d0] sm:$0xff]
        %v1141 = vld [vmem:[%s320 + $0x15d8] sm:$0xff]
        %v1142 = vld [vmem:[%s320 + $0x15e0] sm:$0xff]
        %v1143 = vld [vmem:[%s320 + $0x15e8] sm:$0xff]
        %v1144 = vld [vmem:[%s320 + $0x15f0] sm:$0xff]
        %v1145 = vld [vmem:[%s320 + $0x15f8] sm:$0xff]
        %v1146 = vld [vmem:[%s320 + $0x1600] sm:$0xff]
        %v1147 = vld [vmem:[%s320 + $0x1608] sm:$0xff]
        %v1148 = vld [vmem:[%s320 + $0x1610] sm:$0xff]
        %v1149 = vld [vmem:[%s320 + $0x1618] sm:$0xff]
        %v1150 = vld [vmem:[%s320 + $0x1620] sm:$0xff]
        %v1151 = vld [vmem:[%s320 + $0x1628] sm:$0xff]
        %v1152 = vld [vmem:[%s320 + $0x1630] sm:$0xff]
        %v1153 = vld [vmem:[%s320 + $0x1638] sm:$0xff]
        %v1154 = vld [vmem:[%s320 + $0x1640] sm:$0xff]
        %v1155 = vld [vmem:[%s320 + $0x1648] sm:$0xff]
        %v1156 = vld [vmem:[%s320 + $0x1650] sm:$0xff]
        %v1157 = vld [vmem:[%s320 + $0x1658] sm:$0xff]
        %v1158 = vld [vmem:[%s320 + $0x1660] sm:$0xff]
        %v1159 = vld [vmem:[%s320 + $0x1668] sm:$0xff]
        %v1160 = vld [vmem:[%s320 + $0x1670] sm:$0xff]
        %v1161 = vld [vmem:[%s320 + $0x1678] sm:$0xff]
        %v1162 = vld [vmem:[%s320 + $0x1680] sm:$0xff]
        %v1163 = vld [vmem:[%s320 + $0x1688] sm:$0xff]
        %v1164 = vld [vmem:[%s320 + $0x1690] sm:$0xff]
        %v1165 = vld [vmem:[%s320 + $0x1698] sm:$0xff]
        %v1166 = vld [vmem:[%s320 + $0x16a0] sm:$0xff]
        %v1167 = vld [vmem:[%s320 + $0x16a8] sm:$0xff]
        %v1168 = vld [vmem:[%s320 + $0x16b0] sm:$0xff]
        %v1169 = vld [vmem:[%s320 + $0x16b8] sm:$0xff]
        %v1170 = vld [vmem:[%s320 + $0x16c0] sm:$0xff]
        %v1171 = vld [vmem:[%s320 + $0x16c8] sm:$0xff]
        %v1172 = vld [vmem:[%s320 + $0x16d0] sm:$0xff]
        %v1173 = vld [vmem:[%s320 + $0x16d8] sm:$0xff]
        %v1174 = vld [vmem:[%s320 + $0x16e0] sm:$0xff]
        %v1175 = vld [vmem:[%s320 + $0x16e8] sm:$0xff]
        %v1176 = vld [vmem:[%s320 + $0x16f0] sm:$0xff]
        %v1177 = vld [vmem:[%s320 + $0x16f8] sm:$0xff]
        %v1178 = vld [vmem:[%s320 + $0x1700] sm:$0xff]
        %v1179 = vld [vmem:[%s320 + $0x1708] sm:$0xff]
        %v1180 = vld [vmem:[%s320 + $0x1710] sm:$0xff]
        %v1181 = vld [vmem:[%s320 + $0x1718] sm:$0xff]
        %v1182 = vld [vmem:[%s320 + $0x1720] sm:$0xff]
        %v1183 = vld [vmem:[%s320 + $0x1728] sm:$0xff]
        %v1184 = vld [vmem:[%s320 + $0x1730] sm:$0xff]
        %v1185 = vld [vmem:[%s320 + $0x1738] sm:$0xff]
        %v1186 = vld [vmem:[%s320 + $0x1740] sm:$0xff]
        %v1187 = vld [vmem:[%s320 + $0x1748] sm:$0xff]
        %v1188 = vld [vmem:[%s320 + $0x1750] sm:$0xff]
        %v1189 = vld [vmem:[%s320 + $0x1758] sm:$0xff]
        %v1190 = vld [vmem:[%s320 + $0x1760] sm:$0xff]
        %v1191 = vld [vmem:[%s320 + $0x1768] sm:$0xff]
        %v1192 = vld [vmem:[%s320 + $0x1770] sm:$0xff]
        %v1193 = vld [vmem:[%s320 + $0x1778] sm:$0xff]
        %v1194 = vld [vmem:[%s320 + $0x1780] sm:$0xff]
        %v1195 = vld [vmem:[%s320 + $0x1788] sm:$0xff]
        %v1196 = vld [vmem:[%s320 + $0x1790] sm:$0xff]
        %v1197 = vld [vmem:[%s320 + $0x1798] sm:$0xff]
        %v1198 = vld [vmem:[%s320 + $0x17a0] sm:$0xff]
        %v1199 = vld [vmem:[%s320 + $0x17a8] sm:$0xff]
        %v1200 = vld [vmem:[%s320 + $0x17b0] sm:$0xff]
        %v1201 = vld [vmem:[%s320 + $0x17b8] sm:$0xff]
        %v1202 = vld [vmem:[%s320 + $0x17c0] sm:$0xff]
        %v1203 = vld [vmem:[%s320 + $0x17c8] sm:$0xff]
        %v1204 = vld [vmem:[%s320 + $0x17d0] sm:$0xff]
        %v1205 = vld [vmem:[%s320 + $0x17d8] sm:$0xff]
        %v1206 = vld [vmem:[%s320 + $0x17e0] sm:$0xff]
        %v1207 = vld [vmem:[%s320 + $0x17e8] sm:$0xff]
        %v1208 = vld [vmem:[%s320 + $0x17f0] sm:$0xff]
        %v1209 = vld [vmem:[%s320 + $0x17f8] sm:$0xff]
        %v1210 = vld [vmem:[%s320 + $0x1800] sm:$0xff]
        %v1211 = vld [vmem:[%s320 + $0x1808] sm:$0xff]
        %v1212 = vld [vmem:[%s320 + $0x1810] sm:$0xff]
        %v1213 = vld [vmem:[%s320 + $0x1818] sm:$0xff]
        %v1214 = vld [vmem:[%s320 + $0x1820] sm:$0xff]
        %v1215 = vld [vmem:[%s320 + $0x1828] sm:$0xff]
        %v1216 = vld [vmem:[%s320 + $0x1830] sm:$0xff]
        %v1217 = vld [vmem:[%s320 + $0x1838] sm:$0xff]
        %v1218 = vld [vmem:[%s320 + $0x1840] sm:$0xff]
        %v1219 = vld [vmem:[%s320 + $0x1848] sm:$0xff]
        %v1220 = vld [vmem:[%s320 + $0x1850] sm:$0xff]
        %v1221 = vld [vmem:[%s320 + $0x1858] sm:$0xff]
        %v1222 = vld [vmem:[%s320 + $0x1860] sm:$0xff]
        %v1223 = vld [vmem:[%s320 + $0x1868] sm:$0xff]
        %v1224 = vld [vmem:[%s320 + $0x1870] sm:$0xff]
        %v1225 = vld [vmem:[%s320 + $0x1878] sm:$0xff]
        %v1226 = vld [vmem:[%s320 + $0x1880] sm:$0xff]
        %v1227 = vld [vmem:[%s320 + $0x1888] sm:$0xff]
        %v1228 = vld [vmem:[%s320 + $0x1890] sm:$0xff]
        %v1229 = vld [vmem:[%s320 + $0x1898] sm:$0xff]
        %v1230 = vld [vmem:[%s320 + $0x18a0] sm:$0xff]
        %v1231 = vld [vmem:[%s320 + $0x18a8] sm:$0xff]
        %v1232 = vld [vmem:[%s320 + $0x18b0] sm:$0xff]
        %v1233 = vld [vmem:[%s320 + $0x18b8] sm:$0xff]
        %v1234 = vld [vmem:[%s320 + $0x18c0] sm:$0xff]
        %v1235 = vld [vmem:[%s320 + $0x18c8] sm:$0xff]
        %v1236 = vld [vmem:[%s320 + $0x18d0] sm:$0xff]
        %v1237 = vld [vmem:[%s320 + $0x18d8] sm:$0xff]
        %v1238 = vld [vmem:[%s320 + $0x18e0] sm:$0xff]
        %v1239 = vld [vmem:[%s320 + $0x18e8] sm:$0xff]
        %v1240 = vld [vmem:[%s320 + $0x18f0] sm:$0xff]
        %v1241 = vld [vmem:[%s320 + $0x18f8] sm:$0xff]
        %v1242 = vld [vmem:[%s320 + $0x1900] sm:$0xff]
        %v1243 = vld [vmem:[%s320 + $0x1908] sm:$0xff]
        %v1244 = vld [vmem:[%s320 + $0x1910] sm:$0xff]
        %v1245 = vld [vmem:[%s320 + $0x1918] sm:$0xff]
        %v1246 = vld [vmem:[%s320 + $0x1920] sm:$0xff]
        %v1247 = vld [vmem:[%s320 + $0x1928] sm:$0xff]
        %v1248 = vld [vmem:[%s320 + $0x1930] sm:$0xff]
        %v1249 = vld [vmem:[%s320 + $0x1938] sm:$0xff]
        %v1250 = vld [vmem:[%s320 + $0x1940] sm:$0xff]
        %v1251 = vld [vmem:[%s320 + $0x1948] sm:$0xff]
        %v1252 = vld [vmem:[%s320 + $0x1950] sm:$0xff]
        %v1253 = vld [vmem:[%s320 + $0x1958] sm:$0xff]
        %v1254 = vld [vmem:[%s320 + $0x1960] sm:$0xff]
        %v1255 = vld [vmem:[%s320 + $0x1968] sm:$0xff]
        %v1256 = vld [vmem:[%s320 + $0x1970] sm:$0xff]
        %v1257 = vld [vmem:[%s320 + $0x1978] sm:$0xff]
        %v1258 = vld [vmem:[%s320 + $0x1980] sm:$0xff]
        %v1259 = vld [vmem:[%s320 + $0x1988] sm:$0xff]
        %v1260 = vld [vmem:[%s320 + $0x1990] sm:$0xff]
        %v1261 = vld [vmem:[%s320 + $0x1998] sm:$0xff]
        %v1262 = vld [vmem:[%s320 + $0x19a0] sm:$0xff]
        %v1263 = vld [vmem:[%s320 + $0x19a8] sm:$0xff]
        %v1264 = vld [vmem:[%s320 + $0x19b0] sm:$0xff]
        %v1265 = vld [vmem:[%s320 + $0x19b8] sm:$0xff]
        %v1266 = vld [vmem:[%s320 + $0x19c0] sm:$0xff]
        %v1267 = vld [vmem:[%s320 + $0x19c8] sm:$0xff]
        %v1268 = vld [vmem:[%s320 + $0x19d0] sm:$0xff]
        %v1269 = vld [vmem:[%s320 + $0x19d8] sm:$0xff]
        %v1270 = vld [vmem:[%s320 + $0x19e0] sm:$0xff]
        %v1271 = vld [vmem:[%s320 + $0x19e8] sm:$0xff]
        %v1272 = vld [vmem:[%s320 + $0x19f0] sm:$0xff]
        %v1273 = vld [vmem:[%s320 + $0x19f8] sm:$0xff]
        %v1274 = vld [vmem:[%s320 + $0x1a00] sm:$0xff]
        %v1275 = vld [vmem:[%s320 + $0x1a08] sm:$0xff]
        %v1276 = vld [vmem:[%s320 + $0x1a10] sm:$0xff]
        %v1277 = vld [vmem:[%s320 + $0x1a18] sm:$0xff]
        %v1278 = vld [vmem:[%s320 + $0x1a20] sm:$0xff]
        %v1279 = vld [vmem:[%s320 + $0x1a28] sm:$0xff]
        %v1280 = vld [vmem:[%s320 + $0x1a30] sm:$0xff]
        %v1281 = vld [vmem:[%s320 + $0x1a38] sm:$0xff]
        %v1282 = vld [vmem:[%s320 + $0x1a40] sm:$0xff]
        %v1283 = vld [vmem:[%s320 + $0x1a48] sm:$0xff]
        %v1284 = vld [vmem:[%s320 + $0x1a50] sm:$0xff]
        %v1285 = vld [vmem:[%s320 + $0x1a58] sm:$0xff]
        %v1286 = vld [vmem:[%s320 + $0x1a60] sm:$0xff]
        %v1287 = vld [vmem:[%s320 + $0x1a68] sm:$0xff]
        %v1288 = vld [vmem:[%s320 + $0x1a70] sm:$0xff]
        %v1289 = vld [vmem:[%s320 + $0x1a78] sm:$0xff]
        %v1290 = vld [vmem:[%s320 + $0x1a80] sm:$0xff]
        %v1291 = vld [vmem:[%s320 + $0x1a88] sm:$0xff]
        %v1292 = vld [vmem:[%s320 + $0x1a90] sm:$0xff]
        %v1293 = vld [vmem:[%s320 + $0x1a98] sm:$0xff]
        %v1294 = vld [vmem:[%s320 + $0x1aa0] sm:$0xff]
        %v1295 = vld [vmem:[%s320 + $0x1aa8] sm:$0xff]
        %v1296 = vld [vmem:[%s320 + $0x1ab0] sm:$0xff]
        %v1297 = vld [vmem:[%s320 + $0x1ab8] sm:$0xff]
        %v1298 = vld [vmem:[%s320 + $0x1ac0] sm:$0xff]
        %v1299 = vld [vmem:[%s320 + $0x1ac8] sm:$0xff]
        %v1300 = vld [vmem:[%s320 + $0x1ad0] sm:$0xff]
        %v1301 = vld [vmem:[%s320 + $0x1ad8] sm:$0xff]
        %v1302 = vld [vmem:[%s320 + $0x1ae0] sm:$0xff]
        %v1303 = vld [vmem:[%s320 + $0x1ae8] sm:$0xff]
        %v1304 = vld [vmem:[%s320 + $0x1af0] sm:$0xff]
        %v1305 = vld [vmem:[%s320 + $0x1af8] sm:$0xff]
        %v1306 = vld [vmem:[%s320 + $0x1b00] sm:$0xff]
        %v1307 = vld [vmem:[%s320 + $0x1b08] sm:$0xff]
        %v1308 = vld [vmem:[%s320 + $0x1b10] sm:$0xff]
        %v1309 = vld [vmem:[%s320 + $0x1b18] sm:$0xff]
        %v1310 = vld [vmem:[%s320 + $0x1b20] sm:$0xff]
        %v1311 = vld [vmem:[%s320 + $0x1b28] sm:$0xff]
        %v1312 = vld [vmem:[%s320 + $0x1b30] sm:$0xff]
        %v1313 = vld [vmem:[%s320 + $0x1b38] sm:$0xff]
        %v1314 = vld [vmem:[%s320 + $0x1b40] sm:$0xff]
        %v1315 = vld [vmem:[%s320 + $0x1b48] sm:$0xff]
        %v1316 = vld [vmem:[%s320 + $0x1b50] sm:$0xff]
        %v1317 = vld [vmem:[%s320 + $0x1b58] sm:$0xff]
        %v1318 = vld [vmem:[%s320 + $0x1b60] sm:$0xff]
        %v1319 = vld [vmem:[%s320 + $0x1b68] sm:$0xff]
        %v1320 = vld [vmem:[%s320 + $0x1b70] sm:$0xff]
        %v1321 = vld [vmem:[%s320 + $0x1b78] sm:$0xff]
        %v1322 = vld [vmem:[%s320 + $0x1b80] sm:$0xff]
        %v1323 = vld [vmem:[%s320 + $0x1b88] sm:$0xff]
        %v1324 = vld [vmem:[%s320 + $0x1b90] sm:$0xff]
        %v1325 = vld [vmem:[%s320 + $0x1b98] sm:$0xff]
        %v1326 = vld [vmem:[%s320 + $0x1ba0] sm:$0xff]
        %v1327 = vld [vmem:[%s320 + $0x1ba8] sm:$0xff]
        %v1328 = vld [vmem:[%s320 + $0x1bb0] sm:$0xff]
        %v1329 = vld [vmem:[%s320 + $0x1bb8] sm:$0xff]
        %v1330 = vld [vmem:[%s320 + $0x1bc0] sm:$0xff]
        %v1331 = vld [vmem:[%s320 + $0x1bc8] sm:$0xff]
        %v1332 = vld [vmem:[%s320 + $0x1bd0] sm:$0xff]
        %v1333 = vld [vmem:[%s320 + $0x1bd8] sm:$0xff]
        %v1334 = vld [vmem:[%s320 + $0x1be0] sm:$0xff]
        %v1335 = vld [vmem:[%s320 + $0x1be8] sm:$0xff]
        %v1336 = vld [vmem:[%s320 + $0x1bf0] sm:$0xff]
        %v1337 = vld [vmem:[%s320 + $0x1bf8] sm:$0xff]
        %v1338 = vld [vmem:[%s320 + $0x1c00] sm:$0xff]
        %v1339 = vld [vmem:[%s320 + $0x1c08] sm:$0xff]
        %v1340 = vld [vmem:[%s320 + $0x1c10] sm:$0xff]
        %v1341 = vld [vmem:[%s320 + $0x1c18] sm:$0xff]
        %v1342 = vld [vmem:[%s320 + $0x1c20] sm:$0xff]
        %v1343 = vld [vmem:[%s320 + $0x1c28] sm:$0xff]
        %v1344 = vld [vmem:[%s320 + $0x1c30] sm:$0xff]
        %v1345 = vld [vmem:[%s320 + $0x1c38] sm:$0xff]
        %v1346 = vld [vmem:[%s320 + $0x1c40] sm:$0xff]
        %v1347 = vld [vmem:[%s320 + $0x1c48] sm:$0xff]
        %v1348 = vld [vmem:[%s320 + $0x1c50] sm:$0xff]
        %v1349 = vld [vmem:[%s320 + $0x1c58] sm:$0xff]
        %v1350 = vld [vmem:[%s320 + $0x1c60] sm:$0xff]
        %v1351 = vld [vmem:[%s320 + $0x1c68] sm:$0xff]
        %v1352 = vld [vmem:[%s320 + $0x1c70] sm:$0xff]
        %v1353 = vld [vmem:[%s320 + $0x1c78] sm:$0xff]
        %v1354 = vld [vmem:[%s320 + $0x1c80] sm:$0xff]
        %v1355 = vld [vmem:[%s320 + $0x1c88] sm:$0xff]
        %v1356 = vld [vmem:[%s320 + $0x1c90] sm:$0xff]
        %v1357 = vld [vmem:[%s320 + $0x1c98] sm:$0xff]
        %v1358 = vld [vmem:[%s320 + $0x1ca0] sm:$0xff]
        %v1359 = vld [vmem:[%s320 + $0x1ca8] sm:$0xff]
        %v1360 = vld [vmem:[%s320 + $0x1cb0] sm:$0xff]
        %v1361 = vld [vmem:[%s320 + $0x1cb8] sm:$0xff]
        %v1362 = vld [vmem:[%s320 + $0x1cc0] sm:$0xff]
        %v1363 = vld [vmem:[%s320 + $0x1cc8] sm:$0xff]
        %v1364 = vld [vmem:[%s320 + $0x1cd0] sm:$0xff]
        %v1365 = vld [vmem:[%s320 + $0x1cd8] sm:$0xff]
        %v1366 = vld [vmem:[%s320 + $0x1ce0] sm:$0xff]
        %v1367 = vld [vmem:[%s320 + $0x1ce8] sm:$0xff]
        %v1368 = vld [vmem:[%s320 + $0x1cf0] sm:$0xff]
        %v1369 = vld [vmem:[%s320 + $0x1cf8] sm:$0xff]
        %v1370 = vld [vmem:[%s320 + $0x1d00] sm:$0xff]
        %v1371 = vld [vmem:[%s320 + $0x1d08] sm:$0xff]
        %v1372 = vld [vmem:[%s320 + $0x1d10] sm:$0xff]
        %v1373 = vld [vmem:[%s320 + $0x1d18] sm:$0xff]
        %v1374 = vld [vmem:[%s320 + $0x1d20] sm:$0xff]
        %v1375 = vld [vmem:[%s320 + $0x1d28] sm:$0xff]
        %v1376 = vld [vmem:[%s320 + $0x1d30] sm:$0xff]
        %v1377 = vld [vmem:[%s320 + $0x1d38] sm:$0xff]
        %v1378 = vld [vmem:[%s320 + $0x1d40] sm:$0xff]
        %v1379 = vld [vmem:[%s320 + $0x1d48] sm:$0xff]
        %v1380 = vld [vmem:[%s320 + $0x1d50] sm:$0xff]
        %v1381 = vld [vmem:[%s320 + $0x1d58] sm:$0xff]
        %v1382 = vld [vmem:[%s320 + $0x1d60] sm:$0xff]
        %v1383 = vld [vmem:[%s320 + $0x1d68] sm:$0xff]
        %v1384 = vld [vmem:[%s320 + $0x1d70] sm:$0xff]
        %v1385 = vld [vmem:[%s320 + $0x1d78] sm:$0xff]
        %v1386 = vld [vmem:[%s320 + $0x1d80] sm:$0xff]
        %v1387 = vld [vmem:[%s320 + $0x1d88] sm:$0xff]
        %v1388 = vld [vmem:[%s320 + $0x1d90] sm:$0xff]
        %v1389 = vld [vmem:[%s320 + $0x1d98] sm:$0xff]
        %v1390 = vld [vmem:[%s320 + $0x1da0] sm:$0xff]
        %v1391 = vld [vmem:[%s320 + $0x1da8] sm:$0xff]
        %v1392 = vld [vmem:[%s320 + $0x1db0] sm:$0xff]
        %v1393 = vld [vmem:[%s320 + $0x1db8] sm:$0xff]
        %v1394 = vld [vmem:[%s320 + $0x1dc0] sm:$0xff]
        %v1395 = vld [vmem:[%s320 + $0x1dc8] sm:$0xff]
        %v1396 = vld [vmem:[%s320 + $0x1dd0] sm:$0xff]
        %v1397 = vld [vmem:[%s320 + $0x1dd8] sm:$0xff]
        %v1398 = vld [vmem:[%s320 + $0x1de0] sm:$0xff]
        %v1399 = vld [vmem:[%s320 + $0x1de8] sm:$0xff]
        %v1400 = vld [vmem:[%s320 + $0x1df0] sm:$0xff]
        %v1401 = vld [vmem:[%s320 + $0x1df8] sm:$0xff]
        %v1402 = vld [vmem:[%s320 + $0x1e00] sm:$0xff]
        %v1403 = vld [vmem:[%s320 + $0x1e08] sm:$0xff]
        %v1404 = vld [vmem:[%s320 + $0x1e10] sm:$0xff]
        %v1405 = vld [vmem:[%s320 + $0x1e18] sm:$0xff]
        %v1406 = vld [vmem:[%s320 + $0x1e20] sm:$0xff]
        %v1407 = vld [vmem:[%s320 + $0x1e28] sm:$0xff]
        %v1408 = vld [vmem:[%s320 + $0x1e30] sm:$0xff]
        %v1409 = vld [vmem:[%s320 + $0x1e38] sm:$0xff]
        %v1410 = vld [vmem:[%s320 + $0x1e40] sm:$0xff]
        %v1411 = vld [vmem:[%s320 + $0x1e48] sm:$0xff]
        %v1412 = vld [vmem:[%s320 + $0x1e50] sm:$0xff]
        %v1413 = vld [vmem:[%s320 + $0x1e58] sm:$0xff]
        %v1414 = vld [vmem:[%s320 + $0x1e60] sm:$0xff]
        %v1415 = vld [vmem:[%s320 + $0x1e68] sm:$0xff]
        %v1416 = vld [vmem:[%s320 + $0x1e70] sm:$0xff]
        %v1417 = vld [vmem:[%s320 + $0x1e78] sm:$0xff]
        %v1418 = vld [vmem:[%s320 + $0x1e80] sm:$0xff]
        %v1419 = vld [vmem:[%s320 + $0x1e88] sm:$0xff]
        %v1420 = vld [vmem:[%s320 + $0x1e90] sm:$0xff]
        %v1421 = vld [vmem:[%s320 + $0x1e98] sm:$0xff]
        %v1422 = vld [vmem:[%s320 + $0x1ea0] sm:$0xff]
        %v1423 = vld [vmem:[%s320 + $0x1ea8] sm:$0xff]
        %v1424 = vld [vmem:[%s320 + $0x1eb0] sm:$0xff]
        %v1425 = vld [vmem:[%s320 + $0x1eb8] sm:$0xff]
        %v1426 = vld [vmem:[%s320 + $0x1ec0] sm:$0xff]
        %v1427 = vld [vmem:[%s320 + $0x1ec8] sm:$0xff]
        %v1428 = vld [vmem:[%s320 + $0x1ed0] sm:$0xff]
        %v1429 = vld [vmem:[%s320 + $0x1ed8] sm:$0xff]
        %v1430 = vld [vmem:[%s320 + $0x1ee0] sm:$0xff]
        %v1431 = vld [vmem:[%s320 + $0x1ee8] sm:$0xff]
        %v1432 = vld [vmem:[%s320 + $0x1ef0] sm:$0xff]
        %v1433 = vld [vmem:[%s320 + $0x1ef8] sm:$0xff]
        %v1434 = vld [vmem:[%s320 + $0x1f00] sm:$0xff]
        %v1435 = vld [vmem:[%s320 + $0x1f08] sm:$0xff]
        %v1436 = vld [vmem:[%s320 + $0x1f10] sm:$0xff]
        %v1437 = vld [vmem:[%s320 + $0x1f18] sm:$0xff]
        %v1438 = vld [vmem:[%s320 + $0x1f20] sm:$0xff]
        %v1439 = vld [vmem:[%s320 + $0x1f28] sm:$0xff]
        %v1440 = vld [vmem:[%s320 + $0x1f30] sm:$0xff]
        %v1441 = vld [vmem:[%s320 + $0x1f38] sm:$0xff]
        %v1442 = vld [vmem:[%s320 + $0x1f40] sm:$0xff]
        %v1443 = vld [vmem:[%s320 + $0x1f48] sm:$0xff]
        %v1444 = vld [vmem:[%s320 + $0x1f50] sm:$0xff]
        %v1445 = vld [vmem:[%s320 + $0x1f58] sm:$0xff]
        %v1446 = vld [vmem:[%s320 + $0x1f60] sm:$0xff]
        %v1447 = vld [vmem:[%s320 + $0x1f68] sm:$0xff]
        %v1448 = vld [vmem:[%s320 + $0x1f70] sm:$0xff]
        %v1449 = vld [vmem:[%s320 + $0x1f78] sm:$0xff]
        %v1450 = vld [vmem:[%s320 + $0x1f80] sm:$0xff]
        %v1451 = vld [vmem:[%s320 + $0x1f88] sm:$0xff]
        %v1452 = vld [vmem:[%s320 + $0x1f90] sm:$0xff]
        %v1453 = vld [vmem:[%s320 + $0x1f98] sm:$0xff]
        %v1454 = vld [vmem:[%s320 + $0x1fa0] sm:$0xff]
        %v1455 = vld [vmem:[%s320 + $0x1fa8] sm:$0xff]
        %v1456 = vld [vmem:[%s320 + $0x1fb0] sm:$0xff]
        %v1457 = vld [vmem:[%s320 + $0x1fb8] sm:$0xff]
        %v1458 = vld [vmem:[%s320 + $0x1fc0] sm:$0xff]
        %v1459 = vld [vmem:[%s320 + $0x1fc8] sm:$0xff]
        %v1460 = vld [vmem:[%s320 + $0x1fd0] sm:$0xff]
        %v1461 = vld [vmem:[%s320 + $0x1fd8] sm:$0xff]
        %v1462 = vld [vmem:[%s320 + $0x1fe0] sm:$0xff]
        %v1463 = vld [vmem:[%s320 + $0x1fe8] sm:$0xff]
        %v1464 = vld [vmem:[%s320 + $0x1ff0] sm:$0xff]
        %v1465 = vld [vmem:[%s320 + $0x1ff8] sm:$0xff]
        %v1466 = vld [vmem:[%s320 + $0x2000] sm:$0xff]
        %v1467 = vld [vmem:[%s320 + $0x2008] sm:$0xff]
        %v1468 = vld [vmem:[%s320 + $0x2010] sm:$0xff]
        %v1469 = vld [vmem:[%s320 + $0x2018] sm:$0xff]
        %v1470 = vld [vmem:[%s320 + $0x2020] sm:$0xff]
        %v1471 = vld [vmem:[%s320 + $0x2028] sm:$0xff]
        %v1472 = vld [vmem:[%s320 + $0x2030] sm:$0xff]
        %v1473 = vld [vmem:[%s320 + $0x2038] sm:$0xff]
        %v1474 = vld [vmem:[%s320 + $0x2040] sm:$0xff]
        %v1475 = vld [vmem:[%s320 + $0x2048] sm:$0xff]
        %v1476 = vld [vmem:[%s320 + $0x2050] sm:$0xff]
        %v1477 = vld [vmem:[%s320 + $0x2058] sm:$0xff]
        %v1478 = vld [vmem:[%s320 + $0x2060] sm:$0xff]
        %v1479 = vld [vmem:[%s320 + $0x2068] sm:$0xff]
        %v1480 = vld [vmem:[%s320 + $0x2070] sm:$0xff]
        %v1481 = vld [vmem:[%s320 + $0x2078] sm:$0xff]
        %v1482 = vld [vmem:[%s320 + $0x2080] sm:$0xff]
        %v1483 = vld [vmem:[%s320 + $0x2088] sm:$0xff]
        %v1484 = vld [vmem:[%s320 + $0x2090] sm:$0xff]
        %v1485 = vld [vmem:[%s320 + $0x2098] sm:$0xff]
        %v1486 = vld [vmem:[%s320 + $0x20a0] sm:$0xff]
        %v1487 = vld [vmem:[%s320 + $0x20a8] sm:$0xff]
        %v1488 = vld [vmem:[%s320 + $0x20b0] sm:$0xff]
        %v1489 = vld [vmem:[%s320 + $0x20b8] sm:$0xff]
        %v1490 = vld [vmem:[%s320 + $0x20c0] sm:$0xff]
        %v1491 = vld [vmem:[%s320 + $0x20c8] sm:$0xff]
        %v1492 = vld [vmem:[%s320 + $0x20d0] sm:$0xff]
        %v1493 = vld [vmem:[%s320 + $0x20d8] sm:$0xff]
        %v1494 = vld [vmem:[%s320 + $0x20e0] sm:$0xff]
        %v1495 = vld [vmem:[%s320 + $0x20e8] sm:$0xff]
        %v1496 = vld [vmem:[%s320 + $0x20f0] sm:$0xff]
        %v1497 = vld [vmem:[%s320 + $0x20f8] sm:$0xff]
        %v1498 = vld [vmem:[%s320 + $0x2100] sm:$0xff]
        %v1499 = vld [vmem:[%s320 + $0x2108] sm:$0xff]
        %v1500 = vld [vmem:[%s320 + $0x2110] sm:$0xff]
        %v1501 = vld [vmem:[%s320 + $0x2118] sm:$0xff]
        %v1502 = vld [vmem:[%s320 + $0x2120] sm:$0xff]
        %v1503 = vld [vmem:[%s320 + $0x2128] sm:$0xff]
        %v1504 = vld [vmem:[%s320 + $0x2130] sm:$0xff]
        %v1505 = vld [vmem:[%s320 + $0x2138] sm:$0xff]
        %v1506 = vld [vmem:[%s320 + $0x2140] sm:$0xff]
        %v1507 = vld [vmem:[%s320 + $0x2148] sm:$0xff]
        %v1508 = vld [vmem:[%s320 + $0x2150] sm:$0xff]
        %v1509 = vld [vmem:[%s320 + $0x2158] sm:$0xff]
        %v1510 = vld [vmem:[%s320 + $0x2160] sm:$0xff]
        %v1511 = vld [vmem:[%s320 + $0x2168] sm:$0xff]
        %v1512 = vld [vmem:[%s320 + $0x2170] sm:$0xff]
        %v1513 = vld [vmem:[%s320 + $0x2178] sm:$0xff]
        %v1514 = vld [vmem:[%s320 + $0x2180] sm:$0xff]
        %v1515 = vld [vmem:[%s320 + $0x2188] sm:$0xff]
        %v1516 = vld [vmem:[%s320 + $0x2190] sm:$0xff]
        %v1517 = vld [vmem:[%s320 + $0x2198] sm:$0xff]
        %v1518 = vld [vmem:[%s320 + $0x21a0] sm:$0xff]
        %v1519 = vld [vmem:[%s320 + $0x21a8] sm:$0xff]
        %v1520 = vld [vmem:[%s320 + $0x21b0] sm:$0xff]
        %v1521 = vld [vmem:[%s320 + $0x21b8] sm:$0xff]
        %v1522 = vld [vmem:[%s320 + $0x21c0] sm:$0xff]
        %v1523 = vld [vmem:[%s320 + $0x21c8] sm:$0xff]
        %v1524 = vld [vmem:[%s320 + $0x21d0] sm:$0xff]
        %v1525 = vld [vmem:[%s320 + $0x21d8] sm:$0xff]
        %v1526 = vld [vmem:[%s320 + $0x21e0] sm:$0xff]
        %v1527 = vld [vmem:[%s320 + $0x21e8] sm:$0xff]
        %v1528 = vld [vmem:[%s320 + $0x21f0] sm:$0xff]
        %v1529 = vld [vmem:[%s320 + $0x21f8] sm:$0xff]
        %v1530 = vld [vmem:[%s320 + $0x2200] sm:$0xff]
        %v1531 = vld [vmem:[%s320 + $0x2208] sm:$0xff]
        %v1532 = vld [vmem:[%s320 + $0x2210] sm:$0xff]
        %v1533 = vld [vmem:[%s320 + $0x2218] sm:$0xff]
        %v1534 = vld [vmem:[%s320 + $0x2220] sm:$0xff]
        %v1535 = vld [vmem:[%s320 + $0x2228] sm:$0xff]
        %v1536 = vld [vmem:[%s320 + $0x2230] sm:$0xff]
        %v1537 = vld [vmem:[%s320 + $0x2238] sm:$0xff]
        %v1538 = vld [vmem:[%s320 + $0x2240] sm:$0xff]
        %v1539 = vld [vmem:[%s320 + $0x2248] sm:$0xff]
        %v1540 = vld [vmem:[%s320 + $0x2250] sm:$0xff]
        %v1541 = vld [vmem:[%s320 + $0x2258] sm:$0xff]
        %v1542 = vld [vmem:[%s320 + $0x2260] sm:$0xff]
        %v1543 = vld [vmem:[%s320 + $0x2268] sm:$0xff]
        %v1544 = vld [vmem:[%s320 + $0x2270] sm:$0xff]
        %v1545 = vld [vmem:[%s320 + $0x2278] sm:$0xff]
        %v1546 = vld [vmem:[%s320 + $0x2280] sm:$0xff]
        %v1547 = vld [vmem:[%s320 + $0x2288] sm:$0xff]
        %v1548 = vld [vmem:[%s320 + $0x2290] sm:$0xff]
        %v1549 = vld [vmem:[%s320 + $0x2298] sm:$0xff]
        %v1550 = vld [vmem:[%s320 + $0x22a0] sm:$0xff]
        %v1551 = vld [vmem:[%s320 + $0x22a8] sm:$0xff]
        %v1552 = vld [vmem:[%s320 + $0x22b0] sm:$0xff]
        %v1553 = vld [vmem:[%s320 + $0x22b8] sm:$0xff]
        %v1554 = vld [vmem:[%s320 + $0x22c0] sm:$0xff]
        %v1555 = vld [vmem:[%s320 + $0x22c8] sm:$0xff]
        %v1556 = vld [vmem:[%s320 + $0x22d0] sm:$0xff]
        %v1557 = vld [vmem:[%s320 + $0x22d8] sm:$0xff]
        %v1558 = vld [vmem:[%s320 + $0x22e0] sm:$0xff]
        %v1559 = vld [vmem:[%s320 + $0x22e8] sm:$0xff]
        %v1560 = vld [vmem:[%s320 + $0x22f0] sm:$0xff]
        %v1561 = vld [vmem:[%s320 + $0x22f8] sm:$0xff]
        %v1562 = vld [vmem:[%s320 + $0x2300] sm:$0xff]
        %v1563 = vld [vmem:[%s320 + $0x2308] sm:$0xff]
        %v1564 = vld [vmem:[%s320 + $0x2310] sm:$0xff]
        %v1565 = vld [vmem:[%s320 + $0x2318] sm:$0xff]
        %v1566 = vld [vmem:[%s320 + $0x2320] sm:$0xff]
        %v1567 = vld [vmem:[%s320 + $0x2328] sm:$0xff]
        %v1568 = vld [vmem:[%s320 + $0x2330] sm:$0xff]
        %v1569 = vld [vmem:[%s320 + $0x2338] sm:$0xff]
        %v1570 = vld [vmem:[%s320 + $0x2340] sm:$0xff]
        %v1571 = vld [vmem:[%s320 + $0x2348] sm:$0xff]
        %v1572 = vld [vmem:[%s320 + $0x2350] sm:$0xff]
        %v1573 = vld [vmem:[%s320 + $0x2358] sm:$0xff]
        %v1574 = vld [vmem:[%s320 + $0x2360] sm:$0xff]
        %v1575 = vld [vmem:[%s320 + $0x2368] sm:$0xff]
        %v1576 = vld [vmem:[%s320 + $0x2370] sm:$0xff]
        %v1577 = vld [vmem:[%s320 + $0x2378] sm:$0xff]
        %v1578 = vld [vmem:[%s320 + $0x2380] sm:$0xff]
        %v1579 = vld [vmem:[%s320 + $0x2388] sm:$0xff]
        %v1580 = vld [vmem:[%s320 + $0x2390] sm:$0xff]
        %v1581 = vld [vmem:[%s320 + $0x2398] sm:$0xff]
        %v1582 = vld [vmem:[%s320 + $0x23a0] sm:$0xff]
        %v1583 = vld [vmem:[%s320 + $0x23a8] sm:$0xff]
        %v1584 = vld [vmem:[%s320 + $0x23b0] sm:$0xff]
        %v1585 = vld [vmem:[%s320 + $0x23b8] sm:$0xff]
        %v1586 = vld [vmem:[%s320 + $0x23c0] sm:$0xff]
        %v1587 = vld [vmem:[%s320 + $0x23c8] sm:$0xff]
        %v1588 = vld [vmem:[%s320 + $0x23d0] sm:$0xff]
        %v1589 = vld [vmem:[%s320 + $0x23d8] sm:$0xff]
        %v1590 = vld [vmem:[%s320 + $0x23e0] sm:$0xff]
        %v1591 = vld [vmem:[%s320 + $0x23e8] sm:$0xff]
        %v1592 = vld [vmem:[%s320 + $0x23f0] sm:$0xff]
        %v1593 = vld [vmem:[%s320 + $0x23f8] sm:$0xff]
        %v1594 = vld [vmem:[%s320 + $0x2400] sm:$0xff]
        %v1595 = vld [vmem:[%s320 + $0x2408] sm:$0xff]
        %v1596 = vld [vmem:[%s320 + $0x2410] sm:$0xff]
        %v1597 = vld [vmem:[%s320 + $0x2418] sm:$0xff]
        %v1598 = vld [vmem:[%s320 + $0x2420] sm:$0xff]
        %v1599 = vld [vmem:[%s320 + $0x2428] sm:$0xff]
        %v1600 = vld [vmem:[%s320 + $0x2430] sm:$0xff]
        %v1601 = vld [vmem:[%s320 + $0x2438] sm:$0xff]
        %v1602 = vld [vmem:[%s320 + $0x2440] sm:$0xff]
        %v1603 = vld [vmem:[%s320 + $0x2448] sm:$0xff]
        %v1604 = vld [vmem:[%s320 + $0x2450] sm:$0xff]
        %v1605 = vld [vmem:[%s320 + $0x2458] sm:$0xff]
        %v1606 = vld [vmem:[%s320 + $0x2460] sm:$0xff]
        %v1607 = vld [vmem:[%s320 + $0x2468] sm:$0xff]
        %v1608 = vld [vmem:[%s320 + $0x2470] sm:$0xff]
        %v1609 = vld [vmem:[%s320 + $0x2478] sm:$0xff]
        %v1610 = vld [vmem:[%s320 + $0x2480] sm:$0xff]
        %v1611 = vld [vmem:[%s320 + $0x2488] sm:$0xff]
        %v1612 = vld [vmem:[%s320 + $0x2490] sm:$0xff]
        %v1613 = vld [vmem:[%s320 + $0x2498] sm:$0xff]
        %v1614 = vld [vmem:[%s320 + $0x24a0] sm:$0xff]
        %v1615 = vld [vmem:[%s320 + $0x24a8] sm:$0xff]
        %v1616 = vld [vmem:[%s320 + $0x24b0] sm:$0xff]
        %v1617 = vld [vmem:[%s320 + $0x24b8] sm:$0xff]
        %v1618 = vld [vmem:[%s320 + $0x24c0] sm:$0xff]
        %v1619 = vld [vmem:[%s320 + $0x24c8] sm:$0xff]
        %v1620 = vld [vmem:[%s320 + $0x24d0] sm:$0xff]
        %v1621 = vld [vmem:[%s320 + $0x24d8] sm:$0xff]
        %v1622 = vld [vmem:[%s320 + $0x24e0] sm:$0xff]
        %v1623 = vld [vmem:[%s320 + $0x24e8] sm:$0xff]
        %v1624 = vld [vmem:[%s320 + $0x24f0] sm:$0xff]
        %v1625 = vld [vmem:[%s320 + $0x24f8] sm:$0xff]
        %v1626 = vld [vmem:[%s320 + $0x2500] sm:$0xff]
        %v1627 = vld [vmem:[%s320 + $0x2508] sm:$0xff]
        %v1628 = vld [vmem:[%s320 + $0x2510] sm:$0xff]
        %v1629 = vld [vmem:[%s320 + $0x2518] sm:$0xff]
        %v1630 = vld [vmem:[%s320 + $0x2520] sm:$0xff]
        %v1631 = vld [vmem:[%s320 + $0x2528] sm:$0xff]
        %v1632 = vld [vmem:[%s320 + $0x2530] sm:$0xff]
        %v1633 = vld [vmem:[%s320 + $0x2538] sm:$0xff]
        %v1634 = vld [vmem:[%s320 + $0x2540] sm:$0xff]
        %v1635 = vld [vmem:[%s320 + $0x2548] sm:$0xff]
        %v1636 = vld [vmem:[%s320 + $0x2550] sm:$0xff]
        %v1637 = vld [vmem:[%s320 + $0x2558] sm:$0xff]
        %v1638 = vld [vmem:[%s320 + $0x2560] sm:$0xff]
        %v1639 = vld [vmem:[%s320 + $0x2568] sm:$0xff]
        %v1640 = vld [vmem:[%s320 + $0x2570] sm:$0xff]
        %v1641 = vld [vmem:[%s320 + $0x2578] sm:$0xff]
        %v1642 = vld [vmem:[%s320 + $0x2580] sm:$0xff]
        %v1643 = vld [vmem:[%s320 + $0x2588] sm:$0xff]
        %v1644 = vld [vmem:[%s320 + $0x2590] sm:$0xff]
        %v1645 = vld [vmem:[%s320 + $0x2598] sm:$0xff]
        %v1646 = vld [vmem:[%s320 + $0x25a0] sm:$0xff]
        %v1647 = vld [vmem:[%s320 + $0x25a8] sm:$0xff]
        %v1648 = vld [vmem:[%s320 + $0x25b0] sm:$0xff]
        %v1649 = vld [vmem:[%s320 + $0x25b8] sm:$0xff]
        %v1650 = vld [vmem:[%s320 + $0x25c0] sm:$0xff]
        %v1651 = vld [vmem:[%s320 + $0x25c8] sm:$0xff]
        %v1652 = vld [vmem:[%s320 + $0x25d0] sm:$0xff]
        %v1653 = vld [vmem:[%s320 + $0x25d8] sm:$0xff]
        %v1654 = vld [vmem:[%s320 + $0x25e0] sm:$0xff]
        %v1655 = vld [vmem:[%s320 + $0x25e8] sm:$0xff]
        %v1656 = vld [vmem:[%s320 + $0x25f0] sm:$0xff]
        %v1657 = vld [vmem:[%s320 + $0x25f8] sm:$0xff]
        %1658 = vmatprep.subr.mxu0 %v443
        %1659 = vmatpush1.msra.mxu0 %v442
        %1660 = vmatprep.subr.mxu0 %v462
        %1661 = vmatpush1.msra.mxu0 %v461
        %1662 = vmatprep.subr.mxu0 %v481
        %1663 = vmatpush1.msra.mxu0 %v480
        %1664 = vmatprep.subr.mxu0 %v500
        %1665 = vmatpush1.msra.mxu0 %v499
        %1666 = vmatprep.subr.mxu0 %v519
        %1667 = vmatpush1.msra.mxu0 %v518
        %1668 = vmatprep.subr.mxu0 %v538
        %1669 = vmatpush1.msra.mxu0 %v537
        %1670 = vmatprep.subr.mxu0 %v557
        %1671 = vmatpush1.msra.mxu0 %v556
        %1672 = vmatprep.subr.mxu0 %v576
        %1673 = vmatpush1.msra.mxu0 %v575
        %1674 = vmatprep.subr.mxu0 %v595
        %1675 = vmatpush1.msra.mxu0 %v594
        %1676 = vmatprep.subr.mxu0 %v614
        %1677 = vmatpush1.msra.mxu0 %v613
        %1678 = vmatprep.subr.mxu0 %v633
        %1679 = vmatpush1.msra.mxu0 %v632
        %1680 = vmatprep.subr.mxu0 %v652
        %1681 = vmatpush1.msra.mxu0 %v651
        %1682 = vmatprep.subr.mxu0 %v671
        %1683 = vmatpush1.msra.mxu0 %v670
        %1684 = vmatprep.subr.mxu0 %v690
        %1685 = vmatpush1.msra.mxu0 %v689
        %1686 = vmatprep.subr.mxu0 %v709
        %1687 = vmatpush1.msra.mxu0 %v708
        %1688 = vmatprep.subr.mxu0 %v728
        %1689 = vmatpush1.msra.mxu0 %v727
        %1690 = vmatprep.subr.mxu0 %v747
        %1691 = vmatpush1.msra.mxu0 %v746
        %1692 = vmatprep.subr.mxu0 %v766
        %1693 = vmatpush1.msra.mxu0 %v765
        %1694 = vmatprep.subr.mxu0 %v785
        %1695 = vmatpush1.msra.mxu0 %v784
        %1696 = vmatprep.subr.mxu0 %v804
        %1697 = vmatpush1.msra.mxu0 %v803
        %1698 = vmatprep.subr.mxu0 %v823
        %1699 = vmatpush1.msra.mxu0 %v822
        %1700 = vmatprep.subr.mxu0 %v842
        %1701 = vmatpush1.msra.mxu0 %v841
        %1702 = vmatprep.subr.mxu0 %v861
        %1703 = vmatpush1.msra.mxu0 %v860
        %1704 = vmatprep.subr.mxu0 %v880
        %1705 = vmatpush1.msra.mxu0 %v879
        %1706 = vmatprep.subr.mxu0 %v899
        %1707 = vmatpush1.msra.mxu0 %v898
        %1708 = vmatprep.subr.mxu0 %v918
        %1709 = vmatpush1.msra.mxu0 %v917
        %1710 = vmatprep.subr.mxu0 %v937
        %1711 = vmatpush1.msra.mxu0 %v936
        %1712 = vmatprep.subr.mxu0 %v956
        %1713 = vmatpush1.msra.mxu0 %v955
        %1714 = vmatprep.subr.mxu0 %v975
        %1715 = vmatpush1.msra.mxu0 %v974
        %1716 = vmatprep.subr.mxu0 %v994
        %1717 = vmatpush1.msra.mxu0 %v993
        %1718 = vmatprep.subr.mxu0 %v1013
        %1719 = vmatpush1.msra.mxu0 %v1012
        %1720 = vmatprep.subr.mxu0 %v1032
        %1721 = vmatpush1.msra.mxu0 %v1031
        %1722 = vmatprep.mubr.f32.mxu0 %v439
        %1723 = vmatmul.mubr.f32.gmra.mrb[0].mxu0 %v438
        %v1724 = vpop.f32.mrb[0].mxu0
        %v1725 = vadd.f32 0.0, %v1724
        %v1726 = vpop.f32.mrb[0].mxu0
        %v1727 = vadd.f32 0.0, %v1726
        %1728 = vdwg.mxu0
        %1729 = vmatprep.subr.mxu0 %v1051
        %1730 = vmatpush1.msra.mxu0 %v1050
        %1731 = vmatprep.subr.mxu0 %v1070
        %1732 = vmatpush1.msra.mxu0 %v1069
        %1733 = vmatprep.subr.mxu0 %v1089
        %1734 = vmatpush1.msra.mxu0 %v1088
        %1735 = vmatprep.subr.mxu0 %v1108
        %1736 = vmatpush1.msra.mxu0 %v1107
        %1737 = vmatprep.subr.mxu0 %v1127
        %1738 = vmatpush1.msra.mxu0 %v1126
        %1739 = vmatprep.subr.mxu0 %v1146
        %1740 = vmatpush1.msra.mxu0 %v1145
        %1741 = vmatprep.subr.mxu0 %v1165
        %1742 = vmatpush1.msra.mxu0 %v1164
        %1743 = vmatprep.subr.mxu0 %v1184
        %1744 = vmatpush1.msra.mxu0 %v1183
        %1745 = vmatprep.subr.mxu0 %v1203
        %1746 = vmatpush1.msra.mxu0 %v1202
        %1747 = vmatprep.subr.mxu0 %v1222
        %1748 = vmatpush1.msra.mxu0 %v1221
        %1749 = vmatprep.subr.mxu0 %v1241
        %1750 = vmatpush1.msra.mxu0 %v1240
        %1751 = vmatprep.subr.mxu0 %v1260
        %1752 = vmatpush1.msra.mxu0 %v1259
        %1753 = vmatprep.subr.mxu0 %v1279
        %1754 = vmatpush1.msra.mxu0 %v1278
        %1755 = vmatprep.subr.mxu0 %v1298
        %1756 = vmatpush1.msra.mxu0 %v1297
        %1757 = vmatprep.subr.mxu0 %v1317
        %1758 = vmatpush1.msra.mxu0 %v1316
        %1759 = vmatprep.subr.mxu0 %v1336
        %1760 = vmatpush1.msra.mxu0 %v1335
        %1761 = vmatprep.subr.mxu0 %v1355
        %1762 = vmatpush1.msra.mxu0 %v1354
        %1763 = vmatprep.subr.mxu0 %v1374
        %1764 = vmatpush1.msra.mxu0 %v1373
        %1765 = vmatprep.subr.mxu0 %v1393
        %1766 = vmatpush1.msra.mxu0 %v1392
        %1767 = vmatprep.subr.mxu0 %v1412
        %1768 = vmatpush1.msra.mxu0 %v1411
        %1769 = vmatprep.subr.mxu0 %v1431
        %1770 = vmatpush1.msra.mxu0 %v1430
        %1771 = vmatprep.subr.mxu0 %v1450
        %1772 = vmatpush1.msra.mxu0 %v1449
        %1773 = vmatprep.subr.mxu0 %v1469
        %1774 = vmatpush1.msra.mxu0 %v1468
        %1775 = vmatprep.subr.mxu0 %v1488
        %1776 = vmatpush1.msra.mxu0 %v1487
        %1777 = vmatprep.subr.mxu0 %v1507
        %1778 = vmatpush1.msra.mxu0 %v1506
        %1779 = vmatprep.subr.mxu0 %v1526
        %1780 = vmatpush1.msra.mxu0 %v1525
        %1781 = vmatprep.subr.mxu0 %v1545
        %1782 = vmatpush1.msra.mxu0 %v1544
        %1783 = vmatprep.subr.mxu0 %v1564
        %1784 = vmatpush1.msra.mxu0 %v1563
        %1785 = vmatprep.subr.mxu0 %v1583
        %1786 = vmatpush1.msra.mxu0 %v1582
        %1787 = vmatprep.subr.mxu0 %v1602
        %1788 = vmatpush1.msra.mxu0 %v1601
        %1789 = vmatprep.subr.mxu0 %v1621
        %1790 = vmatpush1.msra.mxu0 %v1620
        %1791 = vmatprep.subr.mxu0 %v1640
        %1792 = vmatpush1.msra.mxu0 %v1639
        %1793 = vmatprep.mubr.f32.mxu0 %v441
        %1794 = vmatmul.mubr.f32.gmra.mrb[0].mxu0 %v440
        %v1795 = vpop.f32.mrb[0].mxu0
        %v1796 = vadd.f32 %v1725, %v1795
        %v1797 = vpop.f32.mrb[0].mxu0
        %v1798 = vadd.f32 %v1727, %v1797
        %1799 = vdwg.mxu0
        %1800 = vmatprep.subr.mxu0 %v445
        %1801 = vmatpush1.msra.mxu0 %v444
        %1802 = vmatprep.subr.mxu0 %v464
        %1803 = vmatpush1.msra.mxu0 %v463
        %1804 = vmatprep.subr.mxu0 %v483
        %1805 = vmatpush1.msra.mxu0 %v482
        %1806 = vmatprep.subr.mxu0 %v502
        %1807 = vmatpush1.msra.mxu0 %v501
        %1808 = vmatprep.subr.mxu0 %v521
        %1809 = vmatpush1.msra.mxu0 %v520
        %1810 = vmatprep.subr.mxu0 %v540
        %1811 = vmatpush1.msra.mxu0 %v539
        %1812 = vmatprep.subr.mxu0 %v559
        %1813 = vmatpush1.msra.mxu0 %v558
        %1814 = vmatprep.subr.mxu0 %v578
        %1815 = vmatpush1.msra.mxu0 %v577
        %1816 = vmatprep.subr.mxu0 %v597
        %1817 = vmatpush1.msra.mxu0 %v596
        %1818 = vmatprep.subr.mxu0 %v616
        %1819 = vmatpush1.msra.mxu0 %v615
        %1820 = vmatprep.subr.mxu0 %v635
        %1821 = vmatpush1.msra.mxu0 %v634
        %1822 = vmatprep.subr.mxu0 %v654
        %1823 = vmatpush1.msra.mxu0 %v653
        %1824 = vmatprep.subr.mxu0 %v673
        %1825 = vmatpush1.msra.mxu0 %v672
        %1826 = vmatprep.subr.mxu0 %v692
        %1827 = vmatpush1.msra.mxu0 %v691
        %1828 = vmatprep.subr.mxu0 %v711
        %1829 = vmatpush1.msra.mxu0 %v710
        %1830 = vmatprep.subr.mxu0 %v730
        %1831 = vmatpush1.msra.mxu0 %v729
        %1832 = vmatprep.subr.mxu0 %v749
        %1833 = vmatpush1.msra.mxu0 %v748
        %1834 = vmatprep.subr.mxu0 %v768
        %1835 = vmatpush1.msra.mxu0 %v767
        %1836 = vmatprep.subr.mxu0 %v787
        %1837 = vmatpush1.msra.mxu0 %v786
        %1838 = vmatprep.subr.mxu0 %v806
        %1839 = vmatpush1.msra.mxu0 %v805
        %1840 = vmatprep.subr.mxu0 %v825
        %1841 = vmatpush1.msra.mxu0 %v824
        %1842 = vmatprep.subr.mxu0 %v844
        %1843 = vmatpush1.msra.mxu0 %v843
        %1844 = vmatprep.subr.mxu0 %v863
        %1845 = vmatpush1.msra.mxu0 %v862
        %1846 = vmatprep.subr.mxu0 %v882
        %1847 = vmatpush1.msra.mxu0 %v881
        %1848 = vmatprep.subr.mxu0 %v901
        %1849 = vmatpush1.msra.mxu0 %v900
        %1850 = vmatprep.subr.mxu0 %v920
        %1851 = vmatpush1.msra.mxu0 %v919
        %1852 = vmatprep.subr.mxu0 %v939
        %1853 = vmatpush1.msra.mxu0 %v938
        %1854 = vmatprep.subr.mxu0 %v958
        %1855 = vmatpush1.msra.mxu0 %v957
        %1856 = vmatprep.subr.mxu0 %v977
        %1857 = vmatpush1.msra.mxu0 %v976
        %1858 = vmatprep.subr.mxu0 %v996
        %1859 = vmatpush1.msra.mxu0 %v995
        %1860 = vmatprep.subr.mxu0 %v1015
        %1861 = vmatpush1.msra.mxu0 %v1014
        %1862 = vmatprep.subr.mxu0 %v1034
        %1863 = vmatpush1.msra.mxu0 %v1033
        %1864 = vmatprep.mubr.f32.mxu0 %v439
        %1865 = vmatmul.mubr.f32.gmra.mrb[0].mxu0 %v438
        %v1866 = vpop.f32.mrb[0].mxu0
        %v1867 = vadd.f32 0.0, %v1866
        %v1868 = vpop.f32.mrb[0].mxu0
        %v1869 = vadd.f32 0.0, %v1868
        %1870 = vdwg.mxu0
        %1871 = vmatprep.subr.mxu0 %v1053
        %1872 = vmatpush1.msra.mxu0 %v1052
        %1873 = vmatprep.subr.mxu0 %v1072
        %1874 = vmatpush1.msra.mxu0 %v1071
        %1875 = vmatprep.subr.mxu0 %v1091
        %1876 = vmatpush1.msra.mxu0 %v1090
        %1877 = vmatprep.subr.mxu0 %v1110
        %1878 = vmatpush1.msra.mxu0 %v1109
        %1879 = vmatprep.subr.mxu0 %v1129
        %1880 = vmatpush1.msra.mxu0 %v1128
        %1881 = vmatprep.subr.mxu0 %v1148
        %1882 = vmatpush1.msra.mxu0 %v1147
        %1883 = vmatprep.subr.mxu0 %v1167
        %1884 = vmatpush1.msra.mxu0 %v1166
        %1885 = vmatprep.subr.mxu0 %v1186
        %1886 = vmatpush1.msra.mxu0 %v1185
        %1887 = vmatprep.subr.mxu0 %v1205
        %1888 = vmatpush1.msra.mxu0 %v1204
        %1889 = vmatprep.subr.mxu0 %v1224
        %1890 = vmatpush1.msra.mxu0 %v1223
        %1891 = vmatprep.subr.mxu0 %v1243
        %1892 = vmatpush1.msra.mxu0 %v1242
        %1893 = vmatprep.subr.mxu0 %v1262
        %1894 = vmatpush1.msra.mxu0 %v1261
        %1895 = vmatprep.subr.mxu0 %v1281
        %1896 = vmatpush1.msra.mxu0 %v1280
        %1897 = vmatprep.subr.mxu0 %v1300
        %1898 = vmatpush1.msra.mxu0 %v1299
        %1899 = vmatprep.subr.mxu0 %v1319
        %1900 = vmatpush1.msra.mxu0 %v1318
        %1901 = vmatprep.subr.mxu0 %v1338
        %1902 = vmatpush1.msra.mxu0 %v1337
        %1903 = vmatprep.subr.mxu0 %v1357
        %1904 = vmatpush1.msra.mxu0 %v1356
        %1905 = vmatprep.subr.mxu0 %v1376
        %1906 = vmatpush1.msra.mxu0 %v1375
        %1907 = vmatprep.subr.mxu0 %v1395
        %1908 = vmatpush1.msra.mxu0 %v1394
        %1909 = vmatprep.subr.mxu0 %v1414
        %1910 = vmatpush1.msra.mxu0 %v1413
        %1911 = vmatprep.subr.mxu0 %v1433
        %1912 = vmatpush1.msra.mxu0 %v1432
        %1913 = vmatprep.subr.mxu0 %v1452
        %1914 = vmatpush1.msra.mxu0 %v1451
        %1915 = vmatprep.subr.mxu0 %v1471
        %1916 = vmatpush1.msra.mxu0 %v1470
        %1917 = vmatprep.subr.mxu0 %v1490
        %1918 = vmatpush1.msra.mxu0 %v1489
        %1919 = vmatprep.subr.mxu0 %v1509
        %1920 = vmatpush1.msra.mxu0 %v1508
        %1921 = vmatprep.subr.mxu0 %v1528
        %1922 = vmatpush1.msra.mxu0 %v1527
        %1923 = vmatprep.subr.mxu0 %v1547
        %1924 = vmatpush1.msra.mxu0 %v1546
        %1925 = vmatprep.subr.mxu0 %v1566
        %1926 = vmatpush1.msra.mxu0 %v1565
        %1927 = vmatprep.subr.mxu0 %v1585
        %1928 = vmatpush1.msra.mxu0 %v1584
        %1929 = vmatprep.subr.mxu0 %v1604
        %1930 = vmatpush1.msra.mxu0 %v1603
        %1931 = vmatprep.subr.mxu0 %v1623
        %1932 = vmatpush1.msra.mxu0 %v1622
        %1933 = vmatprep.subr.mxu0 %v1642
        %1934 = vmatpush1.msra.mxu0 %v1641
        %1935 = vmatprep.mubr.f32.mxu0 %v441
        %1936 = vmatmul.mubr.f32.gmra.mrb[0].mxu0 %v440
        %v1937 = vpop.f32.mrb[0].mxu0
        %v1938 = vadd.f32 %v1867, %v1937
        %v1939 = vpop.f32.mrb[0].mxu0
        %v1940 = vadd.f32 %v1869, %v1939
        %1941 = vdwg.mxu0
        %1942 = vmatprep.subr.mxu0 %v447
        %1943 = vmatpush1.msra.mxu0 %v446
        %1944 = vmatprep.subr.mxu0 %v466
        %1945 = vmatpush1.msra.mxu0 %v465
        %1946 = vmatprep.subr.mxu0 %v485
        %1947 = vmatpush1.msra.mxu0 %v484
        %1948 = vmatprep.subr.mxu0 %v504
        %1949 = vmatpush1.msra.mxu0 %v503
        %1950 = vmatprep.subr.mxu0 %v523
        %1951 = vmatpush1.msra.mxu0 %v522
        %1952 = vmatprep.subr.mxu0 %v542
        %1953 = vmatpush1.msra.mxu0 %v541
        %1954 = vmatprep.subr.mxu0 %v561
        %1955 = vmatpush1.msra.mxu0 %v560
        %1956 = vmatprep.subr.mxu0 %v580
        %1957 = vmatpush1.msra.mxu0 %v579
        %1958 = vmatprep.subr.mxu0 %v599
        %1959 = vmatpush1.msra.mxu0 %v598
        %1960 = vmatprep.subr.mxu0 %v618
        %1961 = vmatpush1.msra.mxu0 %v617
        %1962 = vmatprep.subr.mxu0 %v637
        %1963 = vmatpush1.msra.mxu0 %v636
        %1964 = vmatprep.subr.mxu0 %v656
        %1965 = vmatpush1.msra.mxu0 %v655
        %1966 = vmatprep.subr.mxu0 %v675
        %1967 = vmatpush1.msra.mxu0 %v674
        %1968 = vmatprep.subr.mxu0 %v694
        %1969 = vmatpush1.msra.mxu0 %v693
        %1970 = vmatprep.subr.mxu0 %v713
        %1971 = vmatpush1.msra.mxu0 %v712
        %1972 = vmatprep.subr.mxu0 %v732
        %1973 = vmatpush1.msra.mxu0 %v731
        %1974 = vmatprep.subr.mxu0 %v751
        %1975 = vmatpush1.msra.mxu0 %v750
        %1976 = vmatprep.subr.mxu0 %v770
        %1977 = vmatpush1.msra.mxu0 %v769
        %1978 = vmatprep.subr.mxu0 %v789
        %1979 = vmatpush1.msra.mxu0 %v788
        %1980 = vmatprep.subr.mxu0 %v808
        %1981 = vmatpush1.msra.mxu0 %v807
        %1982 = vmatprep.subr.mxu0 %v827
        %1983 = vmatpush1.msra.mxu0 %v826
        %1984 = vmatprep.subr.mxu0 %v846
        %1985 = vmatpush1.msra.mxu0 %v845
        %1986 = vmatprep.subr.mxu0 %v865
        %1987 = vmatpush1.msra.mxu0 %v864
        %1988 = vmatprep.subr.mxu0 %v884
        %1989 = vmatpush1.msra.mxu0 %v883
        %1990 = vmatprep.subr.mxu0 %v903
        %1991 = vmatpush1.msra.mxu0 %v902
        %1992 = vmatprep.subr.mxu0 %v922
        %1993 = vmatpush1.msra.mxu0 %v921
        %1994 = vmatprep.subr.mxu0 %v941
        %1995 = vmatpush1.msra.mxu0 %v940
        %1996 = vmatprep.subr.mxu0 %v960
        %1997 = vmatpush1.msra.mxu0 %v959
        %1998 = vmatprep.subr.mxu0 %v979
        %1999 = vmatpush1.msra.mxu0 %v978
        %2000 = vmatprep.subr.mxu0 %v998
        %2001 = vmatpush1.msra.mxu0 %v997
        %2002 = vmatprep.subr.mxu0 %v1017
        %2003 = vmatpush1.msra.mxu0 %v1016
        %2004 = vmatprep.subr.mxu0 %v1036
        %2005 = vmatpush1.msra.mxu0 %v1035
        %2006 = vmatprep.mubr.f32.mxu0 %v439
        %2007 = vmatmul.mubr.f32.gmra.mrb[0].mxu0 %v438
        %v2008 = vpop.f32.mrb[0].mxu0
        %v2009 = vadd.f32 0.0, %v2008
        %v2010 = vpop.f32.mrb[0].mxu0
        %v2011 = vadd.f32 0.0, %v2010
        %2012 = vdwg.mxu0
        %2013 = vmatprep.subr.mxu0 %v1055
        %2014 = vmatpush1.msra.mxu0 %v1054
        %2015 = vmatprep.subr.mxu0 %v1074
        %2016 = vmatpush1.msra.mxu0 %v1073
        %2017 = vmatprep.subr.mxu0 %v1093
        %2018 = vmatpush1.msra.mxu0 %v1092
        %2019 = vmatprep.subr.mxu0 %v1112
        %2020 = vmatpush1.msra.mxu0 %v1111
        %2021 = vmatprep.subr.mxu0 %v1131
        %2022 = vmatpush1.msra.mxu0 %v1130
        %2023 = vmatprep.subr.mxu0 %v1150
        %2024 = vmatpush1.msra.mxu0 %v1149
        %2025 = vmatprep.subr.mxu0 %v1169
        %2026 = vmatpush1.msra.mxu0 %v1168
        %2027 = vmatprep.subr.mxu0 %v1188
        %2028 = vmatpush1.msra.mxu0 %v1187
        %2029 = vmatprep.subr.mxu0 %v1207
        %2030 = vmatpush1.msra.mxu0 %v1206
        %2031 = vmatprep.subr.mxu0 %v1226
        %2032 = vmatpush1.msra.mxu0 %v1225
        %2033 = vmatprep.subr.mxu0 %v1245
        %2034 = vmatpush1.msra.mxu0 %v1244
        %2035 = vmatprep.subr.mxu0 %v1264
        %2036 = vmatpush1.msra.mxu0 %v1263
        %2037 = vmatprep.subr.mxu0 %v1283
        %2038 = vmatpush1.msra.mxu0 %v1282
        %2039 = vmatprep.subr.mxu0 %v1302
        %2040 = vmatpush1.msra.mxu0 %v1301
        %2041 = vmatprep.subr.mxu0 %v1321
        %2042 = vmatpush1.msra.mxu0 %v1320
        %2043 = vmatprep.subr.mxu0 %v1340
        %2044 = vmatpush1.msra.mxu0 %v1339
        %2045 = vmatprep.subr.mxu0 %v1359
        %2046 = vmatpush1.msra.mxu0 %v1358
        %2047 = vmatprep.subr.mxu0 %v1378
        %2048 = vmatpush1.msra.mxu0 %v1377
        %2049 = vmatprep.subr.mxu0 %v1397
        %2050 = vmatpush1.msra.mxu0 %v1396
        %2051 = vmatprep.subr.mxu0 %v1416
        %2052 = vmatpush1.msra.mxu0 %v1415
        %2053 = vmatprep.subr.mxu0 %v1435
        %2054 = vmatpush1.msra.mxu0 %v1434
        %2055 = vmatprep.subr.mxu0 %v1454
        %2056 = vmatpush1.msra.mxu0 %v1453
        %2057 = vmatprep.subr.mxu0 %v1473
        %2058 = vmatpush1.msra.mxu0 %v1472
        %2059 = vmatprep.subr.mxu0 %v1492
        %2060 = vmatpush1.msra.mxu0 %v1491
        %2061 = vmatprep.subr.mxu0 %v1511
        %2062 = vmatpush1.msra.mxu0 %v1510
        %2063 = vmatprep.subr.mxu0 %v1530
        %2064 = vmatpush1.msra.mxu0 %v1529
        %2065 = vmatprep.subr.mxu0 %v1549
        %2066 = vmatpush1.msra.mxu0 %v1548
        %2067 = vmatprep.subr.mxu0 %v1568
        %2068 = vmatpush1.msra.mxu0 %v1567
        %2069 = vmatprep.subr.mxu0 %v1587
        %2070 = vmatpush1.msra.mxu0 %v1586
        %2071 = vmatprep.subr.mxu0 %v1606
        %2072 = vmatpush1.msra.mxu0 %v1605
        %2073 = vmatprep.subr.mxu0 %v1625
        %2074 = vmatpush1.msra.mxu0 %v1624
        %2075 = vmatprep.subr.mxu0 %v1644
        %2076 = vmatpush1.msra.mxu0 %v1643
        %2077 = vmatprep.mubr.f32.mxu0 %v441
        %2078 = vmatmul.mubr.f32.gmra.mrb[0].mxu0 %v440
        %v2079 = vpop.f32.mrb[0].mxu0
        %v2080 = vadd.f32 %v2009, %v2079
        %v2081 = vpop.f32.mrb[0].mxu0
        %v2082 = vadd.f32 %v2011, %v2081
        %2083 = vdwg.mxu0
        %2084 = vmatprep.subr.mxu0 %v449
        %2085 = vmatpush1.msra.mxu0 %v448
        %2086 = vmatprep.subr.mxu0 %v468
        %2087 = vmatpush1.msra.mxu0 %v467
        %2088 = vmatprep.subr.mxu0 %v487
        %2089 = vmatpush1.msra.mxu0 %v486
        %2090 = vmatprep.subr.mxu0 %v506
        %2091 = vmatpush1.msra.mxu0 %v505
        %2092 = vmatprep.subr.mxu0 %v525
        %2093 = vmatpush1.msra.mxu0 %v524
        %2094 = vmatprep.subr.mxu0 %v544
        %2095 = vmatpush1.msra.mxu0 %v543
        %2096 = vmatprep.subr.mxu0 %v563
        %2097 = vmatpush1.msra.mxu0 %v562
        %2098 = vmatprep.subr.mxu0 %v582
        %2099 = vmatpush1.msra.mxu0 %v581
        %2100 = vmatprep.subr.mxu0 %v601
        %2101 = vmatpush1.msra.mxu0 %v600
        %2102 = vmatprep.subr.mxu0 %v620
        %2103 = vmatpush1.msra.mxu0 %v619
        %2104 = vmatprep.subr.mxu0 %v639
        %2105 = vmatpush1.msra.mxu0 %v638
        %2106 = vmatprep.subr.mxu0 %v658
        %2107 = vmatpush1.msra.mxu0 %v657
        %2108 = vmatprep.subr.mxu0 %v677
        %2109 = vmatpush1.msra.mxu0 %v676
        %2110 = vmatprep.subr.mxu0 %v696
        %2111 = vmatpush1.msra.mxu0 %v695
        %2112 = vmatprep.subr.mxu0 %v715
        %2113 = vmatpush1.msra.mxu0 %v714
        %2114 = vmatprep.subr.mxu0 %v734
        %2115 = vmatpush1.msra.mxu0 %v733
        %2116 = vmatprep.subr.mxu0 %v753
        %2117 = vmatpush1.msra.mxu0 %v752
        %2118 = vmatprep.subr.mxu0 %v772
        %2119 = vmatpush1.msra.mxu0 %v771
        %2120 = vmatprep.subr.mxu0 %v791
        %2121 = vmatpush1.msra.mxu0 %v790
        %2122 = vmatprep.subr.mxu0 %v810
        %2123 = vmatpush1.msra.mxu0 %v809
        %2124 = vmatprep.subr.mxu0 %v829
        %2125 = vmatpush1.msra.mxu0 %v828
        %2126 = vmatprep.subr.mxu0 %v848
        %2127 = vmatpush1.msra.mxu0 %v847
        %2128 = vmatprep.subr.mxu0 %v867
        %2129 = vmatpush1.msra.mxu0 %v866
        %2130 = vmatprep.subr.mxu0 %v886
        %2131 = vmatpush1.msra.mxu0 %v885
        %2132 = vmatprep.subr.mxu0 %v905
        %2133 = vmatpush1.msra.mxu0 %v904
        %2134 = vmatprep.subr.mxu0 %v924
        %2135 = vmatpush1.msra.mxu0 %v923
        %2136 = vmatprep.subr.mxu0 %v943
        %2137 = vmatpush1.msra.mxu0 %v942
        %2138 = vmatprep.subr.mxu0 %v962
        %2139 = vmatpush1.msra.mxu0 %v961
        %2140 = vmatprep.subr.mxu0 %v981
        %2141 = vmatpush1.msra.mxu0 %v980
        %2142 = vmatprep.subr.mxu0 %v1000
        %2143 = vmatpush1.msra.mxu0 %v999
        %2144 = vmatprep.subr.mxu0 %v1019
        %2145 = vmatpush1.msra.mxu0 %v1018
        %2146 = vmatprep.subr.mxu0 %v1038
        %2147 = vmatpush1.msra.mxu0 %v1037
        %2148 = vmatprep.mubr.f32.mxu0 %v439
        %2149 = vmatmul.mubr.f32.gmra.mrb[0].mxu0 %v438
        %v2150 = vpop.f32.mrb[0].mxu0
        %v2151 = vadd.f32 0.0, %v2150
        %v2152 = vpop.f32.mrb[0].mxu0
        %v2153 = vadd.f32 0.0, %v2152
        %2154 = vdwg.mxu0
        %2155 = vmatprep.subr.mxu0 %v1057
        %2156 = vmatpush1.msra.mxu0 %v1056
        %2157 = vmatprep.subr.mxu0 %v1076
        %2158 = vmatpush1.msra.mxu0 %v1075
        %2159 = vmatprep.subr.mxu0 %v1095
        %2160 = vmatpush1.msra.mxu0 %v1094
        %2161 = vmatprep.subr.mxu0 %v1114
        %2162 = vmatpush1.msra.mxu0 %v1113
        %2163 = vmatprep.subr.mxu0 %v1133
        %2164 = vmatpush1.msra.mxu0 %v1132
        %2165 = vmatprep.subr.mxu0 %v1152
        %2166 = vmatpush1.msra.mxu0 %v1151
        %2167 = vmatprep.subr.mxu0 %v1171
        %2168 = vmatpush1.msra.mxu0 %v1170
        %2169 = vmatprep.subr.mxu0 %v1190
        %2170 = vmatpush1.msra.mxu0 %v1189
        %2171 = vmatprep.subr.mxu0 %v1209
        %2172 = vmatpush1.msra.mxu0 %v1208
        %2173 = vmatprep.subr.mxu0 %v1228
        %2174 = vmatpush1.msra.mxu0 %v1227
        %2175 = vmatprep.subr.mxu0 %v1247
        %2176 = vmatpush1.msra.mxu0 %v1246
        %2177 = vmatprep.subr.mxu0 %v1266
        %2178 = vmatpush1.msra.mxu0 %v1265
        %2179 = vmatprep.subr.mxu0 %v1285
        %2180 = vmatpush1.msra.mxu0 %v1284
        %2181 = vmatprep.subr.mxu0 %v1304
        %2182 = vmatpush1.msra.mxu0 %v1303
        %2183 = vmatprep.subr.mxu0 %v1323
        %2184 = vmatpush1.msra.mxu0 %v1322
        %2185 = vmatprep.subr.mxu0 %v1342
        %2186 = vmatpush1.msra.mxu0 %v1341
        %2187 = vmatprep.subr.mxu0 %v1361
        %2188 = vmatpush1.msra.mxu0 %v1360
        %2189 = vmatprep.subr.mxu0 %v1380
        %2190 = vmatpush1.msra.mxu0 %v1379
        %2191 = vmatprep.subr.mxu0 %v1399
        %2192 = vmatpush1.msra.mxu0 %v1398
        %2193 = vmatprep.subr.mxu0 %v1418
        %2194 = vmatpush1.msra.mxu0 %v1417
        %2195 = vmatprep.subr.mxu0 %v1437
        %2196 = vmatpush1.msra.mxu0 %v1436
        %2197 = vmatprep.subr.mxu0 %v1456
        %2198 = vmatpush1.msra.mxu0 %v1455
        %2199 = vmatprep.subr.mxu0 %v1475
        %2200 = vmatpush1.msra.mxu0 %v1474
        %2201 = vmatprep.subr.mxu0 %v1494
        %2202 = vmatpush1.msra.mxu0 %v1493
        %2203 = vmatprep.subr.mxu0 %v1513
        %2204 = vmatpush1.msra.mxu0 %v1512
        %2205 = vmatprep.subr.mxu0 %v1532
        %2206 = vmatpush1.msra.mxu0 %v1531
        %2207 = vmatprep.subr.mxu0 %v1551
        %2208 = vmatpush1.msra.mxu0 %v1550
        %2209 = vmatprep.subr.mxu0 %v1570
        %2210 = vmatpush1.msra.mxu0 %v1569
        %2211 = vmatprep.subr.mxu0 %v1589
        %2212 = vmatpush1.msra.mxu0 %v1588
        %2213 = vmatprep.subr.mxu0 %v1608
        %2214 = vmatpush1.msra.mxu0 %v1607
        %2215 = vmatprep.subr.mxu0 %v1627
        %2216 = vmatpush1.msra.mxu0 %v1626
        %2217 = vmatprep.subr.mxu0 %v1646
        %2218 = vmatpush1.msra.mxu0 %v1645
        %2219 = vmatprep.mubr.f32.mxu0 %v441
        %2220 = vmatmul.mubr.f32.gmra.mrb[0].mxu0 %v440
        %v2221 = vpop.f32.mrb[0].mxu0
        %v2222 = vadd.f32 %v2151, %v2221
        %v2223 = vpop.f32.mrb[0].mxu0
        %v2224 = vadd.f32 %v2153, %v2223
        %2225 = vdwg.mxu0
        %2226 = vmatprep.subr.mxu0 %v451
        %2227 = vmatpush1.msra.mxu0 %v450
        %2228 = vmatprep.subr.mxu0 %v470
        %2229 = vmatpush1.msra.mxu0 %v469
        %2230 = vmatprep.subr.mxu0 %v489
        %2231 = vmatpush1.msra.mxu0 %v488
        %2232 = vmatprep.subr.mxu0 %v508
        %2233 = vmatpush1.msra.mxu0 %v507
        %2234 = vmatprep.subr.mxu0 %v527
        %2235 = vmatpush1.msra.mxu0 %v526
        %2236 = vmatprep.subr.mxu0 %v546
        %2237 = vmatpush1.msra.mxu0 %v545
        %2238 = vmatprep.subr.mxu0 %v565
        %2239 = vmatpush1.msra.mxu0 %v564
        %2240 = vmatprep.subr.mxu0 %v584
        %2241 = vmatpush1.msra.mxu0 %v583
        %2242 = vmatprep.subr.mxu0 %v603
        %2243 = vmatpush1.msra.mxu0 %v602
        %2244 = vmatprep.subr.mxu0 %v622
        %2245 = vmatpush1.msra.mxu0 %v621
        %2246 = vmatprep.subr.mxu0 %v641
        %2247 = vmatpush1.msra.mxu0 %v640
        %2248 = vmatprep.subr.mxu0 %v660
        %2249 = vmatpush1.msra.mxu0 %v659
        %2250 = vmatprep.subr.mxu0 %v679
        %2251 = vmatpush1.msra.mxu0 %v678
        %2252 = vmatprep.subr.mxu0 %v698
        %2253 = vmatpush1.msra.mxu0 %v697
        %2254 = vmatprep.subr.mxu0 %v717
        %2255 = vmatpush1.msra.mxu0 %v716
        %2256 = vmatprep.subr.mxu0 %v736
        %2257 = vmatpush1.msra.mxu0 %v735
        %2258 = vmatprep.subr.mxu0 %v755
        %2259 = vmatpush1.msra.mxu0 %v754
        %2260 = vmatprep.subr.mxu0 %v774
        %2261 = vmatpush1.msra.mxu0 %v773
        %2262 = vmatprep.subr.mxu0 %v793
        %2263 = vmatpush1.msra.mxu0 %v792
        %2264 = vmatprep.subr.mxu0 %v812
        %2265 = vmatpush1.msra.mxu0 %v811
        %2266 = vmatprep.subr.mxu0 %v831
        %2267 = vmatpush1.msra.mxu0 %v830
        %2268 = vmatprep.subr.mxu0 %v850
        %2269 = vmatpush1.msra.mxu0 %v849
        %2270 = vmatprep.subr.mxu0 %v869
        %2271 = vmatpush1.msra.mxu0 %v868
        %2272 = vmatprep.subr.mxu0 %v888
        %2273 = vmatpush1.msra.mxu0 %v887
        %2274 = vmatprep.subr.mxu0 %v907
        %2275 = vmatpush1.msra.mxu0 %v906
        %2276 = vmatprep.subr.mxu0 %v926
        %2277 = vmatpush1.msra.mxu0 %v925
        %2278 = vmatprep.subr.mxu0 %v945
        %2279 = vmatpush1.msra.mxu0 %v944
        %2280 = vmatprep.subr.mxu0 %v964
        %2281 = vmatpush1.msra.mxu0 %v963
        %2282 = vmatprep.subr.mxu0 %v983
        %2283 = vmatpush1.msra.mxu0 %v982
        %2284 = vmatprep.subr.mxu0 %v1002
        %2285 = vmatpush1.msra.mxu0 %v1001
        %2286 = vmatprep.subr.mxu0 %v1021
        %2287 = vmatpush1.msra.mxu0 %v1020
        %2288 = vmatprep.subr.mxu0 %v1040
        %2289 = vmatpush1.msra.mxu0 %v1039
        %2290 = vmatprep.mubr.f32.mxu0 %v439
        %2291 = vmatmul.mubr.f32.gmra.mrb[0].mxu0 %v438
        %v2292 = vpop.f32.mrb[0].mxu0
        %v2293 = vadd.f32 0.0, %v2292
        %v2294 = vpop.f32.mrb[0].mxu0
        %v2295 = vadd.f32 0.0, %v2294
        %2296 = vdwg.mxu0
        %2297 = vmatprep.subr.mxu0 %v1059
        %2298 = vmatpush1.msra.mxu0 %v1058
        %2299 = vmatprep.subr.mxu0 %v1078
        %2300 = vmatpush1.msra.mxu0 %v1077
        %2301 = vmatprep.subr.mxu0 %v1097
        %2302 = vmatpush1.msra.mxu0 %v1096
        %2303 = vmatprep.subr.mxu0 %v1116
        %2304 = vmatpush1.msra.mxu0 %v1115
        %2305 = vmatprep.subr.mxu0 %v1135
        %2306 = vmatpush1.msra.mxu0 %v1134
        %2307 = vmatprep.subr.mxu0 %v1154
        %2308 = vmatpush1.msra.mxu0 %v1153
        %2309 = vmatprep.subr.mxu0 %v1173
        %2310 = vmatpush1.msra.mxu0 %v1172
        %2311 = vmatprep.subr.mxu0 %v1192
        %2312 = vmatpush1.msra.mxu0 %v1191
        %2313 = vmatprep.subr.mxu0 %v1211
        %2314 = vmatpush1.msra.mxu0 %v1210
        %2315 = vmatprep.subr.mxu0 %v1230
        %2316 = vmatpush1.msra.mxu0 %v1229
        %2317 = vmatprep.subr.mxu0 %v1249
        %2318 = vmatpush1.msra.mxu0 %v1248
        %2319 = vmatprep.subr.mxu0 %v1268
        %2320 = vmatpush1.msra.mxu0 %v1267
        %2321 = vmatprep.subr.mxu0 %v1287
        %2322 = vmatpush1.msra.mxu0 %v1286
        %2323 = vmatprep.subr.mxu0 %v1306
        %2324 = vmatpush1.msra.mxu0 %v1305
        %2325 = vmatprep.subr.mxu0 %v1325
        %2326 = vmatpush1.msra.mxu0 %v1324
        %2327 = vmatprep.subr.mxu0 %v1344
        %2328 = vmatpush1.msra.mxu0 %v1343
        %2329 = vmatprep.subr.mxu0 %v1363
        %2330 = vmatpush1.msra.mxu0 %v1362
        %2331 = vmatprep.subr.mxu0 %v1382
        %2332 = vmatpush1.msra.mxu0 %v1381
        %2333 = vmatprep.subr.mxu0 %v1401
        %2334 = vmatpush1.msra.mxu0 %v1400
        %2335 = vmatprep.subr.mxu0 %v1420
        %2336 = vmatpush1.msra.mxu0 %v1419
        %2337 = vmatprep.subr.mxu0 %v1439
        %2338 = vmatpush1.msra.mxu0 %v1438
        %2339 = vmatprep.subr.mxu0 %v1458
        %2340 = vmatpush1.msra.mxu0 %v1457
        %2341 = vmatprep.subr.mxu0 %v1477
        %2342 = vmatpush1.msra.mxu0 %v1476
        %2343 = vmatprep.subr.mxu0 %v1496
        %2344 = vmatpush1.msra.mxu0 %v1495
        %2345 = vmatprep.subr.mxu0 %v1515
        %2346 = vmatpush1.msra.mxu0 %v1514
        %2347 = vmatprep.subr.mxu0 %v1534
        %2348 = vmatpush1.msra.mxu0 %v1533
        %2349 = vmatprep.subr.mxu0 %v1553
        %2350 = vmatpush1.msra.mxu0 %v1552
        %2351 = vmatprep.subr.mxu0 %v1572
        %2352 = vmatpush1.msra.mxu0 %v1571
        %2353 = vmatprep.subr.mxu0 %v1591
        %2354 = vmatpush1.msra.mxu0 %v1590
        %2355 = vmatprep.subr.mxu0 %v1610
        %2356 = vmatpush1.msra.mxu0 %v1609
        %2357 = vmatprep.subr.mxu0 %v1629
        %2358 = vmatpush1.msra.mxu0 %v1628
        %2359 = vmatprep.subr.mxu0 %v1648
        %2360 = vmatpush1.msra.mxu0 %v1647
        %2361 = vmatprep.mubr.f32.mxu0 %v441
        %2362 = vmatmul.mubr.f32.gmra.mrb[0].mxu0 %v440
        %v2363 = vpop.f32.mrb[0].mxu0
        %v2364 = vadd.f32 %v2293, %v2363
        %v2365 = vpop.f32.mrb[0].mxu0
        %v2366 = vadd.f32 %v2295, %v2365
        %2367 = vdwg.mxu0
        %2368 = vmatprep.subr.mxu0 %v453
        %2369 = vmatpush1.msra.mxu0 %v452
        %2370 = vmatprep.subr.mxu0 %v472
        %2371 = vmatpush1.msra.mxu0 %v471
        %2372 = vmatprep.subr.mxu0 %v491
        %2373 = vmatpush1.msra.mxu0 %v490
        %2374 = vmatprep.subr.mxu0 %v510
        %2375 = vmatpush1.msra.mxu0 %v509
        %2376 = vmatprep.subr.mxu0 %v529
        %2377 = vmatpush1.msra.mxu0 %v528
        %2378 = vmatprep.subr.mxu0 %v548
        %2379 = vmatpush1.msra.mxu0 %v547
        %2380 = vmatprep.subr.mxu0 %v567
        %2381 = vmatpush1.msra.mxu0 %v566
        %2382 = vmatprep.subr.mxu0 %v586
        %2383 = vmatpush1.msra.mxu0 %v585
        %2384 = vmatprep.subr.mxu0 %v605
        %2385 = vmatpush1.msra.mxu0 %v604
        %2386 = vmatprep.subr.mxu0 %v624
        %2387 = vmatpush1.msra.mxu0 %v623
        %2388 = vmatprep.subr.mxu0 %v643
        %2389 = vmatpush1.msra.mxu0 %v642
        %2390 = vmatprep.subr.mxu0 %v662
        %2391 = vmatpush1.msra.mxu0 %v661
        %2392 = vmatprep.subr.mxu0 %v681
        %2393 = vmatpush1.msra.mxu0 %v680
        %2394 = vmatprep.subr.mxu0 %v700
        %2395 = vmatpush1.msra.mxu0 %v699
        %2396 = vmatprep.subr.mxu0 %v719
        %2397 = vmatpush1.msra.mxu0 %v718
        %2398 = vmatprep.subr.mxu0 %v738
        %2399 = vmatpush1.msra.mxu0 %v737
        %2400 = vmatprep.subr.mxu0 %v757
        %2401 = vmatpush1.msra.mxu0 %v756
        %2402 = vmatprep.subr.mxu0 %v776
        %2403 = vmatpush1.msra.mxu0 %v775
        %2404 = vmatprep.subr.mxu0 %v795
        %2405 = vmatpush1.msra.mxu0 %v794
        %2406 = vmatprep.subr.mxu0 %v814
        %2407 = vmatpush1.msra.mxu0 %v813
        %2408 = vmatprep.subr.mxu0 %v833
        %2409 = vmatpush1.msra.mxu0 %v832
        %2410 = vmatprep.subr.mxu0 %v852
        %2411 = vmatpush1.msra.mxu0 %v851
        %2412 = vmatprep.subr.mxu0 %v871
        %2413 = vmatpush1.msra.mxu0 %v870
        %2414 = vmatprep.subr.mxu0 %v890
        %2415 = vmatpush1.msra.mxu0 %v889
        %2416 = vmatprep.subr.mxu0 %v909
        %2417 = vmatpush1.msra.mxu0 %v908
        %2418 = vmatprep.subr.mxu0 %v928
        %2419 = vmatpush1.msra.mxu0 %v927
        %2420 = vmatprep.subr.mxu0 %v947
        %2421 = vmatpush1.msra.mxu0 %v946
        %2422 = vmatprep.subr.mxu0 %v966
        %2423 = vmatpush1.msra.mxu0 %v965
        %2424 = vmatprep.subr.mxu0 %v985
        %2425 = vmatpush1.msra.mxu0 %v984
        %2426 = vmatprep.subr.mxu0 %v1004
        %2427 = vmatpush1.msra.mxu0 %v1003
        %2428 = vmatprep.subr.mxu0 %v1023
        %2429 = vmatpush1.msra.mxu0 %v1022
        %2430 = vmatprep.subr.mxu0 %v1042
        %2431 = vmatpush1.msra.mxu0 %v1041
        %2432 = vmatprep.mubr.f32.mxu0 %v439
        %2433 = vmatmul.mubr.f32.gmra.mrb[0].mxu0 %v438
        %v2434 = vpop.f32.mrb[0].mxu0
        %v2435 = vadd.f32 0.0, %v2434
        %v2436 = vpop.f32.mrb[0].mxu0
        %v2437 = vadd.f32 0.0, %v2436
        %2438 = vdwg.mxu0
        %2439 = vmatprep.subr.mxu0 %v1061
        %2440 = vmatpush1.msra.mxu0 %v1060
        %2441 = vmatprep.subr.mxu0 %v1080
        %2442 = vmatpush1.msra.mxu0 %v1079
        %2443 = vmatprep.subr.mxu0 %v1099
        %2444 = vmatpush1.msra.mxu0 %v1098
        %2445 = vmatprep.subr.mxu0 %v1118
        %2446 = vmatpush1.msra.mxu0 %v1117
        %2447 = vmatprep.subr.mxu0 %v1137
        %2448 = vmatpush1.msra.mxu0 %v1136
        %2449 = vmatprep.subr.mxu0 %v1156
        %2450 = vmatpush1.msra.mxu0 %v1155
        %2451 = vmatprep.subr.mxu0 %v1175
        %2452 = vmatpush1.msra.mxu0 %v1174
        %2453 = vmatprep.subr.mxu0 %v1194
        %2454 = vmatpush1.msra.mxu0 %v1193
        %2455 = vmatprep.subr.mxu0 %v1213
        %2456 = vmatpush1.msra.mxu0 %v1212
        %2457 = vmatprep.subr.mxu0 %v1232
        %2458 = vmatpush1.msra.mxu0 %v1231
        %2459 = vmatprep.subr.mxu0 %v1251
        %2460 = vmatpush1.msra.mxu0 %v1250
        %2461 = vmatprep.subr.mxu0 %v1270
        %2462 = vmatpush1.msra.mxu0 %v1269
        %2463 = vmatprep.subr.mxu0 %v1289
        %2464 = vmatpush1.msra.mxu0 %v1288
        %2465 = vmatprep.subr.mxu0 %v1308
        %2466 = vmatpush1.msra.mxu0 %v1307
        %2467 = vmatprep.subr.mxu0 %v1327
        %2468 = vmatpush1.msra.mxu0 %v1326
        %2469 = vmatprep.subr.mxu0 %v1346
        %2470 = vmatpush1.msra.mxu0 %v1345
        %2471 = vmatprep.subr.mxu0 %v1365
        %2472 = vmatpush1.msra.mxu0 %v1364
        %2473 = vmatprep.subr.mxu0 %v1384
        %2474 = vmatpush1.msra.mxu0 %v1383
        %2475 = vmatprep.subr.mxu0 %v1403
        %2476 = vmatpush1.msra.mxu0 %v1402
        %2477 = vmatprep.subr.mxu0 %v1422
        %2478 = vmatpush1.msra.mxu0 %v1421
        %2479 = vmatprep.subr.mxu0 %v1441
        %2480 = vmatpush1.msra.mxu0 %v1440
        %2481 = vmatprep.subr.mxu0 %v1460
        %2482 = vmatpush1.msra.mxu0 %v1459
        %2483 = vmatprep.subr.mxu0 %v1479
        %2484 = vmatpush1.msra.mxu0 %v1478
        %2485 = vmatprep.subr.mxu0 %v1498
        %2486 = vmatpush1.msra.mxu0 %v1497
        %2487 = vmatprep.subr.mxu0 %v1517
        %2488 = vmatpush1.msra.mxu0 %v1516
        %2489 = vmatprep.subr.mxu0 %v1536
        %2490 = vmatpush1.msra.mxu0 %v1535
        %2491 = vmatprep.subr.mxu0 %v1555
        %2492 = vmatpush1.msra.mxu0 %v1554
        %2493 = vmatprep.subr.mxu0 %v1574
        %2494 = vmatpush1.msra.mxu0 %v1573
        %2495 = vmatprep.subr.mxu0 %v1593
        %2496 = vmatpush1.msra.mxu0 %v1592
        %2497 = vmatprep.subr.mxu0 %v1612
        %2498 = vmatpush1.msra.mxu0 %v1611
        %2499 = vmatprep.subr.mxu0 %v1631
        %2500 = vmatpush1.msra.mxu0 %v1630
        %2501 = vmatprep.subr.mxu0 %v1650
        %2502 = vmatpush1.msra.mxu0 %v1649
        %2503 = vmatprep.mubr.f32.mxu0 %v441
        %2504 = vmatmul.mubr.f32.gmra.mrb[0].mxu0 %v440
        %v2505 = vpop.f32.mrb[0].mxu0
        %v2506 = vadd.f32 %v2435, %v2505
        %v2507 = vpop.f32.mrb[0].mxu0
        %v2508 = vadd.f32 %v2437, %v2507
        %2509 = vdwg.mxu0
        %2510 = vmatprep.subr.mxu0 %v455
        %2511 = vmatpush1.msra.mxu0 %v454
        %2512 = vmatprep.subr.mxu0 %v474
        %2513 = vmatpush1.msra.mxu0 %v473
        %2514 = vmatprep.subr.mxu0 %v493
        %2515 = vmatpush1.msra.mxu0 %v492
        %2516 = vmatprep.subr.mxu0 %v512
        %2517 = vmatpush1.msra.mxu0 %v511
        %2518 = vmatprep.subr.mxu0 %v531
        %2519 = vmatpush1.msra.mxu0 %v530
        %2520 = vmatprep.subr.mxu0 %v550
        %2521 = vmatpush1.msra.mxu0 %v549
        %2522 = vmatprep.subr.mxu0 %v569
        %2523 = vmatpush1.msra.mxu0 %v568
        %2524 = vmatprep.subr.mxu0 %v588
        %2525 = vmatpush1.msra.mxu0 %v587
        %2526 = vmatprep.subr.mxu0 %v607
        %2527 = vmatpush1.msra.mxu0 %v606
        %2528 = vmatprep.subr.mxu0 %v626
        %2529 = vmatpush1.msra.mxu0 %v625
        %2530 = vmatprep.subr.mxu0 %v645
        %2531 = vmatpush1.msra.mxu0 %v644
        %2532 = vmatprep.subr.mxu0 %v664
        %2533 = vmatpush1.msra.mxu0 %v663
        %2534 = vmatprep.subr.mxu0 %v683
        %2535 = vmatpush1.msra.mxu0 %v682
        %2536 = vmatprep.subr.mxu0 %v702
        %2537 = vmatpush1.msra.mxu0 %v701
        %2538 = vmatprep.subr.mxu0 %v721
        %2539 = vmatpush1.msra.mxu0 %v720
        %2540 = vmatprep.subr.mxu0 %v740
        %2541 = vmatpush1.msra.mxu0 %v739
        %2542 = vmatprep.subr.mxu0 %v759
        %2543 = vmatpush1.msra.mxu0 %v758
        %2544 = vmatprep.subr.mxu0 %v778
        %2545 = vmatpush1.msra.mxu0 %v777
        %2546 = vmatprep.subr.mxu0 %v797
        %2547 = vmatpush1.msra.mxu0 %v796
        %2548 = vmatprep.subr.mxu0 %v816
        %2549 = vmatpush1.msra.mxu0 %v815
        %2550 = vmatprep.subr.mxu0 %v835
        %2551 = vmatpush1.msra.mxu0 %v834
        %2552 = vmatprep.subr.mxu0 %v854
        %2553 = vmatpush1.msra.mxu0 %v853
        %2554 = vmatprep.subr.mxu0 %v873
        %2555 = vmatpush1.msra.mxu0 %v872
        %2556 = vmatprep.subr.mxu0 %v892
        %2557 = vmatpush1.msra.mxu0 %v891
        %2558 = vmatprep.subr.mxu0 %v911
        %2559 = vmatpush1.msra.mxu0 %v910
        %2560 = vmatprep.subr.mxu0 %v930
        %2561 = vmatpush1.msra.mxu0 %v929
        %2562 = vmatprep.subr.mxu0 %v949
        %2563 = vmatpush1.msra.mxu0 %v948
        %2564 = vmatprep.subr.mxu0 %v968
        %2565 = vmatpush1.msra.mxu0 %v967
        %2566 = vmatprep.subr.mxu0 %v987
        %2567 = vmatpush1.msra.mxu0 %v986
        %2568 = vmatprep.subr.mxu0 %v1006
        %2569 = vmatpush1.msra.mxu0 %v1005
        %2570 = vmatprep.subr.mxu0 %v1025
        %2571 = vmatpush1.msra.mxu0 %v1024
        %2572 = vmatprep.subr.mxu0 %v1044
        %2573 = vmatpush1.msra.mxu0 %v1043
        %2574 = vmatprep.mubr.f32.mxu0 %v439
        %2575 = vmatmul.mubr.f32.gmra.mrb[0].mxu0 %v438
        %v2576 = vpop.f32.mrb[0].mxu0
        %v2577 = vadd.f32 0.0, %v2576
        %v2578 = vpop.f32.mrb[0].mxu0
        %v2579 = vadd.f32 0.0, %v2578
        %2580 = vdwg.mxu0
        %2581 = vmatprep.subr.mxu0 %v1063
        %2582 = vmatpush1.msra.mxu0 %v1062
        %2583 = vmatprep.subr.mxu0 %v1082
        %2584 = vmatpush1.msra.mxu0 %v1081
        %2585 = vmatprep.subr.mxu0 %v1101
        %2586 = vmatpush1.msra.mxu0 %v1100
        %2587 = vmatprep.subr.mxu0 %v1120
        %2588 = vmatpush1.msra.mxu0 %v1119
        %2589 = vmatprep.subr.mxu0 %v1139
        %2590 = vmatpush1.msra.mxu0 %v1138
        %2591 = vmatprep.subr.mxu0 %v1158
        %2592 = vmatpush1.msra.mxu0 %v1157
        %2593 = vmatprep.subr.mxu0 %v1177
        %2594 = vmatpush1.msra.mxu0 %v1176
        %2595 = vmatprep.subr.mxu0 %v1196
        %2596 = vmatpush1.msra.mxu0 %v1195
        %2597 = vmatprep.subr.mxu0 %v1215
        %2598 = vmatpush1.msra.mxu0 %v1214
        %2599 = vmatprep.subr.mxu0 %v1234
        %2600 = vmatpush1.msra.mxu0 %v1233
        %2601 = vmatprep.subr.mxu0 %v1253
        %2602 = vmatpush1.msra.mxu0 %v1252
        %2603 = vmatprep.subr.mxu0 %v1272
        %2604 = vmatpush1.msra.mxu0 %v1271
        %2605 = vmatprep.subr.mxu0 %v1291
        %2606 = vmatpush1.msra.mxu0 %v1290
        %2607 = vmatprep.subr.mxu0 %v1310
        %2608 = vmatpush1.msra.mxu0 %v1309
        %2609 = vmatprep.subr.mxu0 %v1329
        %2610 = vmatpush1.msra.mxu0 %v1328
        %2611 = vmatprep.subr.mxu0 %v1348
        %2612 = vmatpush1.msra.mxu0 %v1347
        %2613 = vmatprep.subr.mxu0 %v1367
        %2614 = vmatpush1.msra.mxu0 %v1366
        %2615 = vmatprep.subr.mxu0 %v1386
        %2616 = vmatpush1.msra.mxu0 %v1385
        %2617 = vmatprep.subr.mxu0 %v1405
        %2618 = vmatpush1.msra.mxu0 %v1404
        %2619 = vmatprep.subr.mxu0 %v1424
        %2620 = vmatpush1.msra.mxu0 %v1423
        %2621 = vmatprep.subr.mxu0 %v1443
        %2622 = vmatpush1.msra.mxu0 %v1442
        %2623 = vmatprep.subr.mxu0 %v1462
        %2624 = vmatpush1.msra.mxu0 %v1461
        %2625 = vmatprep.subr.mxu0 %v1481
        %2626 = vmatpush1.msra.mxu0 %v1480
        %2627 = vmatprep.subr.mxu0 %v1500
        %2628 = vmatpush1.msra.mxu0 %v1499
        %2629 = vmatprep.subr.mxu0 %v1519
        %2630 = vmatpush1.msra.mxu0 %v1518
        %2631 = vmatprep.subr.mxu0 %v1538
        %2632 = vmatpush1.msra.mxu0 %v1537
        %2633 = vmatprep.subr.mxu0 %v1557
        %2634 = vmatpush1.msra.mxu0 %v1556
        %2635 = vmatprep.subr.mxu0 %v1576
        %2636 = vmatpush1.msra.mxu0 %v1575
        %2637 = vmatprep.subr.mxu0 %v1595
        %2638 = vmatpush1.msra.mxu0 %v1594
        %2639 = vmatprep.subr.mxu0 %v1614
        %2640 = vmatpush1.msra.mxu0 %v1613
        %2641 = vmatprep.subr.mxu0 %v1633
        %2642 = vmatpush1.msra.mxu0 %v1632
        %2643 = vmatprep.subr.mxu0 %v1652
        %2644 = vmatpush1.msra.mxu0 %v1651
        %2645 = vmatprep.mubr.f32.mxu0 %v441
        %2646 = vmatmul.mubr.f32.gmra.mrb[0].mxu0 %v440
        %v2647 = vpop.f32.mrb[0].mxu0
        %v2648 = vadd.f32 %v2577, %v2647
        %v2649 = vpop.f32.mrb[0].mxu0
        %v2650 = vadd.f32 %v2579, %v2649
        %2651 = vdwg.mxu0
        %2652 = vmatprep.subr.mxu0 %v457
        %2653 = vmatpush1.msra.mxu0 %v456
        %2654 = vmatprep.subr.mxu0 %v476
        %2655 = vmatpush1.msra.mxu0 %v475
        %2656 = vmatprep.subr.mxu0 %v495
        %2657 = vmatpush1.msra.mxu0 %v494
        %2658 = vmatprep.subr.mxu0 %v514
        %2659 = vmatpush1.msra.mxu0 %v513
        %2660 = vmatprep.subr.mxu0 %v533
        %2661 = vmatpush1.msra.mxu0 %v532
        %2662 = vmatprep.subr.mxu0 %v552
        %2663 = vmatpush1.msra.mxu0 %v551
        %2664 = vmatprep.subr.mxu0 %v571
        %2665 = vmatpush1.msra.mxu0 %v570
        %2666 = vmatprep.subr.mxu0 %v590
        %2667 = vmatpush1.msra.mxu0 %v589
        %2668 = vmatprep.subr.mxu0 %v609
        %2669 = vmatpush1.msra.mxu0 %v608
        %2670 = vmatprep.subr.mxu0 %v628
        %2671 = vmatpush1.msra.mxu0 %v627
        %2672 = vmatprep.subr.mxu0 %v647
        %2673 = vmatpush1.msra.mxu0 %v646
        %2674 = vmatprep.subr.mxu0 %v666
        %2675 = vmatpush1.msra.mxu0 %v665
        %2676 = vmatprep.subr.mxu0 %v685
        %2677 = vmatpush1.msra.mxu0 %v684
        %2678 = vmatprep.subr.mxu0 %v704
        %2679 = vmatpush1.msra.mxu0 %v703
        %2680 = vmatprep.subr.mxu0 %v723
        %2681 = vmatpush1.msra.mxu0 %v722
        %2682 = vmatprep.subr.mxu0 %v742
        %2683 = vmatpush1.msra.mxu0 %v741
        %2684 = vmatprep.subr.mxu0 %v761
        %2685 = vmatpush1.msra.mxu0 %v760
        %2686 = vmatprep.subr.mxu0 %v780
        %2687 = vmatpush1.msra.mxu0 %v779
        %2688 = vmatprep.subr.mxu0 %v799
        %2689 = vmatpush1.msra.mxu0 %v798
        %2690 = vmatprep.subr.mxu0 %v818
        %2691 = vmatpush1.msra.mxu0 %v817
        %2692 = vmatprep.subr.mxu0 %v837
        %2693 = vmatpush1.msra.mxu0 %v836
        %2694 = vmatprep.subr.mxu0 %v856
        %2695 = vmatpush1.msra.mxu0 %v855
        %2696 = vmatprep.subr.mxu0 %v875
        %2697 = vmatpush1.msra.mxu0 %v874
        %2698 = vmatprep.subr.mxu0 %v894
        %2699 = vmatpush1.msra.mxu0 %v893
        %2700 = vmatprep.subr.mxu0 %v913
        %2701 = vmatpush1.msra.mxu0 %v912
        %2702 = vmatprep.subr.mxu0 %v932
        %2703 = vmatpush1.msra.mxu0 %v931
        %2704 = vmatprep.subr.mxu0 %v951
        %2705 = vmatpush1.msra.mxu0 %v950
        %2706 = vmatprep.subr.mxu0 %v970
        %2707 = vmatpush1.msra.mxu0 %v969
        %2708 = vmatprep.subr.mxu0 %v989
        %2709 = vmatpush1.msra.mxu0 %v988
        %2710 = vmatprep.subr.mxu0 %v1008
        %2711 = vmatpush1.msra.mxu0 %v1007
        %2712 = vmatprep.subr.mxu0 %v1027
        %2713 = vmatpush1.msra.mxu0 %v1026
        %2714 = vmatprep.subr.mxu0 %v1046
        %2715 = vmatpush1.msra.mxu0 %v1045
        %2716 = vmatprep.mubr.f32.mxu0 %v439
        %2717 = vmatmul.mubr.f32.gmra.mrb[0].mxu0 %v438
        %v2718 = vpop.f32.mrb[0].mxu0
        %v2719 = vadd.f32 0.0, %v2718
        %v2720 = vpop.f32.mrb[0].mxu0
        %v2721 = vadd.f32 0.0, %v2720
        %2722 = vdwg.mxu0
        %2723 = vmatprep.subr.mxu0 %v1065
        %2724 = vmatpush1.msra.mxu0 %v1064
        %2725 = vmatprep.subr.mxu0 %v1084
        %2726 = vmatpush1.msra.mxu0 %v1083
        %2727 = vmatprep.subr.mxu0 %v1103
        %2728 = vmatpush1.msra.mxu0 %v1102
        %2729 = vmatprep.subr.mxu0 %v1122
        %2730 = vmatpush1.msra.mxu0 %v1121
        %2731 = vmatprep.subr.mxu0 %v1141
        %2732 = vmatpush1.msra.mxu0 %v1140
        %2733 = vmatprep.subr.mxu0 %v1160
        %2734 = vmatpush1.msra.mxu0 %v1159
        %2735 = vmatprep.subr.mxu0 %v1179
        %2736 = vmatpush1.msra.mxu0 %v1178
        %2737 = vmatprep.subr.mxu0 %v1198
        %2738 = vmatpush1.msra.mxu0 %v1197
        %2739 = vmatprep.subr.mxu0 %v1217
        %2740 = vmatpush1.msra.mxu0 %v1216
        %2741 = vmatprep.subr.mxu0 %v1236
        %2742 = vmatpush1.msra.mxu0 %v1235
        %2743 = vmatprep.subr.mxu0 %v1255
        %2744 = vmatpush1.msra.mxu0 %v1254
        %2745 = vmatprep.subr.mxu0 %v1274
        %2746 = vmatpush1.msra.mxu0 %v1273
        %2747 = vmatprep.subr.mxu0 %v1293
        %2748 = vmatpush1.msra.mxu0 %v1292
        %2749 = vmatprep.subr.mxu0 %v1312
        %2750 = vmatpush1.msra.mxu0 %v1311
        %2751 = vmatprep.subr.mxu0 %v1331
        %2752 = vmatpush1.msra.mxu0 %v1330
        %2753 = vmatprep.subr.mxu0 %v1350
        %2754 = vmatpush1.msra.mxu0 %v1349
        %2755 = vmatprep.subr.mxu0 %v1369
        %2756 = vmatpush1.msra.mxu0 %v1368
        %2757 = vmatprep.subr.mxu0 %v1388
        %2758 = vmatpush1.msra.mxu0 %v1387
        %2759 = vmatprep.subr.mxu0 %v1407
        %2760 = vmatpush1.msra.mxu0 %v1406
        %2761 = vmatprep.subr.mxu0 %v1426
        %2762 = vmatpush1.msra.mxu0 %v1425
        %2763 = vmatprep.subr.mxu0 %v1445
        %2764 = vmatpush1.msra.mxu0 %v1444
        %2765 = vmatprep.subr.mxu0 %v1464
        %2766 = vmatpush1.msra.mxu0 %v1463
        %2767 = vmatprep.subr.mxu0 %v1483
        %2768 = vmatpush1.msra.mxu0 %v1482
        %2769 = vmatprep.subr.mxu0 %v1502
        %2770 = vmatpush1.msra.mxu0 %v1501
        %2771 = vmatprep.subr.mxu0 %v1521
        %2772 = vmatpush1.msra.mxu0 %v1520
        %2773 = vmatprep.subr.mxu0 %v1540
        %2774 = vmatpush1.msra.mxu0 %v1539
        %2775 = vmatprep.subr.mxu0 %v1559
        %2776 = vmatpush1.msra.mxu0 %v1558
        %2777 = vmatprep.subr.mxu0 %v1578
        %2778 = vmatpush1.msra.mxu0 %v1577
        %2779 = vmatprep.subr.mxu0 %v1597
        %2780 = vmatpush1.msra.mxu0 %v1596
        %2781 = vmatprep.subr.mxu0 %v1616
        %2782 = vmatpush1.msra.mxu0 %v1615
        %2783 = vmatprep.subr.mxu0 %v1635
        %2784 = vmatpush1.msra.mxu0 %v1634
        %2785 = vmatprep.subr.mxu0 %v1654
        %2786 = vmatpush1.msra.mxu0 %v1653
        %2787 = vmatprep.mubr.f32.mxu0 %v441
        %2788 = vmatmul.mubr.f32.gmra.mrb[0].mxu0 %v440
        %v2789 = vpop.f32.mrb[0].mxu0
        %v2790 = vadd.f32 %v2719, %v2789
        %v2791 = vpop.f32.mrb[0].mxu0
        %v2792 = vadd.f32 %v2721, %v2791
        %2793 = vdwg.mxu0
        %2794 = vmatprep.subr.mxu0 %v459
        %2795 = vmatpush1.msra.mxu0 %v458
        %2796 = vmatprep.subr.mxu0 %v478
        %2797 = vmatpush1.msra.mxu0 %v477
        %2798 = vmatprep.subr.mxu0 %v497
        %2799 = vmatpush1.msra.mxu0 %v496
        %2800 = vmatprep.subr.mxu0 %v516
        %2801 = vmatpush1.msra.mxu0 %v515
        %2802 = vmatprep.subr.mxu0 %v535
        %2803 = vmatpush1.msra.mxu0 %v534
        %2804 = vmatprep.subr.mxu0 %v554
        %2805 = vmatpush1.msra.mxu0 %v553
        %2806 = vmatprep.subr.mxu0 %v573
        %2807 = vmatpush1.msra.mxu0 %v572
        %2808 = vmatprep.subr.mxu0 %v592
        %2809 = vmatpush1.msra.mxu0 %v591
        %2810 = vmatprep.subr.mxu0 %v611
        %2811 = vmatpush1.msra.mxu0 %v610
        %2812 = vmatprep.subr.mxu0 %v630
        %2813 = vmatpush1.msra.mxu0 %v629
        %2814 = vmatprep.subr.mxu0 %v649
        %2815 = vmatpush1.msra.mxu0 %v648
        %2816 = vmatprep.subr.mxu0 %v668
        %2817 = vmatpush1.msra.mxu0 %v667
        %2818 = vmatprep.subr.mxu0 %v687
        %2819 = vmatpush1.msra.mxu0 %v686
        %2820 = vmatprep.subr.mxu0 %v706
        %2821 = vmatpush1.msra.mxu0 %v705
        %2822 = vmatprep.subr.mxu0 %v725
        %2823 = vmatpush1.msra.mxu0 %v724
        %2824 = vmatprep.subr.mxu0 %v744
        %2825 = vmatpush1.msra.mxu0 %v743
        %2826 = vmatprep.subr.mxu0 %v763
        %2827 = vmatpush1.msra.mxu0 %v762
        %2828 = vmatprep.subr.mxu0 %v782
        %2829 = vmatpush1.msra.mxu0 %v781
        %2830 = vmatprep.subr.mxu0 %v801
        %2831 = vmatpush1.msra.mxu0 %v800
        %2832 = vmatprep.subr.mxu0 %v820
        %2833 = vmatpush1.msra.mxu0 %v819
        %2834 = vmatprep.subr.mxu0 %v839
        %2835 = vmatpush1.msra.mxu0 %v838
        %2836 = vmatprep.subr.mxu0 %v858
        %2837 = vmatpush1.msra.mxu0 %v857
        %2838 = vmatprep.subr.mxu0 %v877
        %2839 = vmatpush1.msra.mxu0 %v876
        %2840 = vmatprep.subr.mxu0 %v896
        %2841 = vmatpush1.msra.mxu0 %v895
        %2842 = vmatprep.subr.mxu0 %v915
        %2843 = vmatpush1.msra.mxu0 %v914
        %2844 = vmatprep.subr.mxu0 %v934
        %2845 = vmatpush1.msra.mxu0 %v933
        %2846 = vmatprep.subr.mxu0 %v953
        %2847 = vmatpush1.msra.mxu0 %v952
        %2848 = vmatprep.subr.mxu0 %v972
        %2849 = vmatpush1.msra.mxu0 %v971
        %2850 = vmatprep.subr.mxu0 %v991
        %2851 = vmatpush1.msra.mxu0 %v990
        %2852 = vmatprep.subr.mxu0 %v1010
        %2853 = vmatpush1.msra.mxu0 %v1009
        %2854 = vmatprep.subr.mxu0 %v1029
        %2855 = vmatpush1.msra.mxu0 %v1028
        %2856 = vmatprep.subr.mxu0 %v1048
        %2857 = vmatpush1.msra.mxu0 %v1047
        %2858 = vmatprep.mubr.f32.mxu0 %v439
        %2859 = vmatmul.mubr.f32.gmra.mrb[0].mxu0 %v438
        %v2860 = vpop.f32.mrb[0].mxu0
        %v2861 = vadd.f32 0.0, %v2860
        %v2862 = vpop.f32.mrb[0].mxu0
        %v2863 = vadd.f32 0.0, %v2862
        %2864 = vdwg.mxu0
        %2865 = vmatprep.subr.mxu0 %v1067
        %2866 = vmatpush1.msra.mxu0 %v1066
        %2867 = vmatprep.subr.mxu0 %v1086
        %2868 = vmatpush1.msra.mxu0 %v1085
        %2869 = vmatprep.subr.mxu0 %v1105
        %2870 = vmatpush1.msra.mxu0 %v1104
        %2871 = vmatprep.subr.mxu0 %v1124
        %2872 = vmatpush1.msra.mxu0 %v1123
        %2873 = vmatprep.subr.mxu0 %v1143
        %2874 = vmatpush1.msra.mxu0 %v1142
        %2875 = vmatprep.subr.mxu0 %v1162
        %2876 = vmatpush1.msra.mxu0 %v1161
        %2877 = vmatprep.subr.mxu0 %v1181
        %2878 = vmatpush1.msra.mxu0 %v1180
        %2879 = vmatprep.subr.mxu0 %v1200
        %2880 = vmatpush1.msra.mxu0 %v1199
        %2881 = vmatprep.subr.mxu0 %v1219
        %2882 = vmatpush1.msra.mxu0 %v1218
        %2883 = vmatprep.subr.mxu0 %v1238
        %2884 = vmatpush1.msra.mxu0 %v1237
        %2885 = vmatprep.subr.mxu0 %v1257
        %2886 = vmatpush1.msra.mxu0 %v1256
        %2887 = vmatprep.subr.mxu0 %v1276
        %2888 = vmatpush1.msra.mxu0 %v1275
        %2889 = vmatprep.subr.mxu0 %v1295
        %2890 = vmatpush1.msra.mxu0 %v1294
        %2891 = vmatprep.subr.mxu0 %v1314
        %2892 = vmatpush1.msra.mxu0 %v1313
        %2893 = vmatprep.subr.mxu0 %v1333
        %2894 = vmatpush1.msra.mxu0 %v1332
        %2895 = vmatprep.subr.mxu0 %v1352
        %2896 = vmatpush1.msra.mxu0 %v1351
        %2897 = vmatprep.subr.mxu0 %v1371
        %2898 = vmatpush1.msra.mxu0 %v1370
        %2899 = vmatprep.subr.mxu0 %v1390
        %2900 = vmatpush1.msra.mxu0 %v1389
        %2901 = vmatprep.subr.mxu0 %v1409
        %2902 = vmatpush1.msra.mxu0 %v1408
        %2903 = vmatprep.subr.mxu0 %v1428
        %2904 = vmatpush1.msra.mxu0 %v1427
        %2905 = vmatprep.subr.mxu0 %v1447
        %2906 = vmatpush1.msra.mxu0 %v1446
        %2907 = vmatprep.subr.mxu0 %v1466
        %2908 = vmatpush1.msra.mxu0 %v1465
        %2909 = vmatprep.subr.mxu0 %v1485
        %2910 = vmatpush1.msra.mxu0 %v1484
        %2911 = vmatprep.subr.mxu0 %v1504
        %2912 = vmatpush1.msra.mxu0 %v1503
        %2913 = vmatprep.subr.mxu0 %v1523
        %2914 = vmatpush1.msra.mxu0 %v1522
        %2915 = vmatprep.subr.mxu0 %v1542
        %2916 = vmatpush1.msra.mxu0 %v1541
        %2917 = vmatprep.subr.mxu0 %v1561
        %2918 = vmatpush1.msra.mxu0 %v1560
        %2919 = vmatprep.subr.mxu0 %v1580
        %2920 = vmatpush1.msra.mxu0 %v1579
        %2921 = vmatprep.subr.mxu0 %v1599
        %2922 = vmatpush1.msra.mxu0 %v1598
        %2923 = vmatprep.subr.mxu0 %v1618
        %2924 = vmatpush1.msra.mxu0 %v1617
        %2925 = vmatprep.subr.mxu0 %v1637
        %2926 = vmatpush1.msra.mxu0 %v1636
        %2927 = vmatprep.subr.mxu0 %v1656
        %2928 = vmatpush1.msra.mxu0 %v1655
        %2929 = vmatprep.mubr.f32.mxu0 %v441
        %2930 = vmatmul.mubr.f32.gmra.mrb[0].mxu0 %v440
        %v2931 = vpop.f32.mrb[0].mxu0
        %v2932 = vadd.f32 %v2861, %v2931
        %v2933 = vpop.f32.mrb[0].mxu0
        %v2934 = vadd.f32 %v2863, %v2933
        %2935 = vdwg.mxu0
        %2936 = vmatprep.subr.mxu0 0.0
        %2937 = vmatpush1.msra.mxu0 %v460
        %2938 = vmatprep.subr.mxu0 0.0
        %2939 = vmatpush1.msra.mxu0 %v479
        %2940 = vmatprep.subr.mxu0 0.0
        %2941 = vmatpush1.msra.mxu0 %v498
        %2942 = vmatprep.subr.mxu0 0.0
        %2943 = vmatpush1.msra.mxu0 %v517
        %2944 = vmatprep.subr.mxu0 0.0
        %2945 = vmatpush1.msra.mxu0 %v536
        %2946 = vmatprep.subr.mxu0 0.0
        %2947 = vmatpush1.msra.mxu0 %v555
        %2948 = vmatprep.subr.mxu0 0.0
        %2949 = vmatpush1.msra.mxu0 %v574
        %2950 = vmatprep.subr.mxu0 0.0
        %2951 = vmatpush1.msra.mxu0 %v593
        %2952 = vmatprep.subr.mxu0 0.0
        %2953 = vmatpush1.msra.mxu0 %v612
        %2954 = vmatprep.subr.mxu0 0.0
        %2955 = vmatpush1.msra.mxu0 %v631
        %2956 = vmatprep.subr.mxu0 0.0
        %2957 = vmatpush1.msra.mxu0 %v650
        %2958 = vmatprep.subr.mxu0 0.0
        %2959 = vmatpush1.msra.mxu0 %v669
        %2960 = vmatprep.subr.mxu0 0.0
        %2961 = vmatpush1.msra.mxu0 %v688
        %2962 = vmatprep.subr.mxu0 0.0
        %2963 = vmatpush1.msra.mxu0 %v707
        %2964 = vmatprep.subr.mxu0 0.0
        %2965 = vmatpush1.msra.mxu0 %v726
        %2966 = vmatprep.subr.mxu0 0.0
        %2967 = vmatpush1.msra.mxu0 %v745
        %2968 = vmatprep.subr.mxu0 0.0
        %2969 = vmatpush1.msra.mxu0 %v764
        %2970 = vmatprep.subr.mxu0 0.0
        %2971 = vmatpush1.msra.mxu0 %v783
        %2972 = vmatprep.subr.mxu0 0.0
        %2973 = vmatpush1.msra.mxu0 %v802
        %2974 = vmatprep.subr.mxu0 0.0
        %2975 = vmatpush1.msra.mxu0 %v821
        %2976 = vmatprep.subr.mxu0 0.0
        %2977 = vmatpush1.msra.mxu0 %v840
        %2978 = vmatprep.subr.mxu0 0.0
        %2979 = vmatpush1.msra.mxu0 %v859
        %2980 = vmatprep.subr.mxu0 0.0
        %2981 = vmatpush1.msra.mxu0 %v878
        %2982 = vmatprep.subr.mxu0 0.0
        %2983 = vmatpush1.msra.mxu0 %v897
        %2984 = vmatprep.subr.mxu0 0.0
        %2985 = vmatpush1.msra.mxu0 %v916
        %2986 = vmatprep.subr.mxu0 0.0
        %2987 = vmatpush1.msra.mxu0 %v935
        %2988 = vmatprep.subr.mxu0 0.0
        %2989 = vmatpush1.msra.mxu0 %v954
        %2990 = vmatprep.subr.mxu0 0.0
        %2991 = vmatpush1.msra.mxu0 %v973
        %2992 = vmatprep.subr.mxu0 0.0
        %2993 = vmatpush1.msra.mxu0 %v992
        %2994 = vmatprep.subr.mxu0 0.0
        %2995 = vmatpush1.msra.mxu0 %v1011
        %2996 = vmatprep.subr.mxu0 0.0
        %2997 = vmatpush1.msra.mxu0 %v1030
        %2998 = vmatprep.subr.mxu0 0.0
        %2999 = vmatpush1.msra.mxu0 %v1049
        %3000 = vmatprep.mubr.f32.mxu0 %v439
        %3001 = vmatmul.mubr.f32.gmra.mrb[0].mxu0 %v438
        %v3002 = vpop.f32.mrb[0].mxu0
        %v3003 = vadd.f32 0.0, %v3002
        %v3004 = vpop.f32.mrb[0].mxu0
        %3005 = vdwg.mxu0
        %3006 = vmatprep.subr.mxu0 0.0
        %3007 = vmatpush1.msra.mxu0 %v1068
        %3008 = vmatprep.subr.mxu0 0.0
        %3009 = vmatpush1.msra.mxu0 %v1087
        %3010 = vmatprep.subr.mxu0 0.0
        %3011 = vmatpush1.msra.mxu0 %v1106
        %3012 = vmatprep.subr.mxu0 0.0
        %3013 = vmatpush1.msra.mxu0 %v1125
        %3014 = vmatprep.subr.mxu0 0.0
        %3015 = vmatpush1.msra.mxu0 %v1144
        %3016 = vmatprep.subr.mxu0 0.0
        %3017 = vmatpush1.msra.mxu0 %v1163
        %3018 = vmatprep.subr.mxu0 0.0
        %3019 = vmatpush1.msra.mxu0 %v1182
        %3020 = vmatprep.subr.mxu0 0.0
        %3021 = vmatpush1.msra.mxu0 %v1201
        %3022 = vmatprep.subr.mxu0 0.0
        %3023 = vmatpush1.msra.mxu0 %v1220
        %3024 = vmatprep.subr.mxu0 0.0
        %3025 = vmatpush1.msra.mxu0 %v1239
        %3026 = vmatprep.subr.mxu0 0.0
        %3027 = vmatpush1.msra.mxu0 %v1258
        %3028 = vmatprep.subr.mxu0 0.0
        %3029 = vmatpush1.msra.mxu0 %v1277
        %3030 = vmatprep.subr.mxu0 0.0
        %3031 = vmatpush1.msra.mxu0 %v1296
        %3032 = vmatprep.subr.mxu0 0.0
        %3033 = vmatpush1.msra.mxu0 %v1315
        %3034 = vmatprep.subr.mxu0 0.0
        %3035 = vmatpush1.msra.mxu0 %v1334
        %3036 = vmatprep.subr.mxu0 0.0
        %3037 = vmatpush1.msra.mxu0 %v1353
        %3038 = vmatprep.subr.mxu0 0.0
        %3039 = vmatpush1.msra.mxu0 %v1372
        %3040 = vmatprep.subr.mxu0 0.0
        %3041 = vmatpush1.msra.mxu0 %v1391
        %3042 = vmatprep.subr.mxu0 0.0
        %3043 = vmatpush1.msra.mxu0 %v1410
        %3044 = vmatprep.subr.mxu0 0.0
        %3045 = vmatpush1.msra.mxu0 %v1429
        %3046 = vmatprep.subr.mxu0 0.0
        %3047 = vmatpush1.msra.mxu0 %v1448
        %3048 = vmatprep.subr.mxu0 0.0
        %3049 = vmatpush1.msra.mxu0 %v1467
        %3050 = vmatprep.subr.mxu0 0.0
        %3051 = vmatpush1.msra.mxu0 %v1486
        %3052 = vmatprep.subr.mxu0 0.0
        %3053 = vmatpush1.msra.mxu0 %v1505
        %3054 = vmatprep.subr.mxu0 0.0
        %3055 = vmatpush1.msra.mxu0 %v1524
        %3056 = vmatprep.subr.mxu0 0.0
        %3057 = vmatpush1.msra.mxu0 %v1543
        %3058 = vmatprep.subr.mxu0 0.0
        %3059 = vmatpush1.msra.mxu0 %v1562
        %3060 = vmatprep.subr.mxu0 0.0
        %3061 = vmatpush1.msra.mxu0 %v1581
        %3062 = vmatprep.subr.mxu0 0.0
        %3063 = vmatpush1.msra.mxu0 %v1600
        %3064 = vmatprep.subr.mxu0 0.0
        %3065 = vmatpush1.msra.mxu0 %v1619
        %3066 = vmatprep.subr.mxu0 0.0
        %3067 = vmatpush1.msra.mxu0 %v1638
        %3068 = vmatprep.subr.mxu0 0.0
        %3069 = vmatpush1.msra.mxu0 %v1657
        %3070 = vmatprep.mubr.f32.mxu0 %v441
        %3071 = vmatmul.mubr.f32.gmra.mrb[0].mxu0 %v440
        %v3072 = vpop.f32.mrb[0].mxu0
        %v3073 = vadd.f32 %v3003, %v3072
        %v3074 = vpop.f32.mrb[0].mxu0
        %3075 = vdwg.mxu0
        %v3076 = vadd.f32 %v419, %v1796
        %v3077 = vadd.f32 %v420, %v1798
        %v3078 = vadd.f32 %v421, %v1938
        %v3079 = vadd.f32 %v422, %v1940
        %v3080 = vadd.f32 %v423, %v2080
        %v3081 = vadd.f32 %v424, %v2082
        %v3082 = vadd.f32 %v425, %v2222
        %v3083 = vadd.f32 %v426, %v2224
        %v3084 = vadd.f32 %v427, %v2364
        %v3085 = vadd.f32 %v428, %v2366
        %v3086 = vadd.f32 %v429, %v2506
        %v3087 = vadd.f32 %v430, %v2508
        %v3088 = vadd.f32 %v431, %v2648
        %v3089 = vadd.f32 %v432, %v2650
        %v3090 = vadd.f32 %v433, %v2790
        %v3091 = vadd.f32 %v434, %v2792
        %v3092 = vadd.f32 %v435, %v2932
        %v3093 = vadd.f32 %v436, %v2934
        %v3094 = vadd.f32 %v437, %v3073
        %3095 = vst [vmem:[%s388] sm:$0xff] %v3076
        %3096 = vst [vmem:[%s388 + $0x8] sm:$0xff] %v3077
        %3097 = vst [vmem:[%s388 + $0x10] sm:$0xff] %v3078
        %3098 = vst [vmem:[%s388 + $0x18] sm:$0xff] %v3079
        %3099 = vst [vmem:[%s388 + $0x20] sm:$0xff] %v3080
        %3100 = vst [vmem:[%s388 + $0x28] sm:$0xff] %v3081
        %3101 = vst [vmem:[%s388 + $0x30] sm:$0xff] %v3082
        %3102 = vst [vmem:[%s388 + $0x38] sm:$0xff] %v3083
        %3103 = vst [vmem:[%s388 + $0x40] sm:$0xff] %v3084
        %3104 = vst [vmem:[%s388 + $0x48] sm:$0xff] %v3085
        %3105 = vst [vmem:[%s388 + $0x50] sm:$0xff] %v3086
        %3106 = vst [vmem:[%s388 + $0x58] sm:$0xff] %v3087
        %3107 = vst [vmem:[%s388 + $0x60] sm:$0xff] %v3088
        %3108 = vst [vmem:[%s388 + $0x68] sm:$0xff] %v3089
        %3109 = vst [vmem:[%s388 + $0x70] sm:$0xff] %v3090
        %3110 = vst [vmem:[%s388 + $0x78] sm:$0xff] %v3091
        %3111 = vst [vmem:[%s388 + $0x80] sm:$0xff] %v3092
        %3112 = vst [vmem:[%s388 + $0x88] sm:$0xff] %v3093
        %3113 = vst [vmem:[%s388 + $0x90] sm:$0xff] %v3094
        // Predicated region
        $region65: #{tpu_custom_call.1} parent=39 // pred_check
          %p3114 = pneg %p396
        $region66: #{tpu_custom_call.1} parent=39 // pred_check_branch
          %3116 = sbr.rel (%p3114) target = $region68
        $region67: #{tpu_custom_call.1} parent=39 // pred_region
          %v3117 = vld [vmem:[%s388] sm:$0xff]
          %v3118 = vld [vmem:[%s388 + $0x8] sm:$0xff]
          %v3119 = vld [vmem:[%s388 + $0x10] sm:$0xff]
          %v3120 = vld [vmem:[%s388 + $0x18] sm:$0xff]
          %v3121 = vld [vmem:[%s388 + $0x20] sm:$0xff]
          %v3122 = vld [vmem:[%s388 + $0x28] sm:$0xff]
          %v3123 = vld [vmem:[%s388 + $0x30] sm:$0xff]
          %v3124 = vld [vmem:[%s388 + $0x38] sm:$0xff]
          %v3125 = vld [vmem:[%s388 + $0x40] sm:$0xff]
          %v3126 = vld [vmem:[%s388 + $0x48] sm:$0xff]
          %v3127 = vld [vmem:[%s388 + $0x50] sm:$0xff]
          %v3128 = vld [vmem:[%s388 + $0x58] sm:$0xff]
          %v3129 = vld [vmem:[%s388 + $0x60] sm:$0xff]
          %v3130 = vld [vmem:[%s388 + $0x68] sm:$0xff]
          %v3131 = vld [vmem:[%s388 + $0x70] sm:$0xff]
          %v3132 = vld [vmem:[%s388 + $0x78] sm:$0xff]
          %v3133 = vld [vmem:[%s388 + $0x80] sm:$0xff]
          %v3134 = vld [vmem:[%s388 + $0x88] sm:$0xff]
          %v3135 = vld [vmem:[%s388 + $0x90] sm:$0xff]
          %v3136 = vld [vmem:[%s329] sm:$0xff]
          %v3137 = vld [vmem:[%s329 + $0x8] sm:$0xff]
          %v3138 = vld [vmem:[%s329 + $0x10] sm:$0x7]
          %v3142 = vlaneseq
          %v3143 = vshrl.u32 %v3142, 7
          %v3144 = vsub.s32 0, %v3143
          %v3145 = vrot.slane %v3136, %v3144
          %v3146 = vlaneseq
          %v3147 = vshrl.u32 %v3146, 7
          %v3148 = vsub.s32 1, %v3147
          %v3149 = vrot.slane %v3136, %v3148
          %v3150 = vlaneseq
          %v3151 = vshrl.u32 %v3150, 7
          %v3152 = vsub.s32 2, %v3151
          %v3153 = vrot.slane %v3136, %v3152
          %v3154 = vlaneseq
          %v3155 = vshrl.u32 %v3154, 7
          %v3156 = vsub.s32 3, %v3155
          %v3157 = vrot.slane %v3136, %v3156
          %v3158 = vlaneseq
          %v3159 = vshrl.u32 %v3158, 7
          %v3160 = vsub.s32 4, %v3159
          %v3161 = vrot.slane %v3136, %v3160
          %v3162 = vlaneseq
          %v3163 = vshrl.u32 %v3162, 7
          %v3164 = vsub.s32 5, %v3163
          %v3165 = vrot.slane %v3136, %v3164
          %v3166 = vlaneseq
          %v3167 = vshrl.u32 %v3166, 7
          %v3168 = vsub.s32 6, %v3167
          %v3169 = vrot.slane %v3136, %v3168
          %v3170 = vlaneseq
          %v3171 = vshrl.u32 %v3170, 7
          %v3172 = vsub.s32 7, %v3171
          %v3173 = vrot.slane %v3136, %v3172
          %v3174 = vlaneseq
          %v3175 = vshrl.u32 %v3174, 7
          %v3176 = vsub.s32 0, %v3175
          %v3177 = vrot.slane %v3137, %v3176
          %v3178 = vlaneseq
          %v3179 = vshrl.u32 %v3178, 7
          %v3180 = vsub.s32 1, %v3179
          %v3181 = vrot.slane %v3137, %v3180
          %v3182 = vlaneseq
          %v3183 = vshrl.u32 %v3182, 7
          %v3184 = vsub.s32 2, %v3183
          %v3185 = vrot.slane %v3137, %v3184
          %v3186 = vlaneseq
          %v3187 = vshrl.u32 %v3186, 7
          %v3188 = vsub.s32 3, %v3187
          %v3189 = vrot.slane %v3137, %v3188
          %v3190 = vlaneseq
          %v3191 = vshrl.u32 %v3190, 7
          %v3192 = vsub.s32 4, %v3191
          %v3193 = vrot.slane %v3137, %v3192
          %v3194 = vlaneseq
          %v3195 = vshrl.u32 %v3194, 7
          %v3196 = vsub.s32 5, %v3195
          %v3197 = vrot.slane %v3137, %v3196
          %v3198 = vlaneseq
          %v3199 = vshrl.u32 %v3198, 7
          %v3200 = vsub.s32 6, %v3199
          %v3201 = vrot.slane %v3137, %v3200
          %v3202 = vlaneseq
          %v3203 = vshrl.u32 %v3202, 7
          %v3204 = vsub.s32 7, %v3203
          %v3205 = vrot.slane %v3137, %v3204
          %v3206 = vlaneseq
          %v3207 = vshrl.u32 %v3206, 7
          %v3208 = vsub.s32 0, %v3207
          %v3209 = vrot.slane %v3138, %v3208
          %v3210 = vlaneseq
          %v3211 = vshrl.u32 %v3210, 7
          %v3212 = vsub.s32 1, %v3211
          %v3213 = vrot.slane %v3138, %v3212
          %v3214 = vlaneseq
          %v3215 = vshrl.u32 %v3214, 7
          %v3216 = vsub.s32 2, %v3215
          %v3217 = vrot.slane %v3138, %v3216
          %v3237 = vadd.f32 %v3117, %v3145
          %v3238 = vadd.f32 %v3118, %v3149
          %v3239 = vadd.f32 %v3119, %v3153
          %v3240 = vadd.f32 %v3120, %v3157
          %v3241 = vadd.f32 %v3121, %v3161
          %v3242 = vadd.f32 %v3122, %v3165
          %v3243 = vadd.f32 %v3123, %v3169
          %v3244 = vadd.f32 %v3124, %v3173
          %v3245 = vadd.f32 %v3125, %v3177
          %v3246 = vadd.f32 %v3126, %v3181
          %v3247 = vadd.f32 %v3127, %v3185
          %v3248 = vadd.f32 %v3128, %v3189
          %v3249 = vadd.f32 %v3129, %v3193
          %v3250 = vadd.f32 %v3130, %v3197
          %v3251 = vadd.f32 %v3131, %v3201
          %v3252 = vadd.f32 %v3132, %v3205
          %v3253 = vadd.f32 %v3133, %v3209
          %v3254 = vadd.f32 %v3134, %v3213
          %v3255 = vadd.f32 %v3135, %v3217
          %v3256 = vmax.f32 %v3237, 0.0
          %v3257 = vmax.f32 %v3238, 0.0
          %v3258 = vmax.f32 %v3239, 0.0
          %v3259 = vmax.f32 %v3240, 0.0
          %v3260 = vmax.f32 %v3241, 0.0
          %v3261 = vmax.f32 %v3242, 0.0
          %v3262 = vmax.f32 %v3243, 0.0
          %v3263 = vmax.f32 %v3244, 0.0
          %v3264 = vmax.f32 %v3245, 0.0
          %v3265 = vmax.f32 %v3246, 0.0
          %v3266 = vmax.f32 %v3247, 0.0
          %v3267 = vmax.f32 %v3248, 0.0
          %v3268 = vmax.f32 %v3249, 0.0
          %v3269 = vmax.f32 %v3250, 0.0
          %v3270 = vmax.f32 %v3251, 0.0
          %v3271 = vmax.f32 %v3252, 0.0
          %v3272 = vmax.f32 %v3253, 0.0
          %v3273 = vmax.f32 %v3254, 0.0
          %v3274 = vmax.f32 %v3255, 0.0
          %v3275 = vld [vmem:[%s338] sm:$0xff]
          %v3276 = vld [vmem:[%s338 + $0x8] sm:$0xff]
          %v3277 = vld [vmem:[%s338 + $0x10] sm:$0x7]
          %v3281 = vlaneseq
          %v3282 = vshrl.u32 %v3281, 7
          %v3283 = vsub.s32 0, %v3282
          %v3284 = vrot.slane %v3275, %v3283
          %v3285 = vlaneseq
          %v3286 = vshrl.u32 %v3285, 7
          %v3287 = vsub.s32 1, %v3286
          %v3288 = vrot.slane %v3275, %v3287
          %v3289 = vlaneseq
          %v3290 = vshrl.u32 %v3289, 7
          %v3291 = vsub.s32 2, %v3290
          %v3292 = vrot.slane %v3275, %v3291
          %v3293 = vlaneseq
          %v3294 = vshrl.u32 %v3293, 7
          %v3295 = vsub.s32 3, %v3294
          %v3296 = vrot.slane %v3275, %v3295
          %v3297 = vlaneseq
          %v3298 = vshrl.u32 %v3297, 7
          %v3299 = vsub.s32 4, %v3298
          %v3300 = vrot.slane %v3275, %v3299
          %v3301 = vlaneseq
          %v3302 = vshrl.u32 %v3301, 7
          %v3303 = vsub.s32 5, %v3302
          %v3304 = vrot.slane %v3275, %v3303
          %v3305 = vlaneseq
          %v3306 = vshrl.u32 %v3305, 7
          %v3307 = vsub.s32 6, %v3306
          %v3308 = vrot.slane %v3275, %v3307
          %v3309 = vlaneseq
          %v3310 = vshrl.u32 %v3309, 7
          %v3311 = vsub.s32 7, %v3310
          %v3312 = vrot.slane %v3275, %v3311
          %v3313 = vlaneseq
          %v3314 = vshrl.u32 %v3313, 7
          %v3315 = vsub.s32 0, %v3314
          %v3316 = vrot.slane %v3276, %v3315
          %v3317 = vlaneseq
          %v3318 = vshrl.u32 %v3317, 7
          %v3319 = vsub.s32 1, %v3318
          %v3320 = vrot.slane %v3276, %v3319
          %v3321 = vlaneseq
          %v3322 = vshrl.u32 %v3321, 7
          %v3323 = vsub.s32 2, %v3322
          %v3324 = vrot.slane %v3276, %v3323
          %v3325 = vlaneseq
          %v3326 = vshrl.u32 %v3325, 7
          %v3327 = vsub.s32 3, %v3326
          %v3328 = vrot.slane %v3276, %v3327
          %v3329 = vlaneseq
          %v3330 = vshrl.u32 %v3329, 7
          %v3331 = vsub.s32 4, %v3330
          %v3332 = vrot.slane %v3276, %v3331
          %v3333 = vlaneseq
          %v3334 = vshrl.u32 %v3333, 7
          %v3335 = vsub.s32 5, %v3334
          %v3336 = vrot.slane %v3276, %v3335
          %v3337 = vlaneseq
          %v3338 = vshrl.u32 %v3337, 7
          %v3339 = vsub.s32 6, %v3338
          %v3340 = vrot.slane %v3276, %v3339
          %v3341 = vlaneseq
          %v3342 = vshrl.u32 %v3341, 7
          %v3343 = vsub.s32 7, %v3342
          %v3344 = vrot.slane %v3276, %v3343
          %v3345 = vlaneseq
          %v3346 = vshrl.u32 %v3345, 7
          %v3347 = vsub.s32 0, %v3346
          %v3348 = vrot.slane %v3277, %v3347
          %v3349 = vlaneseq
          %v3350 = vshrl.u32 %v3349, 7
          %v3351 = vsub.s32 1, %v3350
          %v3352 = vrot.slane %v3277, %v3351
          %v3353 = vlaneseq
          %v3354 = vshrl.u32 %v3353, 7
          %v3355 = vsub.s32 2, %v3354
          %v3356 = vrot.slane %v3277, %v3355
          %v3376 = vmul.f32 %v3256, %v3284
          %v3377 = vmul.f32 %v3257, %v3288
          %v3378 = vmul.f32 %v3258, %v3292
          %v3379 = vmul.f32 %v3259, %v3296
          %v3380 = vmul.f32 %v3260, %v3300
          %v3381 = vmul.f32 %v3261, %v3304
          %v3382 = vmul.f32 %v3262, %v3308
          %v3383 = vmul.f32 %v3263, %v3312
          %v3384 = vmul.f32 %v3264, %v3316
          %v3385 = vmul.f32 %v3265, %v3320
          %v3386 = vmul.f32 %v3266, %v3324
          %v3387 = vmul.f32 %v3267, %v3328
          %v3388 = vmul.f32 %v3268, %v3332
          %v3389 = vmul.f32 %v3269, %v3336
          %v3390 = vmul.f32 %v3270, %v3340
          %v3391 = vmul.f32 %v3271, %v3344
          %v3392 = vmul.f32 %v3272, %v3348
          %v3393 = vmul.f32 %v3273, %v3352
          %v3394 = vmul.f32 %v3274, %v3356
          %v3395 = vld [vmem:[%s347] sm:$0xff]
          %v3396 = vld [vmem:[%s347 + $0x8] sm:$0xff]
          %v3397 = vld [vmem:[%s347 + $0x10] sm:$0x7]
          %v3401 = vlaneseq
          %v3402 = vshrl.u32 %v3401, 7
          %v3403 = vsub.s32 0, %v3402
          %v3404 = vrot.slane %v3395, %v3403
          %v3405 = vlaneseq
          %v3406 = vshrl.u32 %v3405, 7
          %v3407 = vsub.s32 1, %v3406
          %v3408 = vrot.slane %v3395, %v3407
          %v3409 = vlaneseq
          %v3410 = vshrl.u32 %v3409, 7
          %v3411 = vsub.s32 2, %v3410
          %v3412 = vrot.slane %v3395, %v3411
          %v3413 = vlaneseq
          %v3414 = vshrl.u32 %v3413, 7
          %v3415 = vsub.s32 3, %v3414
          %v3416 = vrot.slane %v3395, %v3415
          %v3417 = vlaneseq
          %v3418 = vshrl.u32 %v3417, 7
          %v3419 = vsub.s32 4, %v3418
          %v3420 = vrot.slane %v3395, %v3419
          %v3421 = vlaneseq
          %v3422 = vshrl.u32 %v3421, 7
          %v3423 = vsub.s32 5, %v3422
          %v3424 = vrot.slane %v3395, %v3423
          %v3425 = vlaneseq
          %v3426 = vshrl.u32 %v3425, 7
          %v3427 = vsub.s32 6, %v3426
          %v3428 = vrot.slane %v3395, %v3427
          %v3429 = vlaneseq
          %v3430 = vshrl.u32 %v3429, 7
          %v3431 = vsub.s32 7, %v3430
          %v3432 = vrot.slane %v3395, %v3431
          %v3433 = vlaneseq
          %v3434 = vshrl.u32 %v3433, 7
          %v3435 = vsub.s32 0, %v3434
          %v3436 = vrot.slane %v3396, %v3435
          %v3437 = vlaneseq
          %v3438 = vshrl.u32 %v3437, 7
          %v3439 = vsub.s32 1, %v3438
          %v3440 = vrot.slane %v3396, %v3439
          %v3441 = vlaneseq
          %v3442 = vshrl.u32 %v3441, 7
          %v3443 = vsub.s32 2, %v3442
          %v3444 = vrot.slane %v3396, %v3443
          %v3445 = vlaneseq
          %v3446 = vshrl.u32 %v3445, 7
          %v3447 = vsub.s32 3, %v3446
          %v3448 = vrot.slane %v3396, %v3447
          %v3449 = vlaneseq
          %v3450 = vshrl.u32 %v3449, 7
          %v3451 = vsub.s32 4, %v3450
          %v3452 = vrot.slane %v3396, %v3451
          %v3453 = vlaneseq
          %v3454 = vshrl.u32 %v3453, 7
          %v3455 = vsub.s32 5, %v3454
          %v3456 = vrot.slane %v3396, %v3455
          %v3457 = vlaneseq
          %v3458 = vshrl.u32 %v3457, 7
          %v3459 = vsub.s32 6, %v3458
          %v3460 = vrot.slane %v3396, %v3459
          %v3461 = vlaneseq
          %v3462 = vshrl.u32 %v3461, 7
          %v3463 = vsub.s32 7, %v3462
          %v3464 = vrot.slane %v3396, %v3463
          %v3465 = vlaneseq
          %v3466 = vshrl.u32 %v3465, 7
          %v3467 = vsub.s32 0, %v3466
          %v3468 = vrot.slane %v3397, %v3467
          %v3469 = vlaneseq
          %v3470 = vshrl.u32 %v3469, 7
          %v3471 = vsub.s32 1, %v3470
          %v3472 = vrot.slane %v3397, %v3471
          %v3473 = vlaneseq
          %v3474 = vshrl.u32 %v3473, 7
          %v3475 = vsub.s32 2, %v3474
          %v3476 = vrot.slane %v3397, %v3475
          %v3496 = vadd.f32 %v3376, %v3404
          %v3497 = vadd.f32 %v3377, %v3408
          %v3498 = vadd.f32 %v3378, %v3412
          %v3499 = vadd.f32 %v3379, %v3416
          %v3500 = vadd.f32 %v3380, %v3420
          %v3501 = vadd.f32 %v3381, %v3424
          %v3502 = vadd.f32 %v3382, %v3428
          %v3503 = vadd.f32 %v3383, %v3432
          %v3504 = vadd.f32 %v3384, %v3436
          %v3505 = vadd.f32 %v3385, %v3440
          %v3506 = vadd.f32 %v3386, %v3444
          %v3507 = vadd.f32 %v3387, %v3448
          %v3508 = vadd.f32 %v3388, %v3452
          %v3509 = vadd.f32 %v3389, %v3456
          %v3510 = vadd.f32 %v3390, %v3460
          %v3511 = vadd.f32 %v3391, %v3464
          %v3512 = vadd.f32 %v3392, %v3468
          %v3513 = vadd.f32 %v3393, %v3472
          %v3514 = vadd.f32 %v3394, %v3476
          %3515 = vst [vmem:[%s388] sm:$0xff] %v3496
          %3516 = vst [vmem:[%s388 + $0x8] sm:$0xff] %v3497
          %3517 = vst [vmem:[%s388 + $0x10] sm:$0xff] %v3498
          %3518 = vst [vmem:[%s388 + $0x18] sm:$0xff] %v3499
          %3519 = vst [vmem:[%s388 + $0x20] sm:$0xff] %v3500
          %3520 = vst [vmem:[%s388 + $0x28] sm:$0xff] %v3501
          %3521 = vst [vmem:[%s388 + $0x30] sm:$0xff] %v3502
          %3522 = vst [vmem:[%s388 + $0x38] sm:$0xff] %v3503
          %3523 = vst [vmem:[%s388 + $0x40] sm:$0xff] %v3504
          %3524 = vst [vmem:[%s388 + $0x48] sm:$0xff] %v3505
          %3525 = vst [vmem:[%s388 + $0x50] sm:$0xff] %v3506
          %3526 = vst [vmem:[%s388 + $0x58] sm:$0xff] %v3507
          %3527 = vst [vmem:[%s388 + $0x60] sm:$0xff] %v3508
          %3528 = vst [vmem:[%s388 + $0x68] sm:$0xff] %v3509
          %3529 = vst [vmem:[%s388 + $0x70] sm:$0xff] %v3510
          %3530 = vst [vmem:[%s388 + $0x78] sm:$0xff] %v3511
          %3531 = vst [vmem:[%s388 + $0x80] sm:$0xff] %v3512
          %3532 = vst [vmem:[%s388 + $0x88] sm:$0xff] %v3513
          %3533 = vst [vmem:[%s388 + $0x90] sm:$0xff] %v3514
        $region68: #{tpu_custom_call.1} parent=39 // pred_fallthru
          _
        %s3534 = sand.u32 %s178, 1
        %s3535 = scalar_lea.sflag [#allocation4], %s3534
        %s3536 = sand.u32 %s178, 1
        %s3537 = smul.addr %s3536, 152
        %s3538 = scalar_lea.vmem [#allocation11], %s3537
        // Predicated region
        $region69: #{tpu_custom_call.1} parent=39 // pred_check
          %p3539 = pneg %p188
        $region70: #{tpu_custom_call.1} parent=39 // pred_check_branch
          %3541 = sbr.rel (%p3539) target = $region72
        $region71: #{tpu_custom_call.1} parent=39 // pred_region
          %s3542 = smul.u32 19, %s30
          %s3544 = ssub.s32 2432, 2432
          %3545 = vsyncadd %s3535, %s3544
          %s3546 = smul.addr %s3542, 128
          %s3547 = scalar_lea.hbm %s5, %s3546
          %s3549 = sshll.u32 %s3538, 4
          %s3550 = int_to_ptr.vmem [resolvable:$true] %s3549
          %3552 = dma.vmem_to_hbm [thread:$0]  %s3550, 2432, %s3547, %s3535
        $region72: #{tpu_custom_call.1} parent=39 // pred_fallthru
          _
      $region40: #{tpu_custom_call.1} parent=5 // pred_fallthru
        _
      %p3553 = scmp.le.s32.totalorder 2, %s21
      // Predicated region
      $region73: #{tpu_custom_call.1} parent=5 // pred_check
        %p3554 = pneg %p3553
      $region74: #{tpu_custom_call.1} parent=5 // pred_check_branch
        %3556 = sbr.rel (%p3554) target = $region76
      $region75: #{tpu_custom_call.1} parent=5 // pred_region
        %s3557 = ssub.s32 %s21, 2
        // Predicated region
        $region77: #{tpu_custom_call.1} parent=75 // pred_check
          %p3558 = pneg %p194
        $region78: #{tpu_custom_call.1} parent=75 // pred_check_branch
          %3560 = sbr.rel (%p3558) target = $region80
        $region79: #{tpu_custom_call.1} parent=75 // pred_region
          %s3561 = sand.u32 %s179, 1
          %s3562 = scalar_lea.sflag [#allocation4], %s3561
          %s3563 = sand.u32 %s179, 1
          %s3564 = smul.addr %s3563, 152
          %s3565 = scalar_lea.vmem [#allocation11], %s3564
          %3566 = dma.done %s3562, 2432
        $region80: #{tpu_custom_call.1} parent=75 // pred_fallthru
          _
      $region76: #{tpu_custom_call.1} parent=5 // pred_fallthru
        _
    $region6: #{tpu_custom_call.1} parent=1 // loop_footer
      %s25 = sadd.s32 1, %s21
    $region7: #{tpu_custom_call.1} parent=1 // loop_footer_branch
      %20 = sbr.rel target = $region3
    $region8: #{tpu_custom_call.1} parent=1 // loop_exit
      _
    %3567 = vsyncpa [#allocation3], 1
    %s3568 = scalar_lea.sflag [#allocation3], 1
    %3569 = vsyncpa %s3568, 1
    %3570 = vsyncpa [#allocation6], 1
    %s3571 = scalar_lea.sflag [#allocation6], 1
    %3572 = vsyncpa %s3571, 1
    %3573 = vsyncpa [#allocation9], 1
    %s3574 = scalar_lea.sflag [#allocation9], 1
    %3575 = vsyncpa %s3574, 1
    %3576 = vsyncpa [#allocation4], 1
    %s3577 = scalar_lea.sflag [#allocation4], 1
    %3578 = vsyncpa %s3577, 1

</llo_original>
